<compile_context>
chip_gen: v5e
topology: v5e:2x2
jax: 0.10.0
libtpu: 0.0.40
codegen_flags: <defaults>
</compile_context>

<pallas_src>
import jax
import jax.numpy as jnp
from jax import lax
from jax.experimental import pallas as pl
from jax.experimental.pallas import tpu as pltpu

_LANE = 128     # TPU vreg lane width
_SUBLANE = 8    # f32 sublane width


def _concat_linear_relu_kernel(x1_ref, x2_ref, w_ref, b_ref, o_ref):
    """Fused relu([x1 | x2] @ W + b) on one (bm, Np) output tile, all in VMEM.

    x1_ref: (bm, K1) f32   -- flattened first input (row block)
    x2_ref: (bm, K2) f32   -- flattened second input (row block)
    w_ref : (K1+K2, Np) f32 -- weight pre-transposed at prep time, canonical (K, N)
    b_ref : (1, Np) f32
    o_ref : (bm, Np) f32   -- lane-dense output (Np % 128 == 0 -> unmasked vst)
    """
    k1 = x1_ref.shape[1]
    dn = (((1,), (0,)), ((), ()))  # standard (M,K) x (K,N) contraction
    # precision=HIGHEST: MXU has no native f32; force enough bf16 passes to
    # hold the 1e-4 tolerance at K=2048 (extra passes are perf-free here).
    acc = lax.dot_general(
        x1_ref[...], w_ref[:k1, :], dn,
        preferred_element_type=jnp.float32,
        precision=lax.Precision.HIGHEST,
    )
    acc = acc + lax.dot_general(
        x2_ref[...], w_ref[k1:, :], dn,
        preferred_element_type=jnp.float32,
        precision=lax.Precision.HIGHEST,
    )
    o_ref[...] = jnp.maximum(acc + b_ref[...], 0.0).astype(o_ref.dtype)


def prepare_linear_params(weight, bias, param_dtype=jnp.float32):
    """One-time parameter prep (do NOT call per forward):

      * transpose PyTorch (out, in) weight -> canonical MXU (in, out_pad),
      * pad out_channels up to a multiple of 128 so the kernel's weight
        columns / output lanes are dense,
      * optionally store in bf16 (halves weight HBM traffic; ~1e-3 error).
    """
    n, k = weight.shape
    n_pad = ((n + _LANE - 1) // _LANE) * _LANE
    w_t = jnp.zeros((k, n_pad), param_dtype).at[:, :n].set(
        weight.T.astype(param_dtype))
    b_pad = jnp.zeros((1, n_pad), param_dtype).at[0, :n].set(
        bias.astype(param_dtype))
    return w_t, b_pad


def _fused_concat_linear_relu(x1f, x2f, w_t, b_pad, *, block_b=256):
    B, k1 = x1f.shape
    k2 = x2f.shape[1]
    kw, n_pad = w_t.shape
    assert kw == k1 + k2, (kw, k1, k2)
    # Lane/sublane alignment of the in-kernel weight halves and output slab.
    assert k1 % _LANE == 0 and k2 % _LANE == 0, (
        "flattened feature sizes must be multiples of 128 for lane-aligned "
        "weight-half views", k1, k2)
    assert k1 % _SUBLANE == 0 and n_pad % _LANE == 0

    flops = 2 * B * (k1 + k2) * n_pad
    bytes_accessed = 4 * (x1f.size + x2f.size) + \
        w_t.dtype.itemsize * w_t.size + b_pad.dtype.itemsize * b_pad.size + \
        4 * B * n_pad
    cost = pl.CostEstimate(flops=flops, transcendentals=0,
                           bytes_accessed=bytes_accessed)
    out_shape = jax.ShapeDtypeStruct((B, n_pad), x1f.dtype)

    if B <= block_b:
        # Single-shot, gridless: whole problem resident in VMEM (~1.3 MB here),
        # zero pipeline steps.  Right call on every generation at this size.
        vmem = pl.BlockSpec(memory_space=pltpu.MemorySpace.VMEM)
        return pl.pallas_call(
            _concat_linear_relu_kernel,
            out_shape=out_shape,
            in_specs=[vmem, vmem, vmem, vmem],
            out_specs=vmem,
            cost_estimate=cost,
        )(x1f, x2f, w_t, b_pad)

    # Scaling path (large B): batch grid, weight/bias VMEM-resident across
    # steps (index_map always (0,0)), "parallel" so v7x megacore splits rows.
    assert B % block_b == 0, (B, block_b)
    return pl.pallas_call(
        _concat_linear_relu_kernel,
        out_shape=out_shape,
        grid_spec=pltpu.PrefetchScalarGridSpec(
            num_scalar_prefetch=0,
            grid=(B // block_b,),
            in_specs=[
                pl.BlockSpec((block_b, k1), lambda i: (i, 0)),
                pl.BlockSpec((block_b, k2), lambda i: (i, 0)),
                pl.BlockSpec((kw, n_pad), lambda i: (0, 0)),
                pl.BlockSpec((1, n_pad), lambda i: (0, 0)),
            ],
            out_specs=pl.BlockSpec((block_b, n_pad), lambda i: (i, 0)),
        ),
        compiler_params=pltpu.CompilerParams(
            dimension_semantics=("parallel",)),
        cost_estimate=cost,
    )(x1f, x2f, w_t, b_pad)


def chembl_concat_flatten(two_data, w_t, b_pad, out_channels,
                          *, slice_output=True):
    """JAX/Pallas equivalent of ChemblConcatFlatten.forward.

    two_data: ((x1, aux1), (x2, aux2)); x1, x2 NCHW (or already 2-D).
    w_t, b_pad: padded + pre-transposed params from prepare_linear_params.
    slice_output=False returns the lane-dense (B, N_pad) slab so a downstream
    Pallas consumer can skip the extra slice op (fold it in there instead).
    Returns (relu(linear(concat_flatten(x1, x2))), aux1).
    """
    x1 = two_data[0][0]
    x2 = two_data[1][0]
    B = x1.shape[0]
    # Channel-concat + flatten of contiguous NCHW == row-wise [x1_flat | x2_flat];
    # the reshapes are free and the concat is fused into the kernel (two dots
    # against the corresponding halves of the pre-transposed weight).
    x1f = x1.reshape(B, -1)
    x2f = x2.reshape(B, -1)
    out = _fused_concat_linear_relu(x1f, x2f, w_t, b_pad)
    if slice_output:
        out = out[:, :out_channels]
    return out, two_data[0][1]


if __name__ == "__main__":
    # Small shapes consistent with the module: NCHW inputs, channel concat.
    B, C, H, W = 2, 4, 16, 16
    out_channels = 32
    in_features = 2 * C * H * W  # 2048

    key = jax.random.PRNGKey(0)
    k1, k2, k3, kw, kb = jax.random.split(key, 5)

    x1 = jax.random.normal(k1, (B, C, H, W), dtype=jnp.float32)
    x2 = jax.random.normal(k2, (B, C, H, W), dtype=jnp.float32)
    aux1 = jax.random.normal(k3, (B, 8), dtype=jnp.float32)  # pass-through element

    # Deterministic synthetic parameters (PyTorch Linear layout: (out, in)).
    weight = jax.random.normal(kw, (out_channels, in_features),
                               dtype=jnp.float32) * 0.02
    bias = jax.random.normal(kb, (out_channels,), dtype=jnp.float32) * 0.02

    # One-time prep: transpose to (K, N_pad) + lane-dense padding (f32 kept so
    # the 1e-4 tolerance holds; pass param_dtype=jnp.bfloat16 to halve weight
    # HBM traffic if ~1e-3 error is acceptable).
    w_t, b_pad = prepare_linear_params(weight, bias)

    two_data = ((x1, aux1), (x2, None))
    out, passthrough = chembl_concat_flatten(two_data, w_t, b_pad, out_channels)
    out = jax.block_until_ready(out)

    # Pure-JAX reference check (same HIGHEST precision as the kernel dots).
    x_ref = jnp.concatenate([x1, x2], axis=1).reshape(B, -1)
    ref = jnp.maximum(
        jnp.dot(x_ref, weight.T, precision=lax.Precision.HIGHEST) + bias, 0.0)
    assert out.shape == (B, out_channels)
    assert jnp.allclose(out, ref, atol=1e-4, rtol=1e-4), "mismatch vs reference"
    assert passthrough is aux1

    print("KERNEL_OK")
</pallas_src>

<mosaic_0001>
module attributes {stable_mosaic.version = 11 : i64} {
  func.func @_concat_linear_relu_kernel(%arg0: memref<2x1024xf32, #tpu.memory_space<vmem>>, %arg1: memref<2x1024xf32, #tpu.memory_space<vmem>>, %arg2: memref<2048x128xf32, #tpu.memory_space<vmem>>, %arg3: memref<1x128xf32, #tpu.memory_space<vmem>>, %arg4: memref<2x128xf32, #tpu.memory_space<vmem>>) attributes {dimension_semantics = [], scalar_prefetch = 0 : i64, scratch_operands = 0 : i64, tpu.core_type = #tpu.core_type<tc>} {
    %c0 = arith.constant 0 : index
    %c0_0 = arith.constant 0 : index
    %0 = vector.load %arg0[%c0, %c0_0] : memref<2x1024xf32, #tpu.memory_space<vmem>>, vector<2x1024xf32>
    %c0_1 = arith.constant 0 : index
    %c0_2 = arith.constant 0 : index
    %1 = vector.load %arg2[%c0_1, %c0_2] : memref<2048x128xf32, #tpu.memory_space<vmem>>, vector<1024x128xf32>
    %cst = arith.constant dense<0.000000e+00> : vector<2x128xf32>
    %2 = tpu.matmul %0, %1, %cst {dimension_numbers = #tpu.dot_dimension_numbers<[1], [0], [0], [1], [0, 0, 1, 1], [], []>, precision = #tpu.contract_precision<fp32>} : vector<2x1024xf32>, vector<1024x128xf32>, vector<2x128xf32> -> vector<2x128xf32>
    %c0_3 = arith.constant 0 : index
    %c0_4 = arith.constant 0 : index
    %3 = vector.load %arg1[%c0_3, %c0_4] : memref<2x1024xf32, #tpu.memory_space<vmem>>, vector<2x1024xf32>
    %c1024 = arith.constant 1024 : index
    %c0_5 = arith.constant 0 : index
    %4 = vector.load %arg2[%c1024, %c0_5] : memref<2048x128xf32, #tpu.memory_space<vmem>>, vector<1024x128xf32>
    %cst_6 = arith.constant dense<0.000000e+00> : vector<2x128xf32>
    %5 = tpu.matmul %3, %4, %cst_6 {dimension_numbers = #tpu.dot_dimension_numbers<[1], [0], [0], [1], [0, 0, 1, 1], [], []>, precision = #tpu.contract_precision<fp32>} : vector<2x1024xf32>, vector<1024x128xf32>, vector<2x128xf32> -> vector<2x128xf32>
    %6 = arith.addf %2, %5 : vector<2x128xf32>
    %c0_7 = arith.constant 0 : index
    %c0_8 = arith.constant 0 : index
    %7 = vector.load %arg3[%c0_7, %c0_8] : memref<1x128xf32, #tpu.memory_space<vmem>>, vector<1x128xf32>
    %8 = vector.broadcast %7 : vector<1x128xf32> to vector<2x128xf32>
    %9 = arith.addf %6, %8 : vector<2x128xf32>
    %cst_9 = arith.constant 0.000000e+00 : f32
    %10 = vector.broadcast %cst_9 : f32 to vector<2x128xf32>
    %11 = arith.maximumf %9, %10 : vector<2x128xf32>
    %c0_10 = arith.constant 0 : index
    %c0_11 = arith.constant 0 : index
    %12 = vector.load %arg4[%c0_10, %c0_11] : memref<2x128xf32, #tpu.memory_space<vmem>>, vector<2x128xf32>
    tpu.vector_store %arg4[%c0_10, %c0_11], %11 {strides = array<i32>} : memref<2x128xf32, #tpu.memory_space<vmem>>, vector<2x128xf32>,
    return
  }
}

</mosaic_0001>

<llo_original>
// kernel: tpu_custom_call.1
$region0: #{tpu_custom_call.1}
  #allocation0 [shape = 'u32[]', space=smem, size = 0x4, offset = 0x4, fixed_abs, tag = 'smem constant byte address 0x4 - core index']
  #allocation1 [shape = 'u32[72,128]{1,0:T(1,128)}', space=vmem, size = 0x9000, scoped, tag = 'internal scratch']
  %s0 = inlined_call_operand.hbm [shape: f32[2,1024], index: 0, kind: input, shape index: {}]
  %s1 = inlined_call_operand.hbm [shape: f32[2,1024], index: 1, kind: input, shape index: {}]
  %s2 = inlined_call_operand.hbm [shape: f32[2048,128], index: 2, kind: input, shape index: {}]
  %s3 = inlined_call_operand.vmem [shape: f32[1,128], index: 3, kind: input, shape index: {}]
  %s4 = inlined_call_operand.hbm [shape: f32[2,128], index: 4, kind: output, shape index: {}]
  %s5 = sld [smem:[#allocation0]]
  $region38: #{tpu_custom_call.1} parent=0
    _
  %s7 = ssub.s32 1, %s5
  %s8 = scalar_select 0, %s7, %s5
  $region1: #{tpu_custom_call.1} parent=0
    #allocation2 [shape = 'u8[8192]{0}', space=vmem, size = 0x2000, scoped, tag = 'input window, operand 0, single buffered']
    #allocation3 [shape = 's32[1]{0}', space=sflag, size = 0x4, scoped, tag = 'scoped memory for tpu_custom_call.1']
    #allocation4 [shape = 's32[1]{0}', space=sflag, size = 0x4, scoped, tag = 'scoped memory for tpu_custom_call.1']
    #allocation5 [shape = 'u8[8192]{0}', space=vmem, size = 0x2000, scoped, tag = 'input window, operand 1, single buffered']
    #allocation6 [shape = 's32[1]{0}', space=sflag, size = 0x4, scoped, tag = 'scoped memory for tpu_custom_call.1']
    #allocation7 [shape = 'u8[1048576]{0}', space=vmem, size = 0x100000, scoped, tag = 'input window, operand 2, single buffered']
    #allocation8 [shape = 'u8[1024]{0}', space=vmem, size = 0x400, scoped, tag = 'output window, operand 0, single buffered']
    %9 = vsyncpa [#allocation3], 0
    %10 = vsyncpa [#allocation6], 0
    %11 = vsyncpa [#allocation4], 0
    // Predicated region
    $region2: #{tpu_custom_call.1} parent=1 // pred_check
      _
    $region3: #{tpu_custom_call.1} parent=1 // pred_check_branch
      %13 = sbr.rel (0) target = $region5
    $region4: #{tpu_custom_call.1} parent=1 // pred_region
      %15 = vsyncadd [#allocation3], 0
      %s17 = sshll.u32 %s0, 4
      %s18 = int_to_ptr.hbm [resolvable:$true] %s17
      %s19 = sshll.u32 [#allocation2], 4
      %s20 = int_to_ptr.vmem [resolvable:$true] %s19
      %22 = dma.hbm_to_vmem [thread:$0]  %s18, 256, %s20, [#allocation3]
    $region5: #{tpu_custom_call.1} parent=1 // pred_fallthru
      _
    // Predicated region
    $region6: #{tpu_custom_call.1} parent=1 // pred_check
      _
    $region7: #{tpu_custom_call.1} parent=1 // pred_check_branch
      %24 = sbr.rel (0) target = $region9
    $region8: #{tpu_custom_call.1} parent=1 // pred_region
      %26 = vsyncadd [#allocation6], 0
      %s28 = sshll.u32 %s1, 4
      %s29 = int_to_ptr.hbm [resolvable:$true] %s28
      %s30 = sshll.u32 [#allocation5], 4
      %s31 = int_to_ptr.vmem [resolvable:$true] %s30
      %33 = dma.hbm_to_vmem [thread:$0]  %s29, 256, %s31, [#allocation6]
    $region9: #{tpu_custom_call.1} parent=1 // pred_fallthru
      _
    // Predicated region
    $region10: #{tpu_custom_call.1} parent=1 // pred_check
      _
    $region11: #{tpu_custom_call.1} parent=1 // pred_check_branch
      %35 = sbr.rel (0) target = $region13
    $region12: #{tpu_custom_call.1} parent=1 // pred_region
      %37 = vsyncadd [#allocation6], 0
      %s38 = sshll.u32 %s2, 4
      %s39 = int_to_ptr.hbm [resolvable:$true] %s38
      %s40 = sshll.u32 [#allocation7], 4
      %s41 = int_to_ptr.vmem [resolvable:$true] %s40
      %46 = dma.hbm_to_vmem [thread:$0]  %s39, 32768, %s41, [#allocation6], 128, 128, 8
    $region13: #{tpu_custom_call.1} parent=1 // pred_fallthru
      _
    // Predicated region
    $region14: #{tpu_custom_call.1} parent=1 // pred_check
      _
    $region15: #{tpu_custom_call.1} parent=1 // pred_check_branch
      %48 = sbr.rel (0) target = $region17
    $region16: #{tpu_custom_call.1} parent=1 // pred_region
      _
    $region17: #{tpu_custom_call.1} parent=1 // pred_fallthru
      _
    // Predicated region
    $region18: #{tpu_custom_call.1} parent=1 // pred_check
      _
    $region19: #{tpu_custom_call.1} parent=1 // pred_check_branch
      %50 = sbr.rel (0) target = $region21
    $region20: #{tpu_custom_call.1} parent=1 // pred_region
      %52 = dma.done [#allocation3], 256
    $region21: #{tpu_custom_call.1} parent=1 // pred_fallthru
      _
    // Predicated region
    $region22: #{tpu_custom_call.1} parent=1 // pred_check
      _
    $region23: #{tpu_custom_call.1} parent=1 // pred_check_branch
      %54 = sbr.rel (0) target = $region25
    $region24: #{tpu_custom_call.1} parent=1 // pred_region
      %56 = dma.done [#allocation6], 256
    $region25: #{tpu_custom_call.1} parent=1 // pred_fallthru
      _
    // Predicated region
    $region26: #{tpu_custom_call.1} parent=1 // pred_check
      _
    $region27: #{tpu_custom_call.1} parent=1 // pred_check_branch
      %58 = sbr.rel (0) target = $region29
    $region28: #{tpu_custom_call.1} parent=1 // pred_region
      %60 = dma.done [#allocation6], 32768
    $region29: #{tpu_custom_call.1} parent=1 // pred_fallthru
      _
    %v61 = vld [vmem:[#allocation2] sm:$0xff]
    %v62 = vld [vmem:[#allocation2 + $0x8] sm:$0xff]
    %v63 = vld [vmem:[#allocation7] sm:$0xff]
    %v64 = vld [vmem:[#allocation7 + $0x8] sm:$0xff]
    %v65 = vld [vmem:[#allocation7 + $0x10] sm:$0xff]
    %v66 = vld [vmem:[#allocation7 + $0x18] sm:$0xff]
    %v67 = vld [vmem:[#allocation7 + $0x20] sm:$0xff]
    %v68 = vld [vmem:[#allocation7 + $0x28] sm:$0xff]
    %v69 = vld [vmem:[#allocation7 + $0x30] sm:$0xff]
    %v70 = vld [vmem:[#allocation7 + $0x38] sm:$0xff]
    %v71 = vld [vmem:[#allocation7 + $0x40] sm:$0xff]
    %v72 = vld [vmem:[#allocation7 + $0x48] sm:$0xff]
    %v73 = vld [vmem:[#allocation7 + $0x50] sm:$0xff]
    %v74 = vld [vmem:[#allocation7 + $0x58] sm:$0xff]
    %v75 = vld [vmem:[#allocation7 + $0x60] sm:$0xff]
    %v76 = vld [vmem:[#allocation7 + $0x68] sm:$0xff]
    %v77 = vld [vmem:[#allocation7 + $0x70] sm:$0xff]
    %v78 = vld [vmem:[#allocation7 + $0x78] sm:$0xff]
    %v79 = vld [vmem:[#allocation7 + $0x80] sm:$0xff]
    %v80 = vld [vmem:[#allocation7 + $0x88] sm:$0xff]
    %v81 = vld [vmem:[#allocation7 + $0x90] sm:$0xff]
    %v82 = vld [vmem:[#allocation7 + $0x98] sm:$0xff]
    %v83 = vld [vmem:[#allocation7 + $0xa0] sm:$0xff]
    %v84 = vld [vmem:[#allocation7 + $0xa8] sm:$0xff]
    %v85 = vld [vmem:[#allocation7 + $0xb0] sm:$0xff]
    %v86 = vld [vmem:[#allocation7 + $0xb8] sm:$0xff]
    %v87 = vld [vmem:[#allocation7 + $0xc0] sm:$0xff]
    %v88 = vld [vmem:[#allocation7 + $0xc8] sm:$0xff]
    %v89 = vld [vmem:[#allocation7 + $0xd0] sm:$0xff]
    %v90 = vld [vmem:[#allocation7 + $0xd8] sm:$0xff]
    %v91 = vld [vmem:[#allocation7 + $0xe0] sm:$0xff]
    %v92 = vld [vmem:[#allocation7 + $0xe8] sm:$0xff]
    %v93 = vld [vmem:[#allocation7 + $0xf0] sm:$0xff]
    %v94 = vld [vmem:[#allocation7 + $0xf8] sm:$0xff]
    %v95 = vld [vmem:[#allocation7 + $0x100] sm:$0xff]
    %v96 = vld [vmem:[#allocation7 + $0x108] sm:$0xff]
    %v97 = vld [vmem:[#allocation7 + $0x110] sm:$0xff]
    %v98 = vld [vmem:[#allocation7 + $0x118] sm:$0xff]
    %v99 = vld [vmem:[#allocation7 + $0x120] sm:$0xff]
    %v100 = vld [vmem:[#allocation7 + $0x128] sm:$0xff]
    %v101 = vld [vmem:[#allocation7 + $0x130] sm:$0xff]
    %v102 = vld [vmem:[#allocation7 + $0x138] sm:$0xff]
    %v103 = vld [vmem:[#allocation7 + $0x140] sm:$0xff]
    %v104 = vld [vmem:[#allocation7 + $0x148] sm:$0xff]
    %v105 = vld [vmem:[#allocation7 + $0x150] sm:$0xff]
    %v106 = vld [vmem:[#allocation7 + $0x158] sm:$0xff]
    %v107 = vld [vmem:[#allocation7 + $0x160] sm:$0xff]
    %v108 = vld [vmem:[#allocation7 + $0x168] sm:$0xff]
    %v109 = vld [vmem:[#allocation7 + $0x170] sm:$0xff]
    %v110 = vld [vmem:[#allocation7 + $0x178] sm:$0xff]
    %v111 = vld [vmem:[#allocation7 + $0x180] sm:$0xff]
    %v112 = vld [vmem:[#allocation7 + $0x188] sm:$0xff]
    %v113 = vld [vmem:[#allocation7 + $0x190] sm:$0xff]
    %v114 = vld [vmem:[#allocation7 + $0x198] sm:$0xff]
    %v115 = vld [vmem:[#allocation7 + $0x1a0] sm:$0xff]
    %v116 = vld [vmem:[#allocation7 + $0x1a8] sm:$0xff]
    %v117 = vld [vmem:[#allocation7 + $0x1b0] sm:$0xff]
    %v118 = vld [vmem:[#allocation7 + $0x1b8] sm:$0xff]
    %v119 = vld [vmem:[#allocation7 + $0x1c0] sm:$0xff]
    %v120 = vld [vmem:[#allocation7 + $0x1c8] sm:$0xff]
    %v121 = vld [vmem:[#allocation7 + $0x1d0] sm:$0xff]
    %v122 = vld [vmem:[#allocation7 + $0x1d8] sm:$0xff]
    %v123 = vld [vmem:[#allocation7 + $0x1e0] sm:$0xff]
    %v124 = vld [vmem:[#allocation7 + $0x1e8] sm:$0xff]
    %v125 = vld [vmem:[#allocation7 + $0x1f0] sm:$0xff]
    %v126 = vld [vmem:[#allocation7 + $0x1f8] sm:$0xff]
    %v127 = vld [vmem:[#allocation7 + $0x200] sm:$0xff]
    %v128 = vld [vmem:[#allocation7 + $0x208] sm:$0xff]
    %v129 = vld [vmem:[#allocation7 + $0x210] sm:$0xff]
    %v130 = vld [vmem:[#allocation7 + $0x218] sm:$0xff]
    %v131 = vld [vmem:[#allocation7 + $0x220] sm:$0xff]
    %v132 = vld [vmem:[#allocation7 + $0x228] sm:$0xff]
    %v133 = vld [vmem:[#allocation7 + $0x230] sm:$0xff]
    %v134 = vld [vmem:[#allocation7 + $0x238] sm:$0xff]
    %v135 = vld [vmem:[#allocation7 + $0x240] sm:$0xff]
    %v136 = vld [vmem:[#allocation7 + $0x248] sm:$0xff]
    %v137 = vld [vmem:[#allocation7 + $0x250] sm:$0xff]
    %v138 = vld [vmem:[#allocation7 + $0x258] sm:$0xff]
    %v139 = vld [vmem:[#allocation7 + $0x260] sm:$0xff]
    %v140 = vld [vmem:[#allocation7 + $0x268] sm:$0xff]
    %v141 = vld [vmem:[#allocation7 + $0x270] sm:$0xff]
    %v142 = vld [vmem:[#allocation7 + $0x278] sm:$0xff]
    %v143 = vld [vmem:[#allocation7 + $0x280] sm:$0xff]
    %v144 = vld [vmem:[#allocation7 + $0x288] sm:$0xff]
    %v145 = vld [vmem:[#allocation7 + $0x290] sm:$0xff]
    %v146 = vld [vmem:[#allocation7 + $0x298] sm:$0xff]
    %v147 = vld [vmem:[#allocation7 + $0x2a0] sm:$0xff]
    %v148 = vld [vmem:[#allocation7 + $0x2a8] sm:$0xff]
    %v149 = vld [vmem:[#allocation7 + $0x2b0] sm:$0xff]
    %v150 = vld [vmem:[#allocation7 + $0x2b8] sm:$0xff]
    %v151 = vld [vmem:[#allocation7 + $0x2c0] sm:$0xff]
    %v152 = vld [vmem:[#allocation7 + $0x2c8] sm:$0xff]
    %v153 = vld [vmem:[#allocation7 + $0x2d0] sm:$0xff]
    %v154 = vld [vmem:[#allocation7 + $0x2d8] sm:$0xff]
    %v155 = vld [vmem:[#allocation7 + $0x2e0] sm:$0xff]
    %v156 = vld [vmem:[#allocation7 + $0x2e8] sm:$0xff]
    %v157 = vld [vmem:[#allocation7 + $0x2f0] sm:$0xff]
    %v158 = vld [vmem:[#allocation7 + $0x2f8] sm:$0xff]
    %v159 = vld [vmem:[#allocation7 + $0x300] sm:$0xff]
    %v160 = vld [vmem:[#allocation7 + $0x308] sm:$0xff]
    %v161 = vld [vmem:[#allocation7 + $0x310] sm:$0xff]
    %v162 = vld [vmem:[#allocation7 + $0x318] sm:$0xff]
    %v163 = vld [vmem:[#allocation7 + $0x320] sm:$0xff]
    %v164 = vld [vmem:[#allocation7 + $0x328] sm:$0xff]
    %v165 = vld [vmem:[#allocation7 + $0x330] sm:$0xff]
    %v166 = vld [vmem:[#allocation7 + $0x338] sm:$0xff]
    %v167 = vld [vmem:[#allocation7 + $0x340] sm:$0xff]
    %v168 = vld [vmem:[#allocation7 + $0x348] sm:$0xff]
    %v169 = vld [vmem:[#allocation7 + $0x350] sm:$0xff]
    %v170 = vld [vmem:[#allocation7 + $0x358] sm:$0xff]
    %v171 = vld [vmem:[#allocation7 + $0x360] sm:$0xff]
    %v172 = vld [vmem:[#allocation7 + $0x368] sm:$0xff]
    %v173 = vld [vmem:[#allocation7 + $0x370] sm:$0xff]
    %v174 = vld [vmem:[#allocation7 + $0x378] sm:$0xff]
    %v175 = vld [vmem:[#allocation7 + $0x380] sm:$0xff]
    %v176 = vld [vmem:[#allocation7 + $0x388] sm:$0xff]
    %v177 = vld [vmem:[#allocation7 + $0x390] sm:$0xff]
    %v178 = vld [vmem:[#allocation7 + $0x398] sm:$0xff]
    %v179 = vld [vmem:[#allocation7 + $0x3a0] sm:$0xff]
    %v180 = vld [vmem:[#allocation7 + $0x3a8] sm:$0xff]
    %v181 = vld [vmem:[#allocation7 + $0x3b0] sm:$0xff]
    %v182 = vld [vmem:[#allocation7 + $0x3b8] sm:$0xff]
    %v183 = vld [vmem:[#allocation7 + $0x3c0] sm:$0xff]
    %v184 = vld [vmem:[#allocation7 + $0x3c8] sm:$0xff]
    %v185 = vld [vmem:[#allocation7 + $0x3d0] sm:$0xff]
    %v186 = vld [vmem:[#allocation7 + $0x3d8] sm:$0xff]
    %v187 = vld [vmem:[#allocation7 + $0x3e0] sm:$0xff]
    %v188 = vld [vmem:[#allocation7 + $0x3e8] sm:$0xff]
    %v189 = vld [vmem:[#allocation7 + $0x3f0] sm:$0xff]
    %v190 = vld [vmem:[#allocation7 + $0x3f8] sm:$0xff]
    %v191 = vld [vmem:[#allocation5] sm:$0xff]
    %v192 = vld [vmem:[#allocation5 + $0x8] sm:$0xff]
    %v193 = vld [vmem:[#allocation7 + $0x400] sm:$0xff]
    %v194 = vld [vmem:[#allocation7 + $0x408] sm:$0xff]
    %v195 = vld [vmem:[#allocation7 + $0x410] sm:$0xff]
    %v196 = vld [vmem:[#allocation7 + $0x418] sm:$0xff]
    %v197 = vld [vmem:[#allocation7 + $0x420] sm:$0xff]
    %v198 = vld [vmem:[#allocation7 + $0x428] sm:$0xff]
    %v199 = vld [vmem:[#allocation7 + $0x430] sm:$0xff]
    %v200 = vld [vmem:[#allocation7 + $0x438] sm:$0xff]
    %v201 = vld [vmem:[#allocation7 + $0x440] sm:$0xff]
    %v202 = vld [vmem:[#allocation7 + $0x448] sm:$0xff]
    %v203 = vld [vmem:[#allocation7 + $0x450] sm:$0xff]
    %v204 = vld [vmem:[#allocation7 + $0x458] sm:$0xff]
    %v205 = vld [vmem:[#allocation7 + $0x460] sm:$0xff]
    %v206 = vld [vmem:[#allocation7 + $0x468] sm:$0xff]
    %v207 = vld [vmem:[#allocation7 + $0x470] sm:$0xff]
    %v208 = vld [vmem:[#allocation7 + $0x478] sm:$0xff]
    %v209 = vld [vmem:[#allocation7 + $0x480] sm:$0xff]
    %v210 = vld [vmem:[#allocation7 + $0x488] sm:$0xff]
    %v211 = vld [vmem:[#allocation7 + $0x490] sm:$0xff]
    %v212 = vld [vmem:[#allocation7 + $0x498] sm:$0xff]
    %v213 = vld [vmem:[#allocation7 + $0x4a0] sm:$0xff]
    %v214 = vld [vmem:[#allocation7 + $0x4a8] sm:$0xff]
    %v215 = vld [vmem:[#allocation7 + $0x4b0] sm:$0xff]
    %v216 = vld [vmem:[#allocation7 + $0x4b8] sm:$0xff]
    %v217 = vld [vmem:[#allocation7 + $0x4c0] sm:$0xff]
    %v218 = vld [vmem:[#allocation7 + $0x4c8] sm:$0xff]
    %v219 = vld [vmem:[#allocation7 + $0x4d0] sm:$0xff]
    %v220 = vld [vmem:[#allocation7 + $0x4d8] sm:$0xff]
    %v221 = vld [vmem:[#allocation7 + $0x4e0] sm:$0xff]
    %v222 = vld [vmem:[#allocation7 + $0x4e8] sm:$0xff]
    %v223 = vld [vmem:[#allocation7 + $0x4f0] sm:$0xff]
    %v224 = vld [vmem:[#allocation7 + $0x4f8] sm:$0xff]
    %v225 = vld [vmem:[#allocation7 + $0x500] sm:$0xff]
    %v226 = vld [vmem:[#allocation7 + $0x508] sm:$0xff]
    %v227 = vld [vmem:[#allocation7 + $0x510] sm:$0xff]
    %v228 = vld [vmem:[#allocation7 + $0x518] sm:$0xff]
    %v229 = vld [vmem:[#allocation7 + $0x520] sm:$0xff]
    %v230 = vld [vmem:[#allocation7 + $0x528] sm:$0xff]
    %v231 = vld [vmem:[#allocation7 + $0x530] sm:$0xff]
    %v232 = vld [vmem:[#allocation7 + $0x538] sm:$0xff]
    %v233 = vld [vmem:[#allocation7 + $0x540] sm:$0xff]
    %v234 = vld [vmem:[#allocation7 + $0x548] sm:$0xff]
    %v235 = vld [vmem:[#allocation7 + $0x550] sm:$0xff]
    %v236 = vld [vmem:[#allocation7 + $0x558] sm:$0xff]
    %v237 = vld [vmem:[#allocation7 + $0x560] sm:$0xff]
    %v238 = vld [vmem:[#allocation7 + $0x568] sm:$0xff]
    %v239 = vld [vmem:[#allocation7 + $0x570] sm:$0xff]
    %v240 = vld [vmem:[#allocation7 + $0x578] sm:$0xff]
    %v241 = vld [vmem:[#allocation7 + $0x580] sm:$0xff]
    %v242 = vld [vmem:[#allocation7 + $0x588] sm:$0xff]
    %v243 = vld [vmem:[#allocation7 + $0x590] sm:$0xff]
    %v244 = vld [vmem:[#allocation7 + $0x598] sm:$0xff]
    %v245 = vld [vmem:[#allocation7 + $0x5a0] sm:$0xff]
    %v246 = vld [vmem:[#allocation7 + $0x5a8] sm:$0xff]
    %v247 = vld [vmem:[#allocation7 + $0x5b0] sm:$0xff]
    %v248 = vld [vmem:[#allocation7 + $0x5b8] sm:$0xff]
    %v249 = vld [vmem:[#allocation7 + $0x5c0] sm:$0xff]
    %v250 = vld [vmem:[#allocation7 + $0x5c8] sm:$0xff]
    %v251 = vld [vmem:[#allocation7 + $0x5d0] sm:$0xff]
    %v252 = vld [vmem:[#allocation7 + $0x5d8] sm:$0xff]
    %v253 = vld [vmem:[#allocation7 + $0x5e0] sm:$0xff]
    %v254 = vld [vmem:[#allocation7 + $0x5e8] sm:$0xff]
    %v255 = vld [vmem:[#allocation7 + $0x5f0] sm:$0xff]
    %v256 = vld [vmem:[#allocation7 + $0x5f8] sm:$0xff]
    %v257 = vld [vmem:[#allocation7 + $0x600] sm:$0xff]
    %v258 = vld [vmem:[#allocation7 + $0x608] sm:$0xff]
    %v259 = vld [vmem:[#allocation7 + $0x610] sm:$0xff]
    %v260 = vld [vmem:[#allocation7 + $0x618] sm:$0xff]
    %v261 = vld [vmem:[#allocation7 + $0x620] sm:$0xff]
    %v262 = vld [vmem:[#allocation7 + $0x628] sm:$0xff]
    %v263 = vld [vmem:[#allocation7 + $0x630] sm:$0xff]
    %v264 = vld [vmem:[#allocation7 + $0x638] sm:$0xff]
    %v265 = vld [vmem:[#allocation7 + $0x640] sm:$0xff]
    %v266 = vld [vmem:[#allocation7 + $0x648] sm:$0xff]
    %v267 = vld [vmem:[#allocation7 + $0x650] sm:$0xff]
    %v268 = vld [vmem:[#allocation7 + $0x658] sm:$0xff]
    %v269 = vld [vmem:[#allocation7 + $0x660] sm:$0xff]
    %v270 = vld [vmem:[#allocation7 + $0x668] sm:$0xff]
    %v271 = vld [vmem:[#allocation7 + $0x670] sm:$0xff]
    %v272 = vld [vmem:[#allocation7 + $0x678] sm:$0xff]
    %v273 = vld [vmem:[#allocation7 + $0x680] sm:$0xff]
    %v274 = vld [vmem:[#allocation7 + $0x688] sm:$0xff]
    %v275 = vld [vmem:[#allocation7 + $0x690] sm:$0xff]
    %v276 = vld [vmem:[#allocation7 + $0x698] sm:$0xff]
    %v277 = vld [vmem:[#allocation7 + $0x6a0] sm:$0xff]
    %v278 = vld [vmem:[#allocation7 + $0x6a8] sm:$0xff]
    %v279 = vld [vmem:[#allocation7 + $0x6b0] sm:$0xff]
    %v280 = vld [vmem:[#allocation7 + $0x6b8] sm:$0xff]
    %v281 = vld [vmem:[#allocation7 + $0x6c0] sm:$0xff]
    %v282 = vld [vmem:[#allocation7 + $0x6c8] sm:$0xff]
    %v283 = vld [vmem:[#allocation7 + $0x6d0] sm:$0xff]
    %v284 = vld [vmem:[#allocation7 + $0x6d8] sm:$0xff]
    %v285 = vld [vmem:[#allocation7 + $0x6e0] sm:$0xff]
    %v286 = vld [vmem:[#allocation7 + $0x6e8] sm:$0xff]
    %v287 = vld [vmem:[#allocation7 + $0x6f0] sm:$0xff]
    %v288 = vld [vmem:[#allocation7 + $0x6f8] sm:$0xff]
    %v289 = vld [vmem:[#allocation7 + $0x700] sm:$0xff]
    %v290 = vld [vmem:[#allocation7 + $0x708] sm:$0xff]
    %v291 = vld [vmem:[#allocation7 + $0x710] sm:$0xff]
    %v292 = vld [vmem:[#allocation7 + $0x718] sm:$0xff]
    %v293 = vld [vmem:[#allocation7 + $0x720] sm:$0xff]
    %v294 = vld [vmem:[#allocation7 + $0x728] sm:$0xff]
    %v295 = vld [vmem:[#allocation7 + $0x730] sm:$0xff]
    %v296 = vld [vmem:[#allocation7 + $0x738] sm:$0xff]
    %v297 = vld [vmem:[#allocation7 + $0x740] sm:$0xff]
    %v298 = vld [vmem:[#allocation7 + $0x748] sm:$0xff]
    %v299 = vld [vmem:[#allocation7 + $0x750] sm:$0xff]
    %v300 = vld [vmem:[#allocation7 + $0x758] sm:$0xff]
    %v301 = vld [vmem:[#allocation7 + $0x760] sm:$0xff]
    %v302 = vld [vmem:[#allocation7 + $0x768] sm:$0xff]
    %v303 = vld [vmem:[#allocation7 + $0x770] sm:$0xff]
    %v304 = vld [vmem:[#allocation7 + $0x778] sm:$0xff]
    %v305 = vld [vmem:[#allocation7 + $0x780] sm:$0xff]
    %v306 = vld [vmem:[#allocation7 + $0x788] sm:$0xff]
    %v307 = vld [vmem:[#allocation7 + $0x790] sm:$0xff]
    %v308 = vld [vmem:[#allocation7 + $0x798] sm:$0xff]
    %v309 = vld [vmem:[#allocation7 + $0x7a0] sm:$0xff]
    %v310 = vld [vmem:[#allocation7 + $0x7a8] sm:$0xff]
    %v311 = vld [vmem:[#allocation7 + $0x7b0] sm:$0xff]
    %v312 = vld [vmem:[#allocation7 + $0x7b8] sm:$0xff]
    %v313 = vld [vmem:[#allocation7 + $0x7c0] sm:$0xff]
    %v314 = vld [vmem:[#allocation7 + $0x7c8] sm:$0xff]
    %v315 = vld [vmem:[#allocation7 + $0x7d0] sm:$0xff]
    %v316 = vld [vmem:[#allocation7 + $0x7d8] sm:$0xff]
    %v317 = vld [vmem:[#allocation7 + $0x7e0] sm:$0xff]
    %v318 = vld [vmem:[#allocation7 + $0x7e8] sm:$0xff]
    %v319 = vld [vmem:[#allocation7 + $0x7f0] sm:$0xff]
    %v320 = vld [vmem:[#allocation7 + $0x7f8] sm:$0xff]
    %323 = vst [vmem:[#allocation1] ss:$4 sm:$0xff] %v191
    %s324 = scalar_lea.vmem [#allocation1], 32
    %325 = vst [vmem:[%s324] ss:$4 sm:$0xff] %v192
    %v326 = vld.sshfl [vmem:[#allocation1] sm:$0xff pattern:$0x73625140]
    %v327 = vld.sshfl [vmem:[#allocation1 + $0x8] sm:$0xff pattern:$0x73625140]
    %v328 = vld.sshfl [vmem:[#allocation1 + $0x10] sm:$0xff pattern:$0x73625140]
    %v329 = vld.sshfl [vmem:[#allocation1 + $0x18] sm:$0xff pattern:$0x73625140]
    %v330 = vld.sshfl [vmem:[#allocation1 + $0x20] sm:$0xff pattern:$0x73625140]
    %v331 = vld.sshfl [vmem:[#allocation1 + $0x28] sm:$0xff pattern:$0x73625140]
    %v332 = vld.sshfl [vmem:[#allocation1 + $0x30] sm:$0xff pattern:$0x73625140]
    %v333 = vld.sshfl [vmem:[#allocation1 + $0x38] sm:$0xff pattern:$0x73625140]
    %v342 = vand.u32 %v208, 4294901760
    %343 = vmatpush.msra.mxu0 %v342
    %v344 = vand.u32 %v207, 4294901760
    %345 = vmatpush.msra.mxu0 %v344
    %v346 = vand.u32 %v206, 4294901760
    %347 = vmatpush.msra.mxu0 %v346
    %v348 = vand.u32 %v205, 4294901760
    %349 = vmatpush.msra.mxu0 %v348
    %v350 = vand.u32 %v204, 4294901760
    %351 = vmatpush.msra.mxu0 %v350
    %v352 = vand.u32 %v203, 4294901760
    %353 = vmatpush.msra.mxu0 %v352
    %v354 = vand.u32 %v202, 4294901760
    %355 = vmatpush.msra.mxu0 %v354
    %v356 = vand.u32 %v201, 4294901760
    %357 = vmatpush.msra.mxu0 %v356
    %v358 = vand.u32 %v200, 4294901760
    %359 = vmatpush.msra.mxu0 %v358
    %v360 = vand.u32 %v199, 4294901760
    %361 = vmatpush.msra.mxu0 %v360
    %v362 = vand.u32 %v198, 4294901760
    %363 = vmatpush.msra.mxu0 %v362
    %v364 = vand.u32 %v197, 4294901760
    %365 = vmatpush.msra.mxu0 %v364
    %v366 = vand.u32 %v196, 4294901760
    %367 = vmatpush.msra.mxu0 %v366
    %v368 = vand.u32 %v195, 4294901760
    %369 = vmatpush.msra.mxu0 %v368
    %v370 = vand.u32 %v194, 4294901760
    %371 = vmatpush.msra.mxu0 %v370
    %v372 = vand.u32 %v193, 4294901760
    %373 = vmatpush.msra.mxu0 %v372
    %v374 = vand.u32 %v326, 4294901760
    %v375 = vsub.f32 %v326, %v374
    %v376 = vand.u32 %v375, 4294901760
    %v377 = vsub.f32 %v375, %v376
    %v378 = vand.u32 %v377, 4294901760
    %379 = vmatmul.f32.gmra.mxu0 %v378
    %v380 = vpop.f32.mrf.mxu0
    %v381 = vadd.f32 0.0, %v380
    %382 = vdwg.mxu0
    %v383 = vand.u32 %v208, 4294901760
    %v384 = vsub.f32 %v208, %v383
    %v385 = vand.u32 %v384, 4294901760
    %v386 = vsub.f32 %v384, %v385
    %v387 = vand.u32 %v386, 4294901760
    %388 = vmatpush.msra.mxu0 %v387
    %v389 = vand.u32 %v207, 4294901760
    %v390 = vsub.f32 %v207, %v389
    %v391 = vand.u32 %v390, 4294901760
    %v392 = vsub.f32 %v390, %v391
    %v393 = vand.u32 %v392, 4294901760
    %394 = vmatpush.msra.mxu0 %v393
    %v395 = vand.u32 %v206, 4294901760
    %v396 = vsub.f32 %v206, %v395
    %v397 = vand.u32 %v396, 4294901760
    %v398 = vsub.f32 %v396, %v397
    %v399 = vand.u32 %v398, 4294901760
    %400 = vmatpush.msra.mxu0 %v399
    %v401 = vand.u32 %v205, 4294901760
    %v402 = vsub.f32 %v205, %v401
    %v403 = vand.u32 %v402, 4294901760
    %v404 = vsub.f32 %v402, %v403
    %v405 = vand.u32 %v404, 4294901760
    %406 = vmatpush.msra.mxu0 %v405
    %v407 = vand.u32 %v204, 4294901760
    %v408 = vsub.f32 %v204, %v407
    %v409 = vand.u32 %v408, 4294901760
    %v410 = vsub.f32 %v408, %v409
    %v411 = vand.u32 %v410, 4294901760
    %412 = vmatpush.msra.mxu0 %v411
    %v413 = vand.u32 %v203, 4294901760
    %v414 = vsub.f32 %v203, %v413
    %v415 = vand.u32 %v414, 4294901760
    %v416 = vsub.f32 %v414, %v415
    %v417 = vand.u32 %v416, 4294901760
    %418 = vmatpush.msra.mxu0 %v417
    %v419 = vand.u32 %v202, 4294901760
    %v420 = vsub.f32 %v202, %v419
    %v421 = vand.u32 %v420, 4294901760
    %v422 = vsub.f32 %v420, %v421
    %v423 = vand.u32 %v422, 4294901760
    %424 = vmatpush.msra.mxu0 %v423
    %v425 = vand.u32 %v201, 4294901760
    %v426 = vsub.f32 %v201, %v425
    %v427 = vand.u32 %v426, 4294901760
    %v428 = vsub.f32 %v426, %v427
    %v429 = vand.u32 %v428, 4294901760
    %430 = vmatpush.msra.mxu0 %v429
    %v431 = vand.u32 %v200, 4294901760
    %v432 = vsub.f32 %v200, %v431
    %v433 = vand.u32 %v432, 4294901760
    %v434 = vsub.f32 %v432, %v433
    %v435 = vand.u32 %v434, 4294901760
    %436 = vmatpush.msra.mxu0 %v435
    %v437 = vand.u32 %v199, 4294901760
    %v438 = vsub.f32 %v199, %v437
    %v439 = vand.u32 %v438, 4294901760
    %v440 = vsub.f32 %v438, %v439
    %v441 = vand.u32 %v440, 4294901760
    %442 = vmatpush.msra.mxu0 %v441
    %v443 = vand.u32 %v198, 4294901760
    %v444 = vsub.f32 %v198, %v443
    %v445 = vand.u32 %v444, 4294901760
    %v446 = vsub.f32 %v444, %v445
    %v447 = vand.u32 %v446, 4294901760
    %448 = vmatpush.msra.mxu0 %v447
    %v449 = vand.u32 %v197, 4294901760
    %v450 = vsub.f32 %v197, %v449
    %v451 = vand.u32 %v450, 4294901760
    %v452 = vsub.f32 %v450, %v451
    %v453 = vand.u32 %v452, 4294901760
    %454 = vmatpush.msra.mxu0 %v453
    %v455 = vand.u32 %v196, 4294901760
    %v456 = vsub.f32 %v196, %v455
    %v457 = vand.u32 %v456, 4294901760
    %v458 = vsub.f32 %v456, %v457
    %v459 = vand.u32 %v458, 4294901760
    %460 = vmatpush.msra.mxu0 %v459
    %v461 = vand.u32 %v195, 4294901760
    %v462 = vsub.f32 %v195, %v461
    %v463 = vand.u32 %v462, 4294901760
    %v464 = vsub.f32 %v462, %v463
    %v465 = vand.u32 %v464, 4294901760
    %466 = vmatpush.msra.mxu0 %v465
    %v467 = vand.u32 %v194, 4294901760
    %v468 = vsub.f32 %v194, %v467
    %v469 = vand.u32 %v468, 4294901760
    %v470 = vsub.f32 %v468, %v469
    %v471 = vand.u32 %v470, 4294901760
    %472 = vmatpush.msra.mxu0 %v471
    %v473 = vand.u32 %v193, 4294901760
    %v474 = vsub.f32 %v193, %v473
    %v475 = vand.u32 %v474, 4294901760
    %v476 = vsub.f32 %v474, %v475
    %v477 = vand.u32 %v476, 4294901760
    %478 = vmatpush.msra.mxu0 %v477
    %v479 = vand.u32 %v326, 4294901760
    %480 = vmatmul.f32.gmra.mxu0 %v479
    %v481 = vpop.f32.mrf.mxu0
    %v482 = vadd.f32 %v381, %v481
    %483 = vdwg.mxu0
    %v484 = vand.u32 %v208, 4294901760
    %v485 = vsub.f32 %v208, %v484
    %486 = vmatpush.msra.mxu0 %v485
    %v487 = vand.u32 %v207, 4294901760
    %v488 = vsub.f32 %v207, %v487
    %489 = vmatpush.msra.mxu0 %v488
    %v490 = vand.u32 %v206, 4294901760
    %v491 = vsub.f32 %v206, %v490
    %492 = vmatpush.msra.mxu0 %v491
    %v493 = vand.u32 %v205, 4294901760
    %v494 = vsub.f32 %v205, %v493
    %495 = vmatpush.msra.mxu0 %v494
    %v496 = vand.u32 %v204, 4294901760
    %v497 = vsub.f32 %v204, %v496
    %498 = vmatpush.msra.mxu0 %v497
    %v499 = vand.u32 %v203, 4294901760
    %v500 = vsub.f32 %v203, %v499
    %501 = vmatpush.msra.mxu0 %v500
    %v502 = vand.u32 %v202, 4294901760
    %v503 = vsub.f32 %v202, %v502
    %504 = vmatpush.msra.mxu0 %v503
    %v505 = vand.u32 %v201, 4294901760
    %v506 = vsub.f32 %v201, %v505
    %507 = vmatpush.msra.mxu0 %v506
    %v508 = vand.u32 %v200, 4294901760
    %v509 = vsub.f32 %v200, %v508
    %510 = vmatpush.msra.mxu0 %v509
    %v511 = vand.u32 %v199, 4294901760
    %v512 = vsub.f32 %v199, %v511
    %513 = vmatpush.msra.mxu0 %v512
    %v514 = vand.u32 %v198, 4294901760
    %v515 = vsub.f32 %v198, %v514
    %516 = vmatpush.msra.mxu0 %v515
    %v517 = vand.u32 %v197, 4294901760
    %v518 = vsub.f32 %v197, %v517
    %519 = vmatpush.msra.mxu0 %v518
    %v520 = vand.u32 %v196, 4294901760
    %v521 = vsub.f32 %v196, %v520
    %522 = vmatpush.msra.mxu0 %v521
    %v523 = vand.u32 %v195, 4294901760
    %v524 = vsub.f32 %v195, %v523
    %525 = vmatpush.msra.mxu0 %v524
    %v526 = vand.u32 %v194, 4294901760
    %v527 = vsub.f32 %v194, %v526
    %528 = vmatpush.msra.mxu0 %v527
    %v529 = vand.u32 %v193, 4294901760
    %v530 = vsub.f32 %v193, %v529
    %531 = vmatpush.msra.mxu0 %v530
    %v532 = vand.u32 %v326, 4294901760
    %v533 = vsub.f32 %v326, %v532
    %534 = vmatmul.f32.gmra.mxu0 %v533
    %v535 = vpop.f32.mrf.mxu0
    %v536 = vadd.f32 %v482, %v535
    %537 = vdwg.mxu0
    %v538 = vand.u32 %v208, 4294901760
    %539 = vmatpush.msra.mxu0 %v538
    %v540 = vand.u32 %v207, 4294901760
    %541 = vmatpush.msra.mxu0 %v540
    %v542 = vand.u32 %v206, 4294901760
    %543 = vmatpush.msra.mxu0 %v542
    %v544 = vand.u32 %v205, 4294901760
    %545 = vmatpush.msra.mxu0 %v544
    %v546 = vand.u32 %v204, 4294901760
    %547 = vmatpush.msra.mxu0 %v546
    %v548 = vand.u32 %v203, 4294901760
    %549 = vmatpush.msra.mxu0 %v548
    %v550 = vand.u32 %v202, 4294901760
    %551 = vmatpush.msra.mxu0 %v550
    %v552 = vand.u32 %v201, 4294901760
    %553 = vmatpush.msra.mxu0 %v552
    %v554 = vand.u32 %v200, 4294901760
    %555 = vmatpush.msra.mxu0 %v554
    %v556 = vand.u32 %v199, 4294901760
    %557 = vmatpush.msra.mxu0 %v556
    %v558 = vand.u32 %v198, 4294901760
    %559 = vmatpush.msra.mxu0 %v558
    %v560 = vand.u32 %v197, 4294901760
    %561 = vmatpush.msra.mxu0 %v560
    %v562 = vand.u32 %v196, 4294901760
    %563 = vmatpush.msra.mxu0 %v562
    %v564 = vand.u32 %v195, 4294901760
    %565 = vmatpush.msra.mxu0 %v564
    %v566 = vand.u32 %v194, 4294901760
    %567 = vmatpush.msra.mxu0 %v566
    %v568 = vand.u32 %v193, 4294901760
    %569 = vmatpush.msra.mxu0 %v568
    %v570 = vand.u32 %v326, 4294901760
    %v571 = vsub.f32 %v326, %v570
    %v572 = vand.u32 %v571, 4294901760
    %573 = vmatmul.f32.gmra.mxu0 %v572
    %v574 = vpop.f32.mrf.mxu0
    %v575 = vadd.f32 %v536, %v574
    %576 = vdwg.mxu0
    %v577 = vand.u32 %v208, 4294901760
    %v578 = vsub.f32 %v208, %v577
    %v579 = vand.u32 %v578, 4294901760
    %580 = vmatpush.msra.mxu0 %v579
    %v581 = vand.u32 %v207, 4294901760
    %v582 = vsub.f32 %v207, %v581
    %v583 = vand.u32 %v582, 4294901760
    %584 = vmatpush.msra.mxu0 %v583
    %v585 = vand.u32 %v206, 4294901760
    %v586 = vsub.f32 %v206, %v585
    %v587 = vand.u32 %v586, 4294901760
    %588 = vmatpush.msra.mxu0 %v587
    %v589 = vand.u32 %v205, 4294901760
    %v590 = vsub.f32 %v205, %v589
    %v591 = vand.u32 %v590, 4294901760
    %592 = vmatpush.msra.mxu0 %v591
    %v593 = vand.u32 %v204, 4294901760
    %v594 = vsub.f32 %v204, %v593
    %v595 = vand.u32 %v594, 4294901760
    %596 = vmatpush.msra.mxu0 %v595
    %v597 = vand.u32 %v203, 4294901760
    %v598 = vsub.f32 %v203, %v597
    %v599 = vand.u32 %v598, 4294901760
    %600 = vmatpush.msra.mxu0 %v599
    %v601 = vand.u32 %v202, 4294901760
    %v602 = vsub.f32 %v202, %v601
    %v603 = vand.u32 %v602, 4294901760
    %604 = vmatpush.msra.mxu0 %v603
    %v605 = vand.u32 %v201, 4294901760
    %v606 = vsub.f32 %v201, %v605
    %v607 = vand.u32 %v606, 4294901760
    %608 = vmatpush.msra.mxu0 %v607
    %v609 = vand.u32 %v200, 4294901760
    %v610 = vsub.f32 %v200, %v609
    %v611 = vand.u32 %v610, 4294901760
    %612 = vmatpush.msra.mxu0 %v611
    %v613 = vand.u32 %v199, 4294901760
    %v614 = vsub.f32 %v199, %v613
    %v615 = vand.u32 %v614, 4294901760
    %616 = vmatpush.msra.mxu0 %v615
    %v617 = vand.u32 %v198, 4294901760
    %v618 = vsub.f32 %v198, %v617
    %v619 = vand.u32 %v618, 4294901760
    %620 = vmatpush.msra.mxu0 %v619
    %v621 = vand.u32 %v197, 4294901760
    %v622 = vsub.f32 %v197, %v621
    %v623 = vand.u32 %v622, 4294901760
    %624 = vmatpush.msra.mxu0 %v623
    %v625 = vand.u32 %v196, 4294901760
    %v626 = vsub.f32 %v196, %v625
    %v627 = vand.u32 %v626, 4294901760
    %628 = vmatpush.msra.mxu0 %v627
    %v629 = vand.u32 %v195, 4294901760
    %v630 = vsub.f32 %v195, %v629
    %v631 = vand.u32 %v630, 4294901760
    %632 = vmatpush.msra.mxu0 %v631
    %v633 = vand.u32 %v194, 4294901760
    %v634 = vsub.f32 %v194, %v633
    %v635 = vand.u32 %v634, 4294901760
    %636 = vmatpush.msra.mxu0 %v635
    %v637 = vand.u32 %v193, 4294901760
    %v638 = vsub.f32 %v193, %v637
    %v639 = vand.u32 %v638, 4294901760
    %640 = vmatpush.msra.mxu0 %v639
    %v641 = vand.u32 %v326, 4294901760
    %642 = vmatmul.f32.gmra.mxu0 %v641
    %v643 = vpop.f32.mrf.mxu0
    %v644 = vadd.f32 %v575, %v643
    %645 = vdwg.mxu0
    %v646 = vand.u32 %v208, 4294901760
    %647 = vmatpush.msra.mxu0 %v646
    %v648 = vand.u32 %v207, 4294901760
    %649 = vmatpush.msra.mxu0 %v648
    %v650 = vand.u32 %v206, 4294901760
    %651 = vmatpush.msra.mxu0 %v650
    %v652 = vand.u32 %v205, 4294901760
    %653 = vmatpush.msra.mxu0 %v652
    %v654 = vand.u32 %v204, 4294901760
    %655 = vmatpush.msra.mxu0 %v654
    %v656 = vand.u32 %v203, 4294901760
    %657 = vmatpush.msra.mxu0 %v656
    %v658 = vand.u32 %v202, 4294901760
    %659 = vmatpush.msra.mxu0 %v658
    %v660 = vand.u32 %v201, 4294901760
    %661 = vmatpush.msra.mxu0 %v660
    %v662 = vand.u32 %v200, 4294901760
    %663 = vmatpush.msra.mxu0 %v662
    %v664 = vand.u32 %v199, 4294901760
    %665 = vmatpush.msra.mxu0 %v664
    %v666 = vand.u32 %v198, 4294901760
    %667 = vmatpush.msra.mxu0 %v666
    %v668 = vand.u32 %v197, 4294901760
    %669 = vmatpush.msra.mxu0 %v668
    %v670 = vand.u32 %v196, 4294901760
    %671 = vmatpush.msra.mxu0 %v670
    %v672 = vand.u32 %v195, 4294901760
    %673 = vmatpush.msra.mxu0 %v672
    %v674 = vand.u32 %v194, 4294901760
    %675 = vmatpush.msra.mxu0 %v674
    %v676 = vand.u32 %v193, 4294901760
    %677 = vmatpush.msra.mxu0 %v676
    %v678 = vand.u32 %v326, 4294901760
    %679 = vmatmul.f32.gmra.mxu0 %v678
    %v680 = vpop.f32.mrf.mxu0
    %v681 = vadd.f32 %v644, %v680
    %682 = vdwg.mxu0
    %v683 = vand.u32 %v224, 4294901760
    %684 = vmatpush.msra.mxu0 %v683
    %v685 = vand.u32 %v223, 4294901760
    %686 = vmatpush.msra.mxu0 %v685
    %v687 = vand.u32 %v222, 4294901760
    %688 = vmatpush.msra.mxu0 %v687
    %v689 = vand.u32 %v221, 4294901760
    %690 = vmatpush.msra.mxu0 %v689
    %v691 = vand.u32 %v220, 4294901760
    %692 = vmatpush.msra.mxu0 %v691
    %v693 = vand.u32 %v219, 4294901760
    %694 = vmatpush.msra.mxu0 %v693
    %v695 = vand.u32 %v218, 4294901760
    %696 = vmatpush.msra.mxu0 %v695
    %v697 = vand.u32 %v217, 4294901760
    %698 = vmatpush.msra.mxu0 %v697
    %v699 = vand.u32 %v216, 4294901760
    %700 = vmatpush.msra.mxu0 %v699
    %v701 = vand.u32 %v215, 4294901760
    %702 = vmatpush.msra.mxu0 %v701
    %v703 = vand.u32 %v214, 4294901760
    %704 = vmatpush.msra.mxu0 %v703
    %v705 = vand.u32 %v213, 4294901760
    %706 = vmatpush.msra.mxu0 %v705
    %v707 = vand.u32 %v212, 4294901760
    %708 = vmatpush.msra.mxu0 %v707
    %v709 = vand.u32 %v211, 4294901760
    %710 = vmatpush.msra.mxu0 %v709
    %v711 = vand.u32 %v210, 4294901760
    %712 = vmatpush.msra.mxu0 %v711
    %v713 = vand.u32 %v209, 4294901760
    %714 = vmatpush.msra.mxu0 %v713
    %v715 = vand.u32 %v327, 4294901760
    %v716 = vsub.f32 %v327, %v715
    %v717 = vand.u32 %v716, 4294901760
    %v718 = vsub.f32 %v716, %v717
    %v719 = vand.u32 %v718, 4294901760
    %720 = vmatmul.f32.gmra.mxu0 %v719
    %v721 = vpop.f32.mrf.mxu0
    %v722 = vadd.f32 %v681, %v721
    %723 = vdwg.mxu0
    %v724 = vand.u32 %v224, 4294901760
    %v725 = vsub.f32 %v224, %v724
    %v726 = vand.u32 %v725, 4294901760
    %v727 = vsub.f32 %v725, %v726
    %v728 = vand.u32 %v727, 4294901760
    %729 = vmatpush.msra.mxu0 %v728
    %v730 = vand.u32 %v223, 4294901760
    %v731 = vsub.f32 %v223, %v730
    %v732 = vand.u32 %v731, 4294901760
    %v733 = vsub.f32 %v731, %v732
    %v734 = vand.u32 %v733, 4294901760
    %735 = vmatpush.msra.mxu0 %v734
    %v736 = vand.u32 %v222, 4294901760
    %v737 = vsub.f32 %v222, %v736
    %v738 = vand.u32 %v737, 4294901760
    %v739 = vsub.f32 %v737, %v738
    %v740 = vand.u32 %v739, 4294901760
    %741 = vmatpush.msra.mxu0 %v740
    %v742 = vand.u32 %v221, 4294901760
    %v743 = vsub.f32 %v221, %v742
    %v744 = vand.u32 %v743, 4294901760
    %v745 = vsub.f32 %v743, %v744
    %v746 = vand.u32 %v745, 4294901760
    %747 = vmatpush.msra.mxu0 %v746
    %v748 = vand.u32 %v220, 4294901760
    %v749 = vsub.f32 %v220, %v748
    %v750 = vand.u32 %v749, 4294901760
    %v751 = vsub.f32 %v749, %v750
    %v752 = vand.u32 %v751, 4294901760
    %753 = vmatpush.msra.mxu0 %v752
    %v754 = vand.u32 %v219, 4294901760
    %v755 = vsub.f32 %v219, %v754
    %v756 = vand.u32 %v755, 4294901760
    %v757 = vsub.f32 %v755, %v756
    %v758 = vand.u32 %v757, 4294901760
    %759 = vmatpush.msra.mxu0 %v758
    %v760 = vand.u32 %v218, 4294901760
    %v761 = vsub.f32 %v218, %v760
    %v762 = vand.u32 %v761, 4294901760
    %v763 = vsub.f32 %v761, %v762
    %v764 = vand.u32 %v763, 4294901760
    %765 = vmatpush.msra.mxu0 %v764
    %v766 = vand.u32 %v217, 4294901760
    %v767 = vsub.f32 %v217, %v766
    %v768 = vand.u32 %v767, 4294901760
    %v769 = vsub.f32 %v767, %v768
    %v770 = vand.u32 %v769, 4294901760
    %771 = vmatpush.msra.mxu0 %v770
    %v772 = vand.u32 %v216, 4294901760
    %v773 = vsub.f32 %v216, %v772
    %v774 = vand.u32 %v773, 4294901760
    %v775 = vsub.f32 %v773, %v774
    %v776 = vand.u32 %v775, 4294901760
    %777 = vmatpush.msra.mxu0 %v776
    %v778 = vand.u32 %v215, 4294901760
    %v779 = vsub.f32 %v215, %v778
    %v780 = vand.u32 %v779, 4294901760
    %v781 = vsub.f32 %v779, %v780
    %v782 = vand.u32 %v781, 4294901760
    %783 = vmatpush.msra.mxu0 %v782
    %v784 = vand.u32 %v214, 4294901760
    %v785 = vsub.f32 %v214, %v784
    %v786 = vand.u32 %v785, 4294901760
    %v787 = vsub.f32 %v785, %v786
    %v788 = vand.u32 %v787, 4294901760
    %789 = vmatpush.msra.mxu0 %v788
    %v790 = vand.u32 %v213, 4294901760
    %v791 = vsub.f32 %v213, %v790
    %v792 = vand.u32 %v791, 4294901760
    %v793 = vsub.f32 %v791, %v792
    %v794 = vand.u32 %v793, 4294901760
    %795 = vmatpush.msra.mxu0 %v794
    %v796 = vand.u32 %v212, 4294901760
    %v797 = vsub.f32 %v212, %v796
    %v798 = vand.u32 %v797, 4294901760
    %v799 = vsub.f32 %v797, %v798
    %v800 = vand.u32 %v799, 4294901760
    %801 = vmatpush.msra.mxu0 %v800
    %v802 = vand.u32 %v211, 4294901760
    %v803 = vsub.f32 %v211, %v802
    %v804 = vand.u32 %v803, 4294901760
    %v805 = vsub.f32 %v803, %v804
    %v806 = vand.u32 %v805, 4294901760
    %807 = vmatpush.msra.mxu0 %v806
    %v808 = vand.u32 %v210, 4294901760
    %v809 = vsub.f32 %v210, %v808
    %v810 = vand.u32 %v809, 4294901760
    %v811 = vsub.f32 %v809, %v810
    %v812 = vand.u32 %v811, 4294901760
    %813 = vmatpush.msra.mxu0 %v812
    %v814 = vand.u32 %v209, 4294901760
    %v815 = vsub.f32 %v209, %v814
    %v816 = vand.u32 %v815, 4294901760
    %v817 = vsub.f32 %v815, %v816
    %v818 = vand.u32 %v817, 4294901760
    %819 = vmatpush.msra.mxu0 %v818
    %v820 = vand.u32 %v327, 4294901760
    %821 = vmatmul.f32.gmra.mxu0 %v820
    %v822 = vpop.f32.mrf.mxu0
    %v823 = vadd.f32 %v722, %v822
    %824 = vdwg.mxu0
    %v825 = vand.u32 %v224, 4294901760
    %v826 = vsub.f32 %v224, %v825
    %827 = vmatpush.msra.mxu0 %v826
    %v828 = vand.u32 %v223, 4294901760
    %v829 = vsub.f32 %v223, %v828
    %830 = vmatpush.msra.mxu0 %v829
    %v831 = vand.u32 %v222, 4294901760
    %v832 = vsub.f32 %v222, %v831
    %833 = vmatpush.msra.mxu0 %v832
    %v834 = vand.u32 %v221, 4294901760
    %v835 = vsub.f32 %v221, %v834
    %836 = vmatpush.msra.mxu0 %v835
    %v837 = vand.u32 %v220, 4294901760
    %v838 = vsub.f32 %v220, %v837
    %839 = vmatpush.msra.mxu0 %v838
    %v840 = vand.u32 %v219, 4294901760
    %v841 = vsub.f32 %v219, %v840
    %842 = vmatpush.msra.mxu0 %v841
    %v843 = vand.u32 %v218, 4294901760
    %v844 = vsub.f32 %v218, %v843
    %845 = vmatpush.msra.mxu0 %v844
    %v846 = vand.u32 %v217, 4294901760
    %v847 = vsub.f32 %v217, %v846
    %848 = vmatpush.msra.mxu0 %v847
    %v849 = vand.u32 %v216, 4294901760
    %v850 = vsub.f32 %v216, %v849
    %851 = vmatpush.msra.mxu0 %v850
    %v852 = vand.u32 %v215, 4294901760
    %v853 = vsub.f32 %v215, %v852
    %854 = vmatpush.msra.mxu0 %v853
    %v855 = vand.u32 %v214, 4294901760
    %v856 = vsub.f32 %v214, %v855
    %857 = vmatpush.msra.mxu0 %v856
    %v858 = vand.u32 %v213, 4294901760
    %v859 = vsub.f32 %v213, %v858
    %860 = vmatpush.msra.mxu0 %v859
    %v861 = vand.u32 %v212, 4294901760
    %v862 = vsub.f32 %v212, %v861
    %863 = vmatpush.msra.mxu0 %v862
    %v864 = vand.u32 %v211, 4294901760
    %v865 = vsub.f32 %v211, %v864
    %866 = vmatpush.msra.mxu0 %v865
    %v867 = vand.u32 %v210, 4294901760
    %v868 = vsub.f32 %v210, %v867
    %869 = vmatpush.msra.mxu0 %v868
    %v870 = vand.u32 %v209, 4294901760
    %v871 = vsub.f32 %v209, %v870
    %872 = vmatpush.msra.mxu0 %v871
    %v873 = vand.u32 %v327, 4294901760
    %v874 = vsub.f32 %v327, %v873
    %875 = vmatmul.f32.gmra.mxu0 %v874
    %v876 = vpop.f32.mrf.mxu0
    %v877 = vadd.f32 %v823, %v876
    %878 = vdwg.mxu0
    %v879 = vand.u32 %v224, 4294901760
    %880 = vmatpush.msra.mxu0 %v879
    %v881 = vand.u32 %v223, 4294901760
    %882 = vmatpush.msra.mxu0 %v881
    %v883 = vand.u32 %v222, 4294901760
    %884 = vmatpush.msra.mxu0 %v883
    %v885 = vand.u32 %v221, 4294901760
    %886 = vmatpush.msra.mxu0 %v885
    %v887 = vand.u32 %v220, 4294901760
    %888 = vmatpush.msra.mxu0 %v887
    %v889 = vand.u32 %v219, 4294901760
    %890 = vmatpush.msra.mxu0 %v889
    %v891 = vand.u32 %v218, 4294901760
    %892 = vmatpush.msra.mxu0 %v891
    %v893 = vand.u32 %v217, 4294901760
    %894 = vmatpush.msra.mxu0 %v893
    %v895 = vand.u32 %v216, 4294901760
    %896 = vmatpush.msra.mxu0 %v895
    %v897 = vand.u32 %v215, 4294901760
    %898 = vmatpush.msra.mxu0 %v897
    %v899 = vand.u32 %v214, 4294901760
    %900 = vmatpush.msra.mxu0 %v899
    %v901 = vand.u32 %v213, 4294901760
    %902 = vmatpush.msra.mxu0 %v901
    %v903 = vand.u32 %v212, 4294901760
    %904 = vmatpush.msra.mxu0 %v903
    %v905 = vand.u32 %v211, 4294901760
    %906 = vmatpush.msra.mxu0 %v905
    %v907 = vand.u32 %v210, 4294901760
    %908 = vmatpush.msra.mxu0 %v907
    %v909 = vand.u32 %v209, 4294901760
    %910 = vmatpush.msra.mxu0 %v909
    %v911 = vand.u32 %v327, 4294901760
    %v912 = vsub.f32 %v327, %v911
    %v913 = vand.u32 %v912, 4294901760
    %914 = vmatmul.f32.gmra.mxu0 %v913
    %v915 = vpop.f32.mrf.mxu0
    %v916 = vadd.f32 %v877, %v915
    %917 = vdwg.mxu0
    %v918 = vand.u32 %v224, 4294901760
    %v919 = vsub.f32 %v224, %v918
    %v920 = vand.u32 %v919, 4294901760
    %921 = vmatpush.msra.mxu0 %v920
    %v922 = vand.u32 %v223, 4294901760
    %v923 = vsub.f32 %v223, %v922
    %v924 = vand.u32 %v923, 4294901760
    %925 = vmatpush.msra.mxu0 %v924
    %v926 = vand.u32 %v222, 4294901760
    %v927 = vsub.f32 %v222, %v926
    %v928 = vand.u32 %v927, 4294901760
    %929 = vmatpush.msra.mxu0 %v928
    %v930 = vand.u32 %v221, 4294901760
    %v931 = vsub.f32 %v221, %v930
    %v932 = vand.u32 %v931, 4294901760
    %933 = vmatpush.msra.mxu0 %v932
    %v934 = vand.u32 %v220, 4294901760
    %v935 = vsub.f32 %v220, %v934
    %v936 = vand.u32 %v935, 4294901760
    %937 = vmatpush.msra.mxu0 %v936
    %v938 = vand.u32 %v219, 4294901760
    %v939 = vsub.f32 %v219, %v938
    %v940 = vand.u32 %v939, 4294901760
    %941 = vmatpush.msra.mxu0 %v940
    %v942 = vand.u32 %v218, 4294901760
    %v943 = vsub.f32 %v218, %v942
    %v944 = vand.u32 %v943, 4294901760
    %945 = vmatpush.msra.mxu0 %v944
    %v946 = vand.u32 %v217, 4294901760
    %v947 = vsub.f32 %v217, %v946
    %v948 = vand.u32 %v947, 4294901760
    %949 = vmatpush.msra.mxu0 %v948
    %v950 = vand.u32 %v216, 4294901760
    %v951 = vsub.f32 %v216, %v950
    %v952 = vand.u32 %v951, 4294901760
    %953 = vmatpush.msra.mxu0 %v952
    %v954 = vand.u32 %v215, 4294901760
    %v955 = vsub.f32 %v215, %v954
    %v956 = vand.u32 %v955, 4294901760
    %957 = vmatpush.msra.mxu0 %v956
    %v958 = vand.u32 %v214, 4294901760
    %v959 = vsub.f32 %v214, %v958
    %v960 = vand.u32 %v959, 4294901760
    %961 = vmatpush.msra.mxu0 %v960
    %v962 = vand.u32 %v213, 4294901760
    %v963 = vsub.f32 %v213, %v962
    %v964 = vand.u32 %v963, 4294901760
    %965 = vmatpush.msra.mxu0 %v964
    %v966 = vand.u32 %v212, 4294901760
    %v967 = vsub.f32 %v212, %v966
    %v968 = vand.u32 %v967, 4294901760
    %969 = vmatpush.msra.mxu0 %v968
    %v970 = vand.u32 %v211, 4294901760
    %v971 = vsub.f32 %v211, %v970
    %v972 = vand.u32 %v971, 4294901760
    %973 = vmatpush.msra.mxu0 %v972
    %v974 = vand.u32 %v210, 4294901760
    %v975 = vsub.f32 %v210, %v974
    %v976 = vand.u32 %v975, 4294901760
    %977 = vmatpush.msra.mxu0 %v976
    %v978 = vand.u32 %v209, 4294901760
    %v979 = vsub.f32 %v209, %v978
    %v980 = vand.u32 %v979, 4294901760
    %981 = vmatpush.msra.mxu0 %v980
    %v982 = vand.u32 %v327, 4294901760
    %983 = vmatmul.f32.gmra.mxu0 %v982
    %v984 = vpop.f32.mrf.mxu0
    %v985 = vadd.f32 %v916, %v984
    %986 = vdwg.mxu0
    %v987 = vand.u32 %v224, 4294901760
    %988 = vmatpush.msra.mxu0 %v987
    %v989 = vand.u32 %v223, 4294901760
    %990 = vmatpush.msra.mxu0 %v989
    %v991 = vand.u32 %v222, 4294901760
    %992 = vmatpush.msra.mxu0 %v991
    %v993 = vand.u32 %v221, 4294901760
    %994 = vmatpush.msra.mxu0 %v993
    %v995 = vand.u32 %v220, 4294901760
    %996 = vmatpush.msra.mxu0 %v995
    %v997 = vand.u32 %v219, 4294901760
    %998 = vmatpush.msra.mxu0 %v997
    %v999 = vand.u32 %v218, 4294901760
    %1000 = vmatpush.msra.mxu0 %v999
    %v1001 = vand.u32 %v217, 4294901760
    %1002 = vmatpush.msra.mxu0 %v1001
    %v1003 = vand.u32 %v216, 4294901760
    %1004 = vmatpush.msra.mxu0 %v1003
    %v1005 = vand.u32 %v215, 4294901760
    %1006 = vmatpush.msra.mxu0 %v1005
    %v1007 = vand.u32 %v214, 4294901760
    %1008 = vmatpush.msra.mxu0 %v1007
    %v1009 = vand.u32 %v213, 4294901760
    %1010 = vmatpush.msra.mxu0 %v1009
    %v1011 = vand.u32 %v212, 4294901760
    %1012 = vmatpush.msra.mxu0 %v1011
    %v1013 = vand.u32 %v211, 4294901760
    %1014 = vmatpush.msra.mxu0 %v1013
    %v1015 = vand.u32 %v210, 4294901760
    %1016 = vmatpush.msra.mxu0 %v1015
    %v1017 = vand.u32 %v209, 4294901760
    %1018 = vmatpush.msra.mxu0 %v1017
    %v1019 = vand.u32 %v327, 4294901760
    %1020 = vmatmul.f32.gmra.mxu0 %v1019
    %v1021 = vpop.f32.mrf.mxu0
    %v1022 = vadd.f32 %v985, %v1021
    %1023 = vdwg.mxu0
    %v1024 = vand.u32 %v240, 4294901760
    %1025 = vmatpush.msra.mxu0 %v1024
    %v1026 = vand.u32 %v239, 4294901760
    %1027 = vmatpush.msra.mxu0 %v1026
    %v1028 = vand.u32 %v238, 4294901760
    %1029 = vmatpush.msra.mxu0 %v1028
    %v1030 = vand.u32 %v237, 4294901760
    %1031 = vmatpush.msra.mxu0 %v1030
    %v1032 = vand.u32 %v236, 4294901760
    %1033 = vmatpush.msra.mxu0 %v1032
    %v1034 = vand.u32 %v235, 4294901760
    %1035 = vmatpush.msra.mxu0 %v1034
    %v1036 = vand.u32 %v234, 4294901760
    %1037 = vmatpush.msra.mxu0 %v1036
    %v1038 = vand.u32 %v233, 4294901760
    %1039 = vmatpush.msra.mxu0 %v1038
    %v1040 = vand.u32 %v232, 4294901760
    %1041 = vmatpush.msra.mxu0 %v1040
    %v1042 = vand.u32 %v231, 4294901760
    %1043 = vmatpush.msra.mxu0 %v1042
    %v1044 = vand.u32 %v230, 4294901760
    %1045 = vmatpush.msra.mxu0 %v1044
    %v1046 = vand.u32 %v229, 4294901760
    %1047 = vmatpush.msra.mxu0 %v1046
    %v1048 = vand.u32 %v228, 4294901760
    %1049 = vmatpush.msra.mxu0 %v1048
    %v1050 = vand.u32 %v227, 4294901760
    %1051 = vmatpush.msra.mxu0 %v1050
    %v1052 = vand.u32 %v226, 4294901760
    %1053 = vmatpush.msra.mxu0 %v1052
    %v1054 = vand.u32 %v225, 4294901760
    %1055 = vmatpush.msra.mxu0 %v1054
    %v1056 = vand.u32 %v328, 4294901760
    %v1057 = vsub.f32 %v328, %v1056
    %v1058 = vand.u32 %v1057, 4294901760
    %v1059 = vsub.f32 %v1057, %v1058
    %v1060 = vand.u32 %v1059, 4294901760
    %1061 = vmatmul.f32.gmra.mxu0 %v1060
    %v1062 = vpop.f32.mrf.mxu0
    %v1063 = vadd.f32 %v1022, %v1062
    %1064 = vdwg.mxu0
    %v1065 = vand.u32 %v240, 4294901760
    %v1066 = vsub.f32 %v240, %v1065
    %v1067 = vand.u32 %v1066, 4294901760
    %v1068 = vsub.f32 %v1066, %v1067
    %v1069 = vand.u32 %v1068, 4294901760
    %1070 = vmatpush.msra.mxu0 %v1069
    %v1071 = vand.u32 %v239, 4294901760
    %v1072 = vsub.f32 %v239, %v1071
    %v1073 = vand.u32 %v1072, 4294901760
    %v1074 = vsub.f32 %v1072, %v1073
    %v1075 = vand.u32 %v1074, 4294901760
    %1076 = vmatpush.msra.mxu0 %v1075
    %v1077 = vand.u32 %v238, 4294901760
    %v1078 = vsub.f32 %v238, %v1077
    %v1079 = vand.u32 %v1078, 4294901760
    %v1080 = vsub.f32 %v1078, %v1079
    %v1081 = vand.u32 %v1080, 4294901760
    %1082 = vmatpush.msra.mxu0 %v1081
    %v1083 = vand.u32 %v237, 4294901760
    %v1084 = vsub.f32 %v237, %v1083
    %v1085 = vand.u32 %v1084, 4294901760
    %v1086 = vsub.f32 %v1084, %v1085
    %v1087 = vand.u32 %v1086, 4294901760
    %1088 = vmatpush.msra.mxu0 %v1087
    %v1089 = vand.u32 %v236, 4294901760
    %v1090 = vsub.f32 %v236, %v1089
    %v1091 = vand.u32 %v1090, 4294901760
    %v1092 = vsub.f32 %v1090, %v1091
    %v1093 = vand.u32 %v1092, 4294901760
    %1094 = vmatpush.msra.mxu0 %v1093
    %v1095 = vand.u32 %v235, 4294901760
    %v1096 = vsub.f32 %v235, %v1095
    %v1097 = vand.u32 %v1096, 4294901760
    %v1098 = vsub.f32 %v1096, %v1097
    %v1099 = vand.u32 %v1098, 4294901760
    %1100 = vmatpush.msra.mxu0 %v1099
    %v1101 = vand.u32 %v234, 4294901760
    %v1102 = vsub.f32 %v234, %v1101
    %v1103 = vand.u32 %v1102, 4294901760
    %v1104 = vsub.f32 %v1102, %v1103
    %v1105 = vand.u32 %v1104, 4294901760
    %1106 = vmatpush.msra.mxu0 %v1105
    %v1107 = vand.u32 %v233, 4294901760
    %v1108 = vsub.f32 %v233, %v1107
    %v1109 = vand.u32 %v1108, 4294901760
    %v1110 = vsub.f32 %v1108, %v1109
    %v1111 = vand.u32 %v1110, 4294901760
    %1112 = vmatpush.msra.mxu0 %v1111
    %v1113 = vand.u32 %v232, 4294901760
    %v1114 = vsub.f32 %v232, %v1113
    %v1115 = vand.u32 %v1114, 4294901760
    %v1116 = vsub.f32 %v1114, %v1115
    %v1117 = vand.u32 %v1116, 4294901760
    %1118 = vmatpush.msra.mxu0 %v1117
    %v1119 = vand.u32 %v231, 4294901760
    %v1120 = vsub.f32 %v231, %v1119
    %v1121 = vand.u32 %v1120, 4294901760
    %v1122 = vsub.f32 %v1120, %v1121
    %v1123 = vand.u32 %v1122, 4294901760
    %1124 = vmatpush.msra.mxu0 %v1123
    %v1125 = vand.u32 %v230, 4294901760
    %v1126 = vsub.f32 %v230, %v1125
    %v1127 = vand.u32 %v1126, 4294901760
    %v1128 = vsub.f32 %v1126, %v1127
    %v1129 = vand.u32 %v1128, 4294901760
    %1130 = vmatpush.msra.mxu0 %v1129
    %v1131 = vand.u32 %v229, 4294901760
    %v1132 = vsub.f32 %v229, %v1131
    %v1133 = vand.u32 %v1132, 4294901760
    %v1134 = vsub.f32 %v1132, %v1133
    %v1135 = vand.u32 %v1134, 4294901760
    %1136 = vmatpush.msra.mxu0 %v1135
    %v1137 = vand.u32 %v228, 4294901760
    %v1138 = vsub.f32 %v228, %v1137
    %v1139 = vand.u32 %v1138, 4294901760
    %v1140 = vsub.f32 %v1138, %v1139
    %v1141 = vand.u32 %v1140, 4294901760
    %1142 = vmatpush.msra.mxu0 %v1141
    %v1143 = vand.u32 %v227, 4294901760
    %v1144 = vsub.f32 %v227, %v1143
    %v1145 = vand.u32 %v1144, 4294901760
    %v1146 = vsub.f32 %v1144, %v1145
    %v1147 = vand.u32 %v1146, 4294901760
    %1148 = vmatpush.msra.mxu0 %v1147
    %v1149 = vand.u32 %v226, 4294901760
    %v1150 = vsub.f32 %v226, %v1149
    %v1151 = vand.u32 %v1150, 4294901760
    %v1152 = vsub.f32 %v1150, %v1151
    %v1153 = vand.u32 %v1152, 4294901760
    %1154 = vmatpush.msra.mxu0 %v1153
    %v1155 = vand.u32 %v225, 4294901760
    %v1156 = vsub.f32 %v225, %v1155
    %v1157 = vand.u32 %v1156, 4294901760
    %v1158 = vsub.f32 %v1156, %v1157
    %v1159 = vand.u32 %v1158, 4294901760
    %1160 = vmatpush.msra.mxu0 %v1159
    %v1161 = vand.u32 %v328, 4294901760
    %1162 = vmatmul.f32.gmra.mxu0 %v1161
    %v1163 = vpop.f32.mrf.mxu0
    %v1164 = vadd.f32 %v1063, %v1163
    %1165 = vdwg.mxu0
    %v1166 = vand.u32 %v240, 4294901760
    %v1167 = vsub.f32 %v240, %v1166
    %1168 = vmatpush.msra.mxu0 %v1167
    %v1169 = vand.u32 %v239, 4294901760
    %v1170 = vsub.f32 %v239, %v1169
    %1171 = vmatpush.msra.mxu0 %v1170
    %v1172 = vand.u32 %v238, 4294901760
    %v1173 = vsub.f32 %v238, %v1172
    %1174 = vmatpush.msra.mxu0 %v1173
    %v1175 = vand.u32 %v237, 4294901760
    %v1176 = vsub.f32 %v237, %v1175
    %1177 = vmatpush.msra.mxu0 %v1176
    %v1178 = vand.u32 %v236, 4294901760
    %v1179 = vsub.f32 %v236, %v1178
    %1180 = vmatpush.msra.mxu0 %v1179
    %v1181 = vand.u32 %v235, 4294901760
    %v1182 = vsub.f32 %v235, %v1181
    %1183 = vmatpush.msra.mxu0 %v1182
    %v1184 = vand.u32 %v234, 4294901760
    %v1185 = vsub.f32 %v234, %v1184
    %1186 = vmatpush.msra.mxu0 %v1185
    %v1187 = vand.u32 %v233, 4294901760
    %v1188 = vsub.f32 %v233, %v1187
    %1189 = vmatpush.msra.mxu0 %v1188
    %v1190 = vand.u32 %v232, 4294901760
    %v1191 = vsub.f32 %v232, %v1190
    %1192 = vmatpush.msra.mxu0 %v1191
    %v1193 = vand.u32 %v231, 4294901760
    %v1194 = vsub.f32 %v231, %v1193
    %1195 = vmatpush.msra.mxu0 %v1194
    %v1196 = vand.u32 %v230, 4294901760
    %v1197 = vsub.f32 %v230, %v1196
    %1198 = vmatpush.msra.mxu0 %v1197
    %v1199 = vand.u32 %v229, 4294901760
    %v1200 = vsub.f32 %v229, %v1199
    %1201 = vmatpush.msra.mxu0 %v1200
    %v1202 = vand.u32 %v228, 4294901760
    %v1203 = vsub.f32 %v228, %v1202
    %1204 = vmatpush.msra.mxu0 %v1203
    %v1205 = vand.u32 %v227, 4294901760
    %v1206 = vsub.f32 %v227, %v1205
    %1207 = vmatpush.msra.mxu0 %v1206
    %v1208 = vand.u32 %v226, 4294901760
    %v1209 = vsub.f32 %v226, %v1208
    %1210 = vmatpush.msra.mxu0 %v1209
    %v1211 = vand.u32 %v225, 4294901760
    %v1212 = vsub.f32 %v225, %v1211
    %1213 = vmatpush.msra.mxu0 %v1212
    %v1214 = vand.u32 %v328, 4294901760
    %v1215 = vsub.f32 %v328, %v1214
    %1216 = vmatmul.f32.gmra.mxu0 %v1215
    %v1217 = vpop.f32.mrf.mxu0
    %v1218 = vadd.f32 %v1164, %v1217
    %1219 = vdwg.mxu0
    %v1220 = vand.u32 %v240, 4294901760
    %1221 = vmatpush.msra.mxu0 %v1220
    %v1222 = vand.u32 %v239, 4294901760
    %1223 = vmatpush.msra.mxu0 %v1222
    %v1224 = vand.u32 %v238, 4294901760
    %1225 = vmatpush.msra.mxu0 %v1224
    %v1226 = vand.u32 %v237, 4294901760
    %1227 = vmatpush.msra.mxu0 %v1226
    %v1228 = vand.u32 %v236, 4294901760
    %1229 = vmatpush.msra.mxu0 %v1228
    %v1230 = vand.u32 %v235, 4294901760
    %1231 = vmatpush.msra.mxu0 %v1230
    %v1232 = vand.u32 %v234, 4294901760
    %1233 = vmatpush.msra.mxu0 %v1232
    %v1234 = vand.u32 %v233, 4294901760
    %1235 = vmatpush.msra.mxu0 %v1234
    %v1236 = vand.u32 %v232, 4294901760
    %1237 = vmatpush.msra.mxu0 %v1236
    %v1238 = vand.u32 %v231, 4294901760
    %1239 = vmatpush.msra.mxu0 %v1238
    %v1240 = vand.u32 %v230, 4294901760
    %1241 = vmatpush.msra.mxu0 %v1240
    %v1242 = vand.u32 %v229, 4294901760
    %1243 = vmatpush.msra.mxu0 %v1242
    %v1244 = vand.u32 %v228, 4294901760
    %1245 = vmatpush.msra.mxu0 %v1244
    %v1246 = vand.u32 %v227, 4294901760
    %1247 = vmatpush.msra.mxu0 %v1246
    %v1248 = vand.u32 %v226, 4294901760
    %1249 = vmatpush.msra.mxu0 %v1248
    %v1250 = vand.u32 %v225, 4294901760
    %1251 = vmatpush.msra.mxu0 %v1250
    %v1252 = vand.u32 %v328, 4294901760
    %v1253 = vsub.f32 %v328, %v1252
    %v1254 = vand.u32 %v1253, 4294901760
    %1255 = vmatmul.f32.gmra.mxu0 %v1254
    %v1256 = vpop.f32.mrf.mxu0
    %v1257 = vadd.f32 %v1218, %v1256
    %1258 = vdwg.mxu0
    %v1259 = vand.u32 %v240, 4294901760
    %v1260 = vsub.f32 %v240, %v1259
    %v1261 = vand.u32 %v1260, 4294901760
    %1262 = vmatpush.msra.mxu0 %v1261
    %v1263 = vand.u32 %v239, 4294901760
    %v1264 = vsub.f32 %v239, %v1263
    %v1265 = vand.u32 %v1264, 4294901760
    %1266 = vmatpush.msra.mxu0 %v1265
    %v1267 = vand.u32 %v238, 4294901760
    %v1268 = vsub.f32 %v238, %v1267
    %v1269 = vand.u32 %v1268, 4294901760
    %1270 = vmatpush.msra.mxu0 %v1269
    %v1271 = vand.u32 %v237, 4294901760
    %v1272 = vsub.f32 %v237, %v1271
    %v1273 = vand.u32 %v1272, 4294901760
    %1274 = vmatpush.msra.mxu0 %v1273
    %v1275 = vand.u32 %v236, 4294901760
    %v1276 = vsub.f32 %v236, %v1275
    %v1277 = vand.u32 %v1276, 4294901760
    %1278 = vmatpush.msra.mxu0 %v1277
    %v1279 = vand.u32 %v235, 4294901760
    %v1280 = vsub.f32 %v235, %v1279
    %v1281 = vand.u32 %v1280, 4294901760
    %1282 = vmatpush.msra.mxu0 %v1281
    %v1283 = vand.u32 %v234, 4294901760
    %v1284 = vsub.f32 %v234, %v1283
    %v1285 = vand.u32 %v1284, 4294901760
    %1286 = vmatpush.msra.mxu0 %v1285
    %v1287 = vand.u32 %v233, 4294901760
    %v1288 = vsub.f32 %v233, %v1287
    %v1289 = vand.u32 %v1288, 4294901760
    %1290 = vmatpush.msra.mxu0 %v1289
    %v1291 = vand.u32 %v232, 4294901760
    %v1292 = vsub.f32 %v232, %v1291
    %v1293 = vand.u32 %v1292, 4294901760
    %1294 = vmatpush.msra.mxu0 %v1293
    %v1295 = vand.u32 %v231, 4294901760
    %v1296 = vsub.f32 %v231, %v1295
    %v1297 = vand.u32 %v1296, 4294901760
    %1298 = vmatpush.msra.mxu0 %v1297
    %v1299 = vand.u32 %v230, 4294901760
    %v1300 = vsub.f32 %v230, %v1299
    %v1301 = vand.u32 %v1300, 4294901760
    %1302 = vmatpush.msra.mxu0 %v1301
    %v1303 = vand.u32 %v229, 4294901760
    %v1304 = vsub.f32 %v229, %v1303
    %v1305 = vand.u32 %v1304, 4294901760
    %1306 = vmatpush.msra.mxu0 %v1305
    %v1307 = vand.u32 %v228, 4294901760
    %v1308 = vsub.f32 %v228, %v1307
    %v1309 = vand.u32 %v1308, 4294901760
    %1310 = vmatpush.msra.mxu0 %v1309
    %v1311 = vand.u32 %v227, 4294901760
    %v1312 = vsub.f32 %v227, %v1311
    %v1313 = vand.u32 %v1312, 4294901760
    %1314 = vmatpush.msra.mxu0 %v1313
    %v1315 = vand.u32 %v226, 4294901760
    %v1316 = vsub.f32 %v226, %v1315
    %v1317 = vand.u32 %v1316, 4294901760
    %1318 = vmatpush.msra.mxu0 %v1317
    %v1319 = vand.u32 %v225, 4294901760
    %v1320 = vsub.f32 %v225, %v1319
    %v1321 = vand.u32 %v1320, 4294901760
    %1322 = vmatpush.msra.mxu0 %v1321
    %v1323 = vand.u32 %v328, 4294901760
    %1324 = vmatmul.f32.gmra.mxu0 %v1323
    %v1325 = vpop.f32.mrf.mxu0
    %v1326 = vadd.f32 %v1257, %v1325
    %1327 = vdwg.mxu0
    %v1328 = vand.u32 %v240, 4294901760
    %1329 = vmatpush.msra.mxu0 %v1328
    %v1330 = vand.u32 %v239, 4294901760
    %1331 = vmatpush.msra.mxu0 %v1330
    %v1332 = vand.u32 %v238, 4294901760
    %1333 = vmatpush.msra.mxu0 %v1332
    %v1334 = vand.u32 %v237, 4294901760
    %1335 = vmatpush.msra.mxu0 %v1334
    %v1336 = vand.u32 %v236, 4294901760
    %1337 = vmatpush.msra.mxu0 %v1336
    %v1338 = vand.u32 %v235, 4294901760
    %1339 = vmatpush.msra.mxu0 %v1338
    %v1340 = vand.u32 %v234, 4294901760
    %1341 = vmatpush.msra.mxu0 %v1340
    %v1342 = vand.u32 %v233, 4294901760
    %1343 = vmatpush.msra.mxu0 %v1342
    %v1344 = vand.u32 %v232, 4294901760
    %1345 = vmatpush.msra.mxu0 %v1344
    %v1346 = vand.u32 %v231, 4294901760
    %1347 = vmatpush.msra.mxu0 %v1346
    %v1348 = vand.u32 %v230, 4294901760
    %1349 = vmatpush.msra.mxu0 %v1348
    %v1350 = vand.u32 %v229, 4294901760
    %1351 = vmatpush.msra.mxu0 %v1350
    %v1352 = vand.u32 %v228, 4294901760
    %1353 = vmatpush.msra.mxu0 %v1352
    %v1354 = vand.u32 %v227, 4294901760
    %1355 = vmatpush.msra.mxu0 %v1354
    %v1356 = vand.u32 %v226, 4294901760
    %1357 = vmatpush.msra.mxu0 %v1356
    %v1358 = vand.u32 %v225, 4294901760
    %1359 = vmatpush.msra.mxu0 %v1358
    %v1360 = vand.u32 %v328, 4294901760
    %1361 = vmatmul.f32.gmra.mxu0 %v1360
    %v1362 = vpop.f32.mrf.mxu0
    %v1363 = vadd.f32 %v1326, %v1362
    %1364 = vdwg.mxu0
    %v1365 = vand.u32 %v256, 4294901760
    %1366 = vmatpush.msra.mxu0 %v1365
    %v1367 = vand.u32 %v255, 4294901760
    %1368 = vmatpush.msra.mxu0 %v1367
    %v1369 = vand.u32 %v254, 4294901760
    %1370 = vmatpush.msra.mxu0 %v1369
    %v1371 = vand.u32 %v253, 4294901760
    %1372 = vmatpush.msra.mxu0 %v1371
    %v1373 = vand.u32 %v252, 4294901760
    %1374 = vmatpush.msra.mxu0 %v1373
    %v1375 = vand.u32 %v251, 4294901760
    %1376 = vmatpush.msra.mxu0 %v1375
    %v1377 = vand.u32 %v250, 4294901760
    %1378 = vmatpush.msra.mxu0 %v1377
    %v1379 = vand.u32 %v249, 4294901760
    %1380 = vmatpush.msra.mxu0 %v1379
    %v1381 = vand.u32 %v248, 4294901760
    %1382 = vmatpush.msra.mxu0 %v1381
    %v1383 = vand.u32 %v247, 4294901760
    %1384 = vmatpush.msra.mxu0 %v1383
    %v1385 = vand.u32 %v246, 4294901760
    %1386 = vmatpush.msra.mxu0 %v1385
    %v1387 = vand.u32 %v245, 4294901760
    %1388 = vmatpush.msra.mxu0 %v1387
    %v1389 = vand.u32 %v244, 4294901760
    %1390 = vmatpush.msra.mxu0 %v1389
    %v1391 = vand.u32 %v243, 4294901760
    %1392 = vmatpush.msra.mxu0 %v1391
    %v1393 = vand.u32 %v242, 4294901760
    %1394 = vmatpush.msra.mxu0 %v1393
    %v1395 = vand.u32 %v241, 4294901760
    %1396 = vmatpush.msra.mxu0 %v1395
    %v1397 = vand.u32 %v329, 4294901760
    %v1398 = vsub.f32 %v329, %v1397
    %v1399 = vand.u32 %v1398, 4294901760
    %v1400 = vsub.f32 %v1398, %v1399
    %v1401 = vand.u32 %v1400, 4294901760
    %1402 = vmatmul.f32.gmra.mxu0 %v1401
    %v1403 = vpop.f32.mrf.mxu0
    %v1404 = vadd.f32 %v1363, %v1403
    %1405 = vdwg.mxu0
    %v1406 = vand.u32 %v256, 4294901760
    %v1407 = vsub.f32 %v256, %v1406
    %v1408 = vand.u32 %v1407, 4294901760
    %v1409 = vsub.f32 %v1407, %v1408
    %v1410 = vand.u32 %v1409, 4294901760
    %1411 = vmatpush.msra.mxu0 %v1410
    %v1412 = vand.u32 %v255, 4294901760
    %v1413 = vsub.f32 %v255, %v1412
    %v1414 = vand.u32 %v1413, 4294901760
    %v1415 = vsub.f32 %v1413, %v1414
    %v1416 = vand.u32 %v1415, 4294901760
    %1417 = vmatpush.msra.mxu0 %v1416
    %v1418 = vand.u32 %v254, 4294901760
    %v1419 = vsub.f32 %v254, %v1418
    %v1420 = vand.u32 %v1419, 4294901760
    %v1421 = vsub.f32 %v1419, %v1420
    %v1422 = vand.u32 %v1421, 4294901760
    %1423 = vmatpush.msra.mxu0 %v1422
    %v1424 = vand.u32 %v253, 4294901760
    %v1425 = vsub.f32 %v253, %v1424
    %v1426 = vand.u32 %v1425, 4294901760
    %v1427 = vsub.f32 %v1425, %v1426
    %v1428 = vand.u32 %v1427, 4294901760
    %1429 = vmatpush.msra.mxu0 %v1428
    %v1430 = vand.u32 %v252, 4294901760
    %v1431 = vsub.f32 %v252, %v1430
    %v1432 = vand.u32 %v1431, 4294901760
    %v1433 = vsub.f32 %v1431, %v1432
    %v1434 = vand.u32 %v1433, 4294901760
    %1435 = vmatpush.msra.mxu0 %v1434
    %v1436 = vand.u32 %v251, 4294901760
    %v1437 = vsub.f32 %v251, %v1436
    %v1438 = vand.u32 %v1437, 4294901760
    %v1439 = vsub.f32 %v1437, %v1438
    %v1440 = vand.u32 %v1439, 4294901760
    %1441 = vmatpush.msra.mxu0 %v1440
    %v1442 = vand.u32 %v250, 4294901760
    %v1443 = vsub.f32 %v250, %v1442
    %v1444 = vand.u32 %v1443, 4294901760
    %v1445 = vsub.f32 %v1443, %v1444
    %v1446 = vand.u32 %v1445, 4294901760
    %1447 = vmatpush.msra.mxu0 %v1446
    %v1448 = vand.u32 %v249, 4294901760
    %v1449 = vsub.f32 %v249, %v1448
    %v1450 = vand.u32 %v1449, 4294901760
    %v1451 = vsub.f32 %v1449, %v1450
    %v1452 = vand.u32 %v1451, 4294901760
    %1453 = vmatpush.msra.mxu0 %v1452
    %v1454 = vand.u32 %v248, 4294901760
    %v1455 = vsub.f32 %v248, %v1454
    %v1456 = vand.u32 %v1455, 4294901760
    %v1457 = vsub.f32 %v1455, %v1456
    %v1458 = vand.u32 %v1457, 4294901760
    %1459 = vmatpush.msra.mxu0 %v1458
    %v1460 = vand.u32 %v247, 4294901760
    %v1461 = vsub.f32 %v247, %v1460
    %v1462 = vand.u32 %v1461, 4294901760
    %v1463 = vsub.f32 %v1461, %v1462
    %v1464 = vand.u32 %v1463, 4294901760
    %1465 = vmatpush.msra.mxu0 %v1464
    %v1466 = vand.u32 %v246, 4294901760
    %v1467 = vsub.f32 %v246, %v1466
    %v1468 = vand.u32 %v1467, 4294901760
    %v1469 = vsub.f32 %v1467, %v1468
    %v1470 = vand.u32 %v1469, 4294901760
    %1471 = vmatpush.msra.mxu0 %v1470
    %v1472 = vand.u32 %v245, 4294901760
    %v1473 = vsub.f32 %v245, %v1472
    %v1474 = vand.u32 %v1473, 4294901760
    %v1475 = vsub.f32 %v1473, %v1474
    %v1476 = vand.u32 %v1475, 4294901760
    %1477 = vmatpush.msra.mxu0 %v1476
    %v1478 = vand.u32 %v244, 4294901760
    %v1479 = vsub.f32 %v244, %v1478
    %v1480 = vand.u32 %v1479, 4294901760
    %v1481 = vsub.f32 %v1479, %v1480
    %v1482 = vand.u32 %v1481, 4294901760
    %1483 = vmatpush.msra.mxu0 %v1482
    %v1484 = vand.u32 %v243, 4294901760
    %v1485 = vsub.f32 %v243, %v1484
    %v1486 = vand.u32 %v1485, 4294901760
    %v1487 = vsub.f32 %v1485, %v1486
    %v1488 = vand.u32 %v1487, 4294901760
    %1489 = vmatpush.msra.mxu0 %v1488
    %v1490 = vand.u32 %v242, 4294901760
    %v1491 = vsub.f32 %v242, %v1490
    %v1492 = vand.u32 %v1491, 4294901760
    %v1493 = vsub.f32 %v1491, %v1492
    %v1494 = vand.u32 %v1493, 4294901760
    %1495 = vmatpush.msra.mxu0 %v1494
    %v1496 = vand.u32 %v241, 4294901760
    %v1497 = vsub.f32 %v241, %v1496
    %v1498 = vand.u32 %v1497, 4294901760
    %v1499 = vsub.f32 %v1497, %v1498
    %v1500 = vand.u32 %v1499, 4294901760
    %1501 = vmatpush.msra.mxu0 %v1500
    %v1502 = vand.u32 %v329, 4294901760
    %1503 = vmatmul.f32.gmra.mxu0 %v1502
    %v1504 = vpop.f32.mrf.mxu0
    %v1505 = vadd.f32 %v1404, %v1504
    %1506 = vdwg.mxu0
    %v1507 = vand.u32 %v256, 4294901760
    %v1508 = vsub.f32 %v256, %v1507
    %1509 = vmatpush.msra.mxu0 %v1508
    %v1510 = vand.u32 %v255, 4294901760
    %v1511 = vsub.f32 %v255, %v1510
    %1512 = vmatpush.msra.mxu0 %v1511
    %v1513 = vand.u32 %v254, 4294901760
    %v1514 = vsub.f32 %v254, %v1513
    %1515 = vmatpush.msra.mxu0 %v1514
    %v1516 = vand.u32 %v253, 4294901760
    %v1517 = vsub.f32 %v253, %v1516
    %1518 = vmatpush.msra.mxu0 %v1517
    %v1519 = vand.u32 %v252, 4294901760
    %v1520 = vsub.f32 %v252, %v1519
    %1521 = vmatpush.msra.mxu0 %v1520
    %v1522 = vand.u32 %v251, 4294901760
    %v1523 = vsub.f32 %v251, %v1522
    %1524 = vmatpush.msra.mxu0 %v1523
    %v1525 = vand.u32 %v250, 4294901760
    %v1526 = vsub.f32 %v250, %v1525
    %1527 = vmatpush.msra.mxu0 %v1526
    %v1528 = vand.u32 %v249, 4294901760
    %v1529 = vsub.f32 %v249, %v1528
    %1530 = vmatpush.msra.mxu0 %v1529
    %v1531 = vand.u32 %v248, 4294901760
    %v1532 = vsub.f32 %v248, %v1531
    %1533 = vmatpush.msra.mxu0 %v1532
    %v1534 = vand.u32 %v247, 4294901760
    %v1535 = vsub.f32 %v247, %v1534
    %1536 = vmatpush.msra.mxu0 %v1535
    %v1537 = vand.u32 %v246, 4294901760
    %v1538 = vsub.f32 %v246, %v1537
    %1539 = vmatpush.msra.mxu0 %v1538
    %v1540 = vand.u32 %v245, 4294901760
    %v1541 = vsub.f32 %v245, %v1540
    %1542 = vmatpush.msra.mxu0 %v1541
    %v1543 = vand.u32 %v244, 4294901760
    %v1544 = vsub.f32 %v244, %v1543
    %1545 = vmatpush.msra.mxu0 %v1544
    %v1546 = vand.u32 %v243, 4294901760
    %v1547 = vsub.f32 %v243, %v1546
    %1548 = vmatpush.msra.mxu0 %v1547
    %v1549 = vand.u32 %v242, 4294901760
    %v1550 = vsub.f32 %v242, %v1549
    %1551 = vmatpush.msra.mxu0 %v1550
    %v1552 = vand.u32 %v241, 4294901760
    %v1553 = vsub.f32 %v241, %v1552
    %1554 = vmatpush.msra.mxu0 %v1553
    %v1555 = vand.u32 %v329, 4294901760
    %v1556 = vsub.f32 %v329, %v1555
    %1557 = vmatmul.f32.gmra.mxu0 %v1556
    %v1558 = vpop.f32.mrf.mxu0
    %v1559 = vadd.f32 %v1505, %v1558
    %1560 = vdwg.mxu0
    %v1561 = vand.u32 %v256, 4294901760
    %1562 = vmatpush.msra.mxu0 %v1561
    %v1563 = vand.u32 %v255, 4294901760
    %1564 = vmatpush.msra.mxu0 %v1563
    %v1565 = vand.u32 %v254, 4294901760
    %1566 = vmatpush.msra.mxu0 %v1565
    %v1567 = vand.u32 %v253, 4294901760
    %1568 = vmatpush.msra.mxu0 %v1567
    %v1569 = vand.u32 %v252, 4294901760
    %1570 = vmatpush.msra.mxu0 %v1569
    %v1571 = vand.u32 %v251, 4294901760
    %1572 = vmatpush.msra.mxu0 %v1571
    %v1573 = vand.u32 %v250, 4294901760
    %1574 = vmatpush.msra.mxu0 %v1573
    %v1575 = vand.u32 %v249, 4294901760
    %1576 = vmatpush.msra.mxu0 %v1575
    %v1577 = vand.u32 %v248, 4294901760
    %1578 = vmatpush.msra.mxu0 %v1577
    %v1579 = vand.u32 %v247, 4294901760
    %1580 = vmatpush.msra.mxu0 %v1579
    %v1581 = vand.u32 %v246, 4294901760
    %1582 = vmatpush.msra.mxu0 %v1581
    %v1583 = vand.u32 %v245, 4294901760
    %1584 = vmatpush.msra.mxu0 %v1583
    %v1585 = vand.u32 %v244, 4294901760
    %1586 = vmatpush.msra.mxu0 %v1585
    %v1587 = vand.u32 %v243, 4294901760
    %1588 = vmatpush.msra.mxu0 %v1587
    %v1589 = vand.u32 %v242, 4294901760
    %1590 = vmatpush.msra.mxu0 %v1589
    %v1591 = vand.u32 %v241, 4294901760
    %1592 = vmatpush.msra.mxu0 %v1591
    %v1593 = vand.u32 %v329, 4294901760
    %v1594 = vsub.f32 %v329, %v1593
    %v1595 = vand.u32 %v1594, 4294901760
    %1596 = vmatmul.f32.gmra.mxu0 %v1595
    %v1597 = vpop.f32.mrf.mxu0
    %v1598 = vadd.f32 %v1559, %v1597
    %1599 = vdwg.mxu0
    %v1600 = vand.u32 %v256, 4294901760
    %v1601 = vsub.f32 %v256, %v1600
    %v1602 = vand.u32 %v1601, 4294901760
    %1603 = vmatpush.msra.mxu0 %v1602
    %v1604 = vand.u32 %v255, 4294901760
    %v1605 = vsub.f32 %v255, %v1604
    %v1606 = vand.u32 %v1605, 4294901760
    %1607 = vmatpush.msra.mxu0 %v1606
    %v1608 = vand.u32 %v254, 4294901760
    %v1609 = vsub.f32 %v254, %v1608
    %v1610 = vand.u32 %v1609, 4294901760
    %1611 = vmatpush.msra.mxu0 %v1610
    %v1612 = vand.u32 %v253, 4294901760
    %v1613 = vsub.f32 %v253, %v1612
    %v1614 = vand.u32 %v1613, 4294901760
    %1615 = vmatpush.msra.mxu0 %v1614
    %v1616 = vand.u32 %v252, 4294901760
    %v1617 = vsub.f32 %v252, %v1616
    %v1618 = vand.u32 %v1617, 4294901760
    %1619 = vmatpush.msra.mxu0 %v1618
    %v1620 = vand.u32 %v251, 4294901760
    %v1621 = vsub.f32 %v251, %v1620
    %v1622 = vand.u32 %v1621, 4294901760
    %1623 = vmatpush.msra.mxu0 %v1622
    %v1624 = vand.u32 %v250, 4294901760
    %v1625 = vsub.f32 %v250, %v1624
    %v1626 = vand.u32 %v1625, 4294901760
    %1627 = vmatpush.msra.mxu0 %v1626
    %v1628 = vand.u32 %v249, 4294901760
    %v1629 = vsub.f32 %v249, %v1628
    %v1630 = vand.u32 %v1629, 4294901760
    %1631 = vmatpush.msra.mxu0 %v1630
    %v1632 = vand.u32 %v248, 4294901760
    %v1633 = vsub.f32 %v248, %v1632
    %v1634 = vand.u32 %v1633, 4294901760
    %1635 = vmatpush.msra.mxu0 %v1634
    %v1636 = vand.u32 %v247, 4294901760
    %v1637 = vsub.f32 %v247, %v1636
    %v1638 = vand.u32 %v1637, 4294901760
    %1639 = vmatpush.msra.mxu0 %v1638
    %v1640 = vand.u32 %v246, 4294901760
    %v1641 = vsub.f32 %v246, %v1640
    %v1642 = vand.u32 %v1641, 4294901760
    %1643 = vmatpush.msra.mxu0 %v1642
    %v1644 = vand.u32 %v245, 4294901760
    %v1645 = vsub.f32 %v245, %v1644
    %v1646 = vand.u32 %v1645, 4294901760
    %1647 = vmatpush.msra.mxu0 %v1646
    %v1648 = vand.u32 %v244, 4294901760
    %v1649 = vsub.f32 %v244, %v1648
    %v1650 = vand.u32 %v1649, 4294901760
    %1651 = vmatpush.msra.mxu0 %v1650
    %v1652 = vand.u32 %v243, 4294901760
    %v1653 = vsub.f32 %v243, %v1652
    %v1654 = vand.u32 %v1653, 4294901760
    %1655 = vmatpush.msra.mxu0 %v1654
    %v1656 = vand.u32 %v242, 4294901760
    %v1657 = vsub.f32 %v242, %v1656
    %v1658 = vand.u32 %v1657, 4294901760
    %1659 = vmatpush.msra.mxu0 %v1658
    %v1660 = vand.u32 %v241, 4294901760
    %v1661 = vsub.f32 %v241, %v1660
    %v1662 = vand.u32 %v1661, 4294901760
    %1663 = vmatpush.msra.mxu0 %v1662
    %v1664 = vand.u32 %v329, 4294901760
    %1665 = vmatmul.f32.gmra.mxu0 %v1664
    %v1666 = vpop.f32.mrf.mxu0
    %v1667 = vadd.f32 %v1598, %v1666
    %1668 = vdwg.mxu0
    %v1669 = vand.u32 %v256, 4294901760
    %1670 = vmatpush.msra.mxu0 %v1669
    %v1671 = vand.u32 %v255, 4294901760
    %1672 = vmatpush.msra.mxu0 %v1671
    %v1673 = vand.u32 %v254, 4294901760
    %1674 = vmatpush.msra.mxu0 %v1673
    %v1675 = vand.u32 %v253, 4294901760
    %1676 = vmatpush.msra.mxu0 %v1675
    %v1677 = vand.u32 %v252, 4294901760
    %1678 = vmatpush.msra.mxu0 %v1677
    %v1679 = vand.u32 %v251, 4294901760
    %1680 = vmatpush.msra.mxu0 %v1679
    %v1681 = vand.u32 %v250, 4294901760
    %1682 = vmatpush.msra.mxu0 %v1681
    %v1683 = vand.u32 %v249, 4294901760
    %1684 = vmatpush.msra.mxu0 %v1683
    %v1685 = vand.u32 %v248, 4294901760
    %1686 = vmatpush.msra.mxu0 %v1685
    %v1687 = vand.u32 %v247, 4294901760
    %1688 = vmatpush.msra.mxu0 %v1687
    %v1689 = vand.u32 %v246, 4294901760
    %1690 = vmatpush.msra.mxu0 %v1689
    %v1691 = vand.u32 %v245, 4294901760
    %1692 = vmatpush.msra.mxu0 %v1691
    %v1693 = vand.u32 %v244, 4294901760
    %1694 = vmatpush.msra.mxu0 %v1693
    %v1695 = vand.u32 %v243, 4294901760
    %1696 = vmatpush.msra.mxu0 %v1695
    %v1697 = vand.u32 %v242, 4294901760
    %1698 = vmatpush.msra.mxu0 %v1697
    %v1699 = vand.u32 %v241, 4294901760
    %1700 = vmatpush.msra.mxu0 %v1699
    %v1701 = vand.u32 %v329, 4294901760
    %1702 = vmatmul.f32.gmra.mxu0 %v1701
    %v1703 = vpop.f32.mrf.mxu0
    %v1704 = vadd.f32 %v1667, %v1703
    %1705 = vdwg.mxu0
    %v1706 = vand.u32 %v272, 4294901760
    %1707 = vmatpush.msra.mxu0 %v1706
    %v1708 = vand.u32 %v271, 4294901760
    %1709 = vmatpush.msra.mxu0 %v1708
    %v1710 = vand.u32 %v270, 4294901760
    %1711 = vmatpush.msra.mxu0 %v1710
    %v1712 = vand.u32 %v269, 4294901760
    %1713 = vmatpush.msra.mxu0 %v1712
    %v1714 = vand.u32 %v268, 4294901760
    %1715 = vmatpush.msra.mxu0 %v1714
    %v1716 = vand.u32 %v267, 4294901760
    %1717 = vmatpush.msra.mxu0 %v1716
    %v1718 = vand.u32 %v266, 4294901760
    %1719 = vmatpush.msra.mxu0 %v1718
    %v1720 = vand.u32 %v265, 4294901760
    %1721 = vmatpush.msra.mxu0 %v1720
    %v1722 = vand.u32 %v264, 4294901760
    %1723 = vmatpush.msra.mxu0 %v1722
    %v1724 = vand.u32 %v263, 4294901760
    %1725 = vmatpush.msra.mxu0 %v1724
    %v1726 = vand.u32 %v262, 4294901760
    %1727 = vmatpush.msra.mxu0 %v1726
    %v1728 = vand.u32 %v261, 4294901760
    %1729 = vmatpush.msra.mxu0 %v1728
    %v1730 = vand.u32 %v260, 4294901760
    %1731 = vmatpush.msra.mxu0 %v1730
    %v1732 = vand.u32 %v259, 4294901760
    %1733 = vmatpush.msra.mxu0 %v1732
    %v1734 = vand.u32 %v258, 4294901760
    %1735 = vmatpush.msra.mxu0 %v1734
    %v1736 = vand.u32 %v257, 4294901760
    %1737 = vmatpush.msra.mxu0 %v1736
    %v1738 = vand.u32 %v330, 4294901760
    %v1739 = vsub.f32 %v330, %v1738
    %v1740 = vand.u32 %v1739, 4294901760
    %v1741 = vsub.f32 %v1739, %v1740
    %v1742 = vand.u32 %v1741, 4294901760
    %1743 = vmatmul.f32.gmra.mxu0 %v1742
    %v1744 = vpop.f32.mrf.mxu0
    %v1745 = vadd.f32 %v1704, %v1744
    %1746 = vdwg.mxu0
    %v1747 = vand.u32 %v272, 4294901760
    %v1748 = vsub.f32 %v272, %v1747
    %v1749 = vand.u32 %v1748, 4294901760
    %v1750 = vsub.f32 %v1748, %v1749
    %v1751 = vand.u32 %v1750, 4294901760
    %1752 = vmatpush.msra.mxu0 %v1751
    %v1753 = vand.u32 %v271, 4294901760
    %v1754 = vsub.f32 %v271, %v1753
    %v1755 = vand.u32 %v1754, 4294901760
    %v1756 = vsub.f32 %v1754, %v1755
    %v1757 = vand.u32 %v1756, 4294901760
    %1758 = vmatpush.msra.mxu0 %v1757
    %v1759 = vand.u32 %v270, 4294901760
    %v1760 = vsub.f32 %v270, %v1759
    %v1761 = vand.u32 %v1760, 4294901760
    %v1762 = vsub.f32 %v1760, %v1761
    %v1763 = vand.u32 %v1762, 4294901760
    %1764 = vmatpush.msra.mxu0 %v1763
    %v1765 = vand.u32 %v269, 4294901760
    %v1766 = vsub.f32 %v269, %v1765
    %v1767 = vand.u32 %v1766, 4294901760
    %v1768 = vsub.f32 %v1766, %v1767
    %v1769 = vand.u32 %v1768, 4294901760
    %1770 = vmatpush.msra.mxu0 %v1769
    %v1771 = vand.u32 %v268, 4294901760
    %v1772 = vsub.f32 %v268, %v1771
    %v1773 = vand.u32 %v1772, 4294901760
    %v1774 = vsub.f32 %v1772, %v1773
    %v1775 = vand.u32 %v1774, 4294901760
    %1776 = vmatpush.msra.mxu0 %v1775
    %v1777 = vand.u32 %v267, 4294901760
    %v1778 = vsub.f32 %v267, %v1777
    %v1779 = vand.u32 %v1778, 4294901760
    %v1780 = vsub.f32 %v1778, %v1779
    %v1781 = vand.u32 %v1780, 4294901760
    %1782 = vmatpush.msra.mxu0 %v1781
    %v1783 = vand.u32 %v266, 4294901760
    %v1784 = vsub.f32 %v266, %v1783
    %v1785 = vand.u32 %v1784, 4294901760
    %v1786 = vsub.f32 %v1784, %v1785
    %v1787 = vand.u32 %v1786, 4294901760
    %1788 = vmatpush.msra.mxu0 %v1787
    %v1789 = vand.u32 %v265, 4294901760
    %v1790 = vsub.f32 %v265, %v1789
    %v1791 = vand.u32 %v1790, 4294901760
    %v1792 = vsub.f32 %v1790, %v1791
    %v1793 = vand.u32 %v1792, 4294901760
    %1794 = vmatpush.msra.mxu0 %v1793
    %v1795 = vand.u32 %v264, 4294901760
    %v1796 = vsub.f32 %v264, %v1795
    %v1797 = vand.u32 %v1796, 4294901760
    %v1798 = vsub.f32 %v1796, %v1797
    %v1799 = vand.u32 %v1798, 4294901760
    %1800 = vmatpush.msra.mxu0 %v1799
    %v1801 = vand.u32 %v263, 4294901760
    %v1802 = vsub.f32 %v263, %v1801
    %v1803 = vand.u32 %v1802, 4294901760
    %v1804 = vsub.f32 %v1802, %v1803
    %v1805 = vand.u32 %v1804, 4294901760
    %1806 = vmatpush.msra.mxu0 %v1805
    %v1807 = vand.u32 %v262, 4294901760
    %v1808 = vsub.f32 %v262, %v1807
    %v1809 = vand.u32 %v1808, 4294901760
    %v1810 = vsub.f32 %v1808, %v1809
    %v1811 = vand.u32 %v1810, 4294901760
    %1812 = vmatpush.msra.mxu0 %v1811
    %v1813 = vand.u32 %v261, 4294901760
    %v1814 = vsub.f32 %v261, %v1813
    %v1815 = vand.u32 %v1814, 4294901760
    %v1816 = vsub.f32 %v1814, %v1815
    %v1817 = vand.u32 %v1816, 4294901760
    %1818 = vmatpush.msra.mxu0 %v1817
    %v1819 = vand.u32 %v260, 4294901760
    %v1820 = vsub.f32 %v260, %v1819
    %v1821 = vand.u32 %v1820, 4294901760
    %v1822 = vsub.f32 %v1820, %v1821
    %v1823 = vand.u32 %v1822, 4294901760
    %1824 = vmatpush.msra.mxu0 %v1823
    %v1825 = vand.u32 %v259, 4294901760
    %v1826 = vsub.f32 %v259, %v1825
    %v1827 = vand.u32 %v1826, 4294901760
    %v1828 = vsub.f32 %v1826, %v1827
    %v1829 = vand.u32 %v1828, 4294901760
    %1830 = vmatpush.msra.mxu0 %v1829
    %v1831 = vand.u32 %v258, 4294901760
    %v1832 = vsub.f32 %v258, %v1831
    %v1833 = vand.u32 %v1832, 4294901760
    %v1834 = vsub.f32 %v1832, %v1833
    %v1835 = vand.u32 %v1834, 4294901760
    %1836 = vmatpush.msra.mxu0 %v1835
    %v1837 = vand.u32 %v257, 4294901760
    %v1838 = vsub.f32 %v257, %v1837
    %v1839 = vand.u32 %v1838, 4294901760
    %v1840 = vsub.f32 %v1838, %v1839
    %v1841 = vand.u32 %v1840, 4294901760
    %1842 = vmatpush.msra.mxu0 %v1841
    %v1843 = vand.u32 %v330, 4294901760
    %1844 = vmatmul.f32.gmra.mxu0 %v1843
    %v1845 = vpop.f32.mrf.mxu0
    %v1846 = vadd.f32 %v1745, %v1845
    %1847 = vdwg.mxu0
    %v1848 = vand.u32 %v272, 4294901760
    %v1849 = vsub.f32 %v272, %v1848
    %1850 = vmatpush.msra.mxu0 %v1849
    %v1851 = vand.u32 %v271, 4294901760
    %v1852 = vsub.f32 %v271, %v1851
    %1853 = vmatpush.msra.mxu0 %v1852
    %v1854 = vand.u32 %v270, 4294901760
    %v1855 = vsub.f32 %v270, %v1854
    %1856 = vmatpush.msra.mxu0 %v1855
    %v1857 = vand.u32 %v269, 4294901760
    %v1858 = vsub.f32 %v269, %v1857
    %1859 = vmatpush.msra.mxu0 %v1858
    %v1860 = vand.u32 %v268, 4294901760
    %v1861 = vsub.f32 %v268, %v1860
    %1862 = vmatpush.msra.mxu0 %v1861
    %v1863 = vand.u32 %v267, 4294901760
    %v1864 = vsub.f32 %v267, %v1863
    %1865 = vmatpush.msra.mxu0 %v1864
    %v1866 = vand.u32 %v266, 4294901760
    %v1867 = vsub.f32 %v266, %v1866
    %1868 = vmatpush.msra.mxu0 %v1867
    %v1869 = vand.u32 %v265, 4294901760
    %v1870 = vsub.f32 %v265, %v1869
    %1871 = vmatpush.msra.mxu0 %v1870
    %v1872 = vand.u32 %v264, 4294901760
    %v1873 = vsub.f32 %v264, %v1872
    %1874 = vmatpush.msra.mxu0 %v1873
    %v1875 = vand.u32 %v263, 4294901760
    %v1876 = vsub.f32 %v263, %v1875
    %1877 = vmatpush.msra.mxu0 %v1876
    %v1878 = vand.u32 %v262, 4294901760
    %v1879 = vsub.f32 %v262, %v1878
    %1880 = vmatpush.msra.mxu0 %v1879
    %v1881 = vand.u32 %v261, 4294901760
    %v1882 = vsub.f32 %v261, %v1881
    %1883 = vmatpush.msra.mxu0 %v1882
    %v1884 = vand.u32 %v260, 4294901760
    %v1885 = vsub.f32 %v260, %v1884
    %1886 = vmatpush.msra.mxu0 %v1885
    %v1887 = vand.u32 %v259, 4294901760
    %v1888 = vsub.f32 %v259, %v1887
    %1889 = vmatpush.msra.mxu0 %v1888
    %v1890 = vand.u32 %v258, 4294901760
    %v1891 = vsub.f32 %v258, %v1890
    %1892 = vmatpush.msra.mxu0 %v1891
    %v1893 = vand.u32 %v257, 4294901760
    %v1894 = vsub.f32 %v257, %v1893
    %1895 = vmatpush.msra.mxu0 %v1894
    %v1896 = vand.u32 %v330, 4294901760
    %v1897 = vsub.f32 %v330, %v1896
    %1898 = vmatmul.f32.gmra.mxu0 %v1897
    %v1899 = vpop.f32.mrf.mxu0
    %v1900 = vadd.f32 %v1846, %v1899
    %1901 = vdwg.mxu0
    %v1902 = vand.u32 %v272, 4294901760
    %1903 = vmatpush.msra.mxu0 %v1902
    %v1904 = vand.u32 %v271, 4294901760
    %1905 = vmatpush.msra.mxu0 %v1904
    %v1906 = vand.u32 %v270, 4294901760
    %1907 = vmatpush.msra.mxu0 %v1906
    %v1908 = vand.u32 %v269, 4294901760
    %1909 = vmatpush.msra.mxu0 %v1908
    %v1910 = vand.u32 %v268, 4294901760
    %1911 = vmatpush.msra.mxu0 %v1910
    %v1912 = vand.u32 %v267, 4294901760
    %1913 = vmatpush.msra.mxu0 %v1912
    %v1914 = vand.u32 %v266, 4294901760
    %1915 = vmatpush.msra.mxu0 %v1914
    %v1916 = vand.u32 %v265, 4294901760
    %1917 = vmatpush.msra.mxu0 %v1916
    %v1918 = vand.u32 %v264, 4294901760
    %1919 = vmatpush.msra.mxu0 %v1918
    %v1920 = vand.u32 %v263, 4294901760
    %1921 = vmatpush.msra.mxu0 %v1920
    %v1922 = vand.u32 %v262, 4294901760
    %1923 = vmatpush.msra.mxu0 %v1922
    %v1924 = vand.u32 %v261, 4294901760
    %1925 = vmatpush.msra.mxu0 %v1924
    %v1926 = vand.u32 %v260, 4294901760
    %1927 = vmatpush.msra.mxu0 %v1926
    %v1928 = vand.u32 %v259, 4294901760
    %1929 = vmatpush.msra.mxu0 %v1928
    %v1930 = vand.u32 %v258, 4294901760
    %1931 = vmatpush.msra.mxu0 %v1930
    %v1932 = vand.u32 %v257, 4294901760
    %1933 = vmatpush.msra.mxu0 %v1932
    %v1934 = vand.u32 %v330, 4294901760
    %v1935 = vsub.f32 %v330, %v1934
    %v1936 = vand.u32 %v1935, 4294901760
    %1937 = vmatmul.f32.gmra.mxu0 %v1936
    %v1938 = vpop.f32.mrf.mxu0
    %v1939 = vadd.f32 %v1900, %v1938
    %1940 = vdwg.mxu0
    %v1941 = vand.u32 %v272, 4294901760
    %v1942 = vsub.f32 %v272, %v1941
    %v1943 = vand.u32 %v1942, 4294901760
    %1944 = vmatpush.msra.mxu0 %v1943
    %v1945 = vand.u32 %v271, 4294901760
    %v1946 = vsub.f32 %v271, %v1945
    %v1947 = vand.u32 %v1946, 4294901760
    %1948 = vmatpush.msra.mxu0 %v1947
    %v1949 = vand.u32 %v270, 4294901760
    %v1950 = vsub.f32 %v270, %v1949
    %v1951 = vand.u32 %v1950, 4294901760
    %1952 = vmatpush.msra.mxu0 %v1951
    %v1953 = vand.u32 %v269, 4294901760
    %v1954 = vsub.f32 %v269, %v1953
    %v1955 = vand.u32 %v1954, 4294901760
    %1956 = vmatpush.msra.mxu0 %v1955
    %v1957 = vand.u32 %v268, 4294901760
    %v1958 = vsub.f32 %v268, %v1957
    %v1959 = vand.u32 %v1958, 4294901760
    %1960 = vmatpush.msra.mxu0 %v1959
    %v1961 = vand.u32 %v267, 4294901760
    %v1962 = vsub.f32 %v267, %v1961
    %v1963 = vand.u32 %v1962, 4294901760
    %1964 = vmatpush.msra.mxu0 %v1963
    %v1965 = vand.u32 %v266, 4294901760
    %v1966 = vsub.f32 %v266, %v1965
    %v1967 = vand.u32 %v1966, 4294901760
    %1968 = vmatpush.msra.mxu0 %v1967
    %v1969 = vand.u32 %v265, 4294901760
    %v1970 = vsub.f32 %v265, %v1969
    %v1971 = vand.u32 %v1970, 4294901760
    %1972 = vmatpush.msra.mxu0 %v1971
    %v1973 = vand.u32 %v264, 4294901760
    %v1974 = vsub.f32 %v264, %v1973
    %v1975 = vand.u32 %v1974, 4294901760
    %1976 = vmatpush.msra.mxu0 %v1975
    %v1977 = vand.u32 %v263, 4294901760
    %v1978 = vsub.f32 %v263, %v1977
    %v1979 = vand.u32 %v1978, 4294901760
    %1980 = vmatpush.msra.mxu0 %v1979
    %v1981 = vand.u32 %v262, 4294901760
    %v1982 = vsub.f32 %v262, %v1981
    %v1983 = vand.u32 %v1982, 4294901760
    %1984 = vmatpush.msra.mxu0 %v1983
    %v1985 = vand.u32 %v261, 4294901760
    %v1986 = vsub.f32 %v261, %v1985
    %v1987 = vand.u32 %v1986, 4294901760
    %1988 = vmatpush.msra.mxu0 %v1987
    %v1989 = vand.u32 %v260, 4294901760
    %v1990 = vsub.f32 %v260, %v1989
    %v1991 = vand.u32 %v1990, 4294901760
    %1992 = vmatpush.msra.mxu0 %v1991
    %v1993 = vand.u32 %v259, 4294901760
    %v1994 = vsub.f32 %v259, %v1993
    %v1995 = vand.u32 %v1994, 4294901760
    %1996 = vmatpush.msra.mxu0 %v1995
    %v1997 = vand.u32 %v258, 4294901760
    %v1998 = vsub.f32 %v258, %v1997
    %v1999 = vand.u32 %v1998, 4294901760
    %2000 = vmatpush.msra.mxu0 %v1999
    %v2001 = vand.u32 %v257, 4294901760
    %v2002 = vsub.f32 %v257, %v2001
    %v2003 = vand.u32 %v2002, 4294901760
    %2004 = vmatpush.msra.mxu0 %v2003
    %v2005 = vand.u32 %v330, 4294901760
    %2006 = vmatmul.f32.gmra.mxu0 %v2005
    %v2007 = vpop.f32.mrf.mxu0
    %v2008 = vadd.f32 %v1939, %v2007
    %2009 = vdwg.mxu0
    %v2010 = vand.u32 %v272, 4294901760
    %2011 = vmatpush.msra.mxu0 %v2010
    %v2012 = vand.u32 %v271, 4294901760
    %2013 = vmatpush.msra.mxu0 %v2012
    %v2014 = vand.u32 %v270, 4294901760
    %2015 = vmatpush.msra.mxu0 %v2014
    %v2016 = vand.u32 %v269, 4294901760
    %2017 = vmatpush.msra.mxu0 %v2016
    %v2018 = vand.u32 %v268, 4294901760
    %2019 = vmatpush.msra.mxu0 %v2018
    %v2020 = vand.u32 %v267, 4294901760
    %2021 = vmatpush.msra.mxu0 %v2020
    %v2022 = vand.u32 %v266, 4294901760
    %2023 = vmatpush.msra.mxu0 %v2022
    %v2024 = vand.u32 %v265, 4294901760
    %2025 = vmatpush.msra.mxu0 %v2024
    %v2026 = vand.u32 %v264, 4294901760
    %2027 = vmatpush.msra.mxu0 %v2026
    %v2028 = vand.u32 %v263, 4294901760
    %2029 = vmatpush.msra.mxu0 %v2028
    %v2030 = vand.u32 %v262, 4294901760
    %2031 = vmatpush.msra.mxu0 %v2030
    %v2032 = vand.u32 %v261, 4294901760
    %2033 = vmatpush.msra.mxu0 %v2032
    %v2034 = vand.u32 %v260, 4294901760
    %2035 = vmatpush.msra.mxu0 %v2034
    %v2036 = vand.u32 %v259, 4294901760
    %2037 = vmatpush.msra.mxu0 %v2036
    %v2038 = vand.u32 %v258, 4294901760
    %2039 = vmatpush.msra.mxu0 %v2038
    %v2040 = vand.u32 %v257, 4294901760
    %2041 = vmatpush.msra.mxu0 %v2040
    %v2042 = vand.u32 %v330, 4294901760
    %2043 = vmatmul.f32.gmra.mxu0 %v2042
    %v2044 = vpop.f32.mrf.mxu0
    %v2045 = vadd.f32 %v2008, %v2044
    %2046 = vdwg.mxu0
    %v2047 = vand.u32 %v288, 4294901760
    %2048 = vmatpush.msra.mxu0 %v2047
    %v2049 = vand.u32 %v287, 4294901760
    %2050 = vmatpush.msra.mxu0 %v2049
    %v2051 = vand.u32 %v286, 4294901760
    %2052 = vmatpush.msra.mxu0 %v2051
    %v2053 = vand.u32 %v285, 4294901760
    %2054 = vmatpush.msra.mxu0 %v2053
    %v2055 = vand.u32 %v284, 4294901760
    %2056 = vmatpush.msra.mxu0 %v2055
    %v2057 = vand.u32 %v283, 4294901760
    %2058 = vmatpush.msra.mxu0 %v2057
    %v2059 = vand.u32 %v282, 4294901760
    %2060 = vmatpush.msra.mxu0 %v2059
    %v2061 = vand.u32 %v281, 4294901760
    %2062 = vmatpush.msra.mxu0 %v2061
    %v2063 = vand.u32 %v280, 4294901760
    %2064 = vmatpush.msra.mxu0 %v2063
    %v2065 = vand.u32 %v279, 4294901760
    %2066 = vmatpush.msra.mxu0 %v2065
    %v2067 = vand.u32 %v278, 4294901760
    %2068 = vmatpush.msra.mxu0 %v2067
    %v2069 = vand.u32 %v277, 4294901760
    %2070 = vmatpush.msra.mxu0 %v2069
    %v2071 = vand.u32 %v276, 4294901760
    %2072 = vmatpush.msra.mxu0 %v2071
    %v2073 = vand.u32 %v275, 4294901760
    %2074 = vmatpush.msra.mxu0 %v2073
    %v2075 = vand.u32 %v274, 4294901760
    %2076 = vmatpush.msra.mxu0 %v2075
    %v2077 = vand.u32 %v273, 4294901760
    %2078 = vmatpush.msra.mxu0 %v2077
    %v2079 = vand.u32 %v331, 4294901760
    %v2080 = vsub.f32 %v331, %v2079
    %v2081 = vand.u32 %v2080, 4294901760
    %v2082 = vsub.f32 %v2080, %v2081
    %v2083 = vand.u32 %v2082, 4294901760
    %2084 = vmatmul.f32.gmra.mxu0 %v2083
    %v2085 = vpop.f32.mrf.mxu0
    %v2086 = vadd.f32 %v2045, %v2085
    %2087 = vdwg.mxu0
    %v2088 = vand.u32 %v288, 4294901760
    %v2089 = vsub.f32 %v288, %v2088
    %v2090 = vand.u32 %v2089, 4294901760
    %v2091 = vsub.f32 %v2089, %v2090
    %v2092 = vand.u32 %v2091, 4294901760
    %2093 = vmatpush.msra.mxu0 %v2092
    %v2094 = vand.u32 %v287, 4294901760
    %v2095 = vsub.f32 %v287, %v2094
    %v2096 = vand.u32 %v2095, 4294901760
    %v2097 = vsub.f32 %v2095, %v2096
    %v2098 = vand.u32 %v2097, 4294901760
    %2099 = vmatpush.msra.mxu0 %v2098
    %v2100 = vand.u32 %v286, 4294901760
    %v2101 = vsub.f32 %v286, %v2100
    %v2102 = vand.u32 %v2101, 4294901760
    %v2103 = vsub.f32 %v2101, %v2102
    %v2104 = vand.u32 %v2103, 4294901760
    %2105 = vmatpush.msra.mxu0 %v2104
    %v2106 = vand.u32 %v285, 4294901760
    %v2107 = vsub.f32 %v285, %v2106
    %v2108 = vand.u32 %v2107, 4294901760
    %v2109 = vsub.f32 %v2107, %v2108
    %v2110 = vand.u32 %v2109, 4294901760
    %2111 = vmatpush.msra.mxu0 %v2110
    %v2112 = vand.u32 %v284, 4294901760
    %v2113 = vsub.f32 %v284, %v2112
    %v2114 = vand.u32 %v2113, 4294901760
    %v2115 = vsub.f32 %v2113, %v2114
    %v2116 = vand.u32 %v2115, 4294901760
    %2117 = vmatpush.msra.mxu0 %v2116
    %v2118 = vand.u32 %v283, 4294901760
    %v2119 = vsub.f32 %v283, %v2118
    %v2120 = vand.u32 %v2119, 4294901760
    %v2121 = vsub.f32 %v2119, %v2120
    %v2122 = vand.u32 %v2121, 4294901760
    %2123 = vmatpush.msra.mxu0 %v2122
    %v2124 = vand.u32 %v282, 4294901760
    %v2125 = vsub.f32 %v282, %v2124
    %v2126 = vand.u32 %v2125, 4294901760
    %v2127 = vsub.f32 %v2125, %v2126
    %v2128 = vand.u32 %v2127, 4294901760
    %2129 = vmatpush.msra.mxu0 %v2128
    %v2130 = vand.u32 %v281, 4294901760
    %v2131 = vsub.f32 %v281, %v2130
    %v2132 = vand.u32 %v2131, 4294901760
    %v2133 = vsub.f32 %v2131, %v2132
    %v2134 = vand.u32 %v2133, 4294901760
    %2135 = vmatpush.msra.mxu0 %v2134
    %v2136 = vand.u32 %v280, 4294901760
    %v2137 = vsub.f32 %v280, %v2136
    %v2138 = vand.u32 %v2137, 4294901760
    %v2139 = vsub.f32 %v2137, %v2138
    %v2140 = vand.u32 %v2139, 4294901760
    %2141 = vmatpush.msra.mxu0 %v2140
    %v2142 = vand.u32 %v279, 4294901760
    %v2143 = vsub.f32 %v279, %v2142
    %v2144 = vand.u32 %v2143, 4294901760
    %v2145 = vsub.f32 %v2143, %v2144
    %v2146 = vand.u32 %v2145, 4294901760
    %2147 = vmatpush.msra.mxu0 %v2146
    %v2148 = vand.u32 %v278, 4294901760
    %v2149 = vsub.f32 %v278, %v2148
    %v2150 = vand.u32 %v2149, 4294901760
    %v2151 = vsub.f32 %v2149, %v2150
    %v2152 = vand.u32 %v2151, 4294901760
    %2153 = vmatpush.msra.mxu0 %v2152
    %v2154 = vand.u32 %v277, 4294901760
    %v2155 = vsub.f32 %v277, %v2154
    %v2156 = vand.u32 %v2155, 4294901760
    %v2157 = vsub.f32 %v2155, %v2156
    %v2158 = vand.u32 %v2157, 4294901760
    %2159 = vmatpush.msra.mxu0 %v2158
    %v2160 = vand.u32 %v276, 4294901760
    %v2161 = vsub.f32 %v276, %v2160
    %v2162 = vand.u32 %v2161, 4294901760
    %v2163 = vsub.f32 %v2161, %v2162
    %v2164 = vand.u32 %v2163, 4294901760
    %2165 = vmatpush.msra.mxu0 %v2164
    %v2166 = vand.u32 %v275, 4294901760
    %v2167 = vsub.f32 %v275, %v2166
    %v2168 = vand.u32 %v2167, 4294901760
    %v2169 = vsub.f32 %v2167, %v2168
    %v2170 = vand.u32 %v2169, 4294901760
    %2171 = vmatpush.msra.mxu0 %v2170
    %v2172 = vand.u32 %v274, 4294901760
    %v2173 = vsub.f32 %v274, %v2172
    %v2174 = vand.u32 %v2173, 4294901760
    %v2175 = vsub.f32 %v2173, %v2174
    %v2176 = vand.u32 %v2175, 4294901760
    %2177 = vmatpush.msra.mxu0 %v2176
    %v2178 = vand.u32 %v273, 4294901760
    %v2179 = vsub.f32 %v273, %v2178
    %v2180 = vand.u32 %v2179, 4294901760
    %v2181 = vsub.f32 %v2179, %v2180
    %v2182 = vand.u32 %v2181, 4294901760
    %2183 = vmatpush.msra.mxu0 %v2182
    %v2184 = vand.u32 %v331, 4294901760
    %2185 = vmatmul.f32.gmra.mxu0 %v2184
    %v2186 = vpop.f32.mrf.mxu0
    %v2187 = vadd.f32 %v2086, %v2186
    %2188 = vdwg.mxu0
    %v2189 = vand.u32 %v288, 4294901760
    %v2190 = vsub.f32 %v288, %v2189
    %2191 = vmatpush.msra.mxu0 %v2190
    %v2192 = vand.u32 %v287, 4294901760
    %v2193 = vsub.f32 %v287, %v2192
    %2194 = vmatpush.msra.mxu0 %v2193
    %v2195 = vand.u32 %v286, 4294901760
    %v2196 = vsub.f32 %v286, %v2195
    %2197 = vmatpush.msra.mxu0 %v2196
    %v2198 = vand.u32 %v285, 4294901760
    %v2199 = vsub.f32 %v285, %v2198
    %2200 = vmatpush.msra.mxu0 %v2199
    %v2201 = vand.u32 %v284, 4294901760
    %v2202 = vsub.f32 %v284, %v2201
    %2203 = vmatpush.msra.mxu0 %v2202
    %v2204 = vand.u32 %v283, 4294901760
    %v2205 = vsub.f32 %v283, %v2204
    %2206 = vmatpush.msra.mxu0 %v2205
    %v2207 = vand.u32 %v282, 4294901760
    %v2208 = vsub.f32 %v282, %v2207
    %2209 = vmatpush.msra.mxu0 %v2208
    %v2210 = vand.u32 %v281, 4294901760
    %v2211 = vsub.f32 %v281, %v2210
    %2212 = vmatpush.msra.mxu0 %v2211
    %v2213 = vand.u32 %v280, 4294901760
    %v2214 = vsub.f32 %v280, %v2213
    %2215 = vmatpush.msra.mxu0 %v2214
    %v2216 = vand.u32 %v279, 4294901760
    %v2217 = vsub.f32 %v279, %v2216
    %2218 = vmatpush.msra.mxu0 %v2217
    %v2219 = vand.u32 %v278, 4294901760
    %v2220 = vsub.f32 %v278, %v2219
    %2221 = vmatpush.msra.mxu0 %v2220
    %v2222 = vand.u32 %v277, 4294901760
    %v2223 = vsub.f32 %v277, %v2222
    %2224 = vmatpush.msra.mxu0 %v2223
    %v2225 = vand.u32 %v276, 4294901760
    %v2226 = vsub.f32 %v276, %v2225
    %2227 = vmatpush.msra.mxu0 %v2226
    %v2228 = vand.u32 %v275, 4294901760
    %v2229 = vsub.f32 %v275, %v2228
    %2230 = vmatpush.msra.mxu0 %v2229
    %v2231 = vand.u32 %v274, 4294901760
    %v2232 = vsub.f32 %v274, %v2231
    %2233 = vmatpush.msra.mxu0 %v2232
    %v2234 = vand.u32 %v273, 4294901760
    %v2235 = vsub.f32 %v273, %v2234
    %2236 = vmatpush.msra.mxu0 %v2235
    %v2237 = vand.u32 %v331, 4294901760
    %v2238 = vsub.f32 %v331, %v2237
    %2239 = vmatmul.f32.gmra.mxu0 %v2238
    %v2240 = vpop.f32.mrf.mxu0
    %v2241 = vadd.f32 %v2187, %v2240
    %2242 = vdwg.mxu0
    %v2243 = vand.u32 %v288, 4294901760
    %2244 = vmatpush.msra.mxu0 %v2243
    %v2245 = vand.u32 %v287, 4294901760
    %2246 = vmatpush.msra.mxu0 %v2245
    %v2247 = vand.u32 %v286, 4294901760
    %2248 = vmatpush.msra.mxu0 %v2247
    %v2249 = vand.u32 %v285, 4294901760
    %2250 = vmatpush.msra.mxu0 %v2249
    %v2251 = vand.u32 %v284, 4294901760
    %2252 = vmatpush.msra.mxu0 %v2251
    %v2253 = vand.u32 %v283, 4294901760
    %2254 = vmatpush.msra.mxu0 %v2253
    %v2255 = vand.u32 %v282, 4294901760
    %2256 = vmatpush.msra.mxu0 %v2255
    %v2257 = vand.u32 %v281, 4294901760
    %2258 = vmatpush.msra.mxu0 %v2257
    %v2259 = vand.u32 %v280, 4294901760
    %2260 = vmatpush.msra.mxu0 %v2259
    %v2261 = vand.u32 %v279, 4294901760
    %2262 = vmatpush.msra.mxu0 %v2261
    %v2263 = vand.u32 %v278, 4294901760
    %2264 = vmatpush.msra.mxu0 %v2263
    %v2265 = vand.u32 %v277, 4294901760
    %2266 = vmatpush.msra.mxu0 %v2265
    %v2267 = vand.u32 %v276, 4294901760
    %2268 = vmatpush.msra.mxu0 %v2267
    %v2269 = vand.u32 %v275, 4294901760
    %2270 = vmatpush.msra.mxu0 %v2269
    %v2271 = vand.u32 %v274, 4294901760
    %2272 = vmatpush.msra.mxu0 %v2271
    %v2273 = vand.u32 %v273, 4294901760
    %2274 = vmatpush.msra.mxu0 %v2273
    %v2275 = vand.u32 %v331, 4294901760
    %v2276 = vsub.f32 %v331, %v2275
    %v2277 = vand.u32 %v2276, 4294901760
    %2278 = vmatmul.f32.gmra.mxu0 %v2277
    %v2279 = vpop.f32.mrf.mxu0
    %v2280 = vadd.f32 %v2241, %v2279
    %2281 = vdwg.mxu0
    %v2282 = vand.u32 %v288, 4294901760
    %v2283 = vsub.f32 %v288, %v2282
    %v2284 = vand.u32 %v2283, 4294901760
    %2285 = vmatpush.msra.mxu0 %v2284
    %v2286 = vand.u32 %v287, 4294901760
    %v2287 = vsub.f32 %v287, %v2286
    %v2288 = vand.u32 %v2287, 4294901760
    %2289 = vmatpush.msra.mxu0 %v2288
    %v2290 = vand.u32 %v286, 4294901760
    %v2291 = vsub.f32 %v286, %v2290
    %v2292 = vand.u32 %v2291, 4294901760
    %2293 = vmatpush.msra.mxu0 %v2292
    %v2294 = vand.u32 %v285, 4294901760
    %v2295 = vsub.f32 %v285, %v2294
    %v2296 = vand.u32 %v2295, 4294901760
    %2297 = vmatpush.msra.mxu0 %v2296
    %v2298 = vand.u32 %v284, 4294901760
    %v2299 = vsub.f32 %v284, %v2298
    %v2300 = vand.u32 %v2299, 4294901760
    %2301 = vmatpush.msra.mxu0 %v2300
    %v2302 = vand.u32 %v283, 4294901760
    %v2303 = vsub.f32 %v283, %v2302
    %v2304 = vand.u32 %v2303, 4294901760
    %2305 = vmatpush.msra.mxu0 %v2304
    %v2306 = vand.u32 %v282, 4294901760
    %v2307 = vsub.f32 %v282, %v2306
    %v2308 = vand.u32 %v2307, 4294901760
    %2309 = vmatpush.msra.mxu0 %v2308
    %v2310 = vand.u32 %v281, 4294901760
    %v2311 = vsub.f32 %v281, %v2310
    %v2312 = vand.u32 %v2311, 4294901760
    %2313 = vmatpush.msra.mxu0 %v2312
    %v2314 = vand.u32 %v280, 4294901760
    %v2315 = vsub.f32 %v280, %v2314
    %v2316 = vand.u32 %v2315, 4294901760
    %2317 = vmatpush.msra.mxu0 %v2316
    %v2318 = vand.u32 %v279, 4294901760
    %v2319 = vsub.f32 %v279, %v2318
    %v2320 = vand.u32 %v2319, 4294901760
    %2321 = vmatpush.msra.mxu0 %v2320
    %v2322 = vand.u32 %v278, 4294901760
    %v2323 = vsub.f32 %v278, %v2322
    %v2324 = vand.u32 %v2323, 4294901760
    %2325 = vmatpush.msra.mxu0 %v2324
    %v2326 = vand.u32 %v277, 4294901760
    %v2327 = vsub.f32 %v277, %v2326
    %v2328 = vand.u32 %v2327, 4294901760
    %2329 = vmatpush.msra.mxu0 %v2328
    %v2330 = vand.u32 %v276, 4294901760
    %v2331 = vsub.f32 %v276, %v2330
    %v2332 = vand.u32 %v2331, 4294901760
    %2333 = vmatpush.msra.mxu0 %v2332
    %v2334 = vand.u32 %v275, 4294901760
    %v2335 = vsub.f32 %v275, %v2334
    %v2336 = vand.u32 %v2335, 4294901760
    %2337 = vmatpush.msra.mxu0 %v2336
    %v2338 = vand.u32 %v274, 4294901760
    %v2339 = vsub.f32 %v274, %v2338
    %v2340 = vand.u32 %v2339, 4294901760
    %2341 = vmatpush.msra.mxu0 %v2340
    %v2342 = vand.u32 %v273, 4294901760
    %v2343 = vsub.f32 %v273, %v2342
    %v2344 = vand.u32 %v2343, 4294901760
    %2345 = vmatpush.msra.mxu0 %v2344
    %v2346 = vand.u32 %v331, 4294901760
    %2347 = vmatmul.f32.gmra.mxu0 %v2346
    %v2348 = vpop.f32.mrf.mxu0
    %v2349 = vadd.f32 %v2280, %v2348
    %2350 = vdwg.mxu0
    %v2351 = vand.u32 %v288, 4294901760
    %2352 = vmatpush.msra.mxu0 %v2351
    %v2353 = vand.u32 %v287, 4294901760
    %2354 = vmatpush.msra.mxu0 %v2353
    %v2355 = vand.u32 %v286, 4294901760
    %2356 = vmatpush.msra.mxu0 %v2355
    %v2357 = vand.u32 %v285, 4294901760
    %2358 = vmatpush.msra.mxu0 %v2357
    %v2359 = vand.u32 %v284, 4294901760
    %2360 = vmatpush.msra.mxu0 %v2359
    %v2361 = vand.u32 %v283, 4294901760
    %2362 = vmatpush.msra.mxu0 %v2361
    %v2363 = vand.u32 %v282, 4294901760
    %2364 = vmatpush.msra.mxu0 %v2363
    %v2365 = vand.u32 %v281, 4294901760
    %2366 = vmatpush.msra.mxu0 %v2365
    %v2367 = vand.u32 %v280, 4294901760
    %2368 = vmatpush.msra.mxu0 %v2367
    %v2369 = vand.u32 %v279, 4294901760
    %2370 = vmatpush.msra.mxu0 %v2369
    %v2371 = vand.u32 %v278, 4294901760
    %2372 = vmatpush.msra.mxu0 %v2371
    %v2373 = vand.u32 %v277, 4294901760
    %2374 = vmatpush.msra.mxu0 %v2373
    %v2375 = vand.u32 %v276, 4294901760
    %2376 = vmatpush.msra.mxu0 %v2375
    %v2377 = vand.u32 %v275, 4294901760
    %2378 = vmatpush.msra.mxu0 %v2377
    %v2379 = vand.u32 %v274, 4294901760
    %2380 = vmatpush.msra.mxu0 %v2379
    %v2381 = vand.u32 %v273, 4294901760
    %2382 = vmatpush.msra.mxu0 %v2381
    %v2383 = vand.u32 %v331, 4294901760
    %2384 = vmatmul.f32.gmra.mxu0 %v2383
    %v2385 = vpop.f32.mrf.mxu0
    %v2386 = vadd.f32 %v2349, %v2385
    %2387 = vdwg.mxu0
    %v2388 = vand.u32 %v304, 4294901760
    %2389 = vmatpush.msra.mxu0 %v2388
    %v2390 = vand.u32 %v303, 4294901760
    %2391 = vmatpush.msra.mxu0 %v2390
    %v2392 = vand.u32 %v302, 4294901760
    %2393 = vmatpush.msra.mxu0 %v2392
    %v2394 = vand.u32 %v301, 4294901760
    %2395 = vmatpush.msra.mxu0 %v2394
    %v2396 = vand.u32 %v300, 4294901760
    %2397 = vmatpush.msra.mxu0 %v2396
    %v2398 = vand.u32 %v299, 4294901760
    %2399 = vmatpush.msra.mxu0 %v2398
    %v2400 = vand.u32 %v298, 4294901760
    %2401 = vmatpush.msra.mxu0 %v2400
    %v2402 = vand.u32 %v297, 4294901760
    %2403 = vmatpush.msra.mxu0 %v2402
    %v2404 = vand.u32 %v296, 4294901760
    %2405 = vmatpush.msra.mxu0 %v2404
    %v2406 = vand.u32 %v295, 4294901760
    %2407 = vmatpush.msra.mxu0 %v2406
    %v2408 = vand.u32 %v294, 4294901760
    %2409 = vmatpush.msra.mxu0 %v2408
    %v2410 = vand.u32 %v293, 4294901760
    %2411 = vmatpush.msra.mxu0 %v2410
    %v2412 = vand.u32 %v292, 4294901760
    %2413 = vmatpush.msra.mxu0 %v2412
    %v2414 = vand.u32 %v291, 4294901760
    %2415 = vmatpush.msra.mxu0 %v2414
    %v2416 = vand.u32 %v290, 4294901760
    %2417 = vmatpush.msra.mxu0 %v2416
    %v2418 = vand.u32 %v289, 4294901760
    %2419 = vmatpush.msra.mxu0 %v2418
    %v2420 = vand.u32 %v332, 4294901760
    %v2421 = vsub.f32 %v332, %v2420
    %v2422 = vand.u32 %v2421, 4294901760
    %v2423 = vsub.f32 %v2421, %v2422
    %v2424 = vand.u32 %v2423, 4294901760
    %2425 = vmatmul.f32.gmra.mxu0 %v2424
    %v2426 = vpop.f32.mrf.mxu0
    %v2427 = vadd.f32 %v2386, %v2426
    %2428 = vdwg.mxu0
    %v2429 = vand.u32 %v304, 4294901760
    %v2430 = vsub.f32 %v304, %v2429
    %v2431 = vand.u32 %v2430, 4294901760
    %v2432 = vsub.f32 %v2430, %v2431
    %v2433 = vand.u32 %v2432, 4294901760
    %2434 = vmatpush.msra.mxu0 %v2433
    %v2435 = vand.u32 %v303, 4294901760
    %v2436 = vsub.f32 %v303, %v2435
    %v2437 = vand.u32 %v2436, 4294901760
    %v2438 = vsub.f32 %v2436, %v2437
    %v2439 = vand.u32 %v2438, 4294901760
    %2440 = vmatpush.msra.mxu0 %v2439
    %v2441 = vand.u32 %v302, 4294901760
    %v2442 = vsub.f32 %v302, %v2441
    %v2443 = vand.u32 %v2442, 4294901760
    %v2444 = vsub.f32 %v2442, %v2443
    %v2445 = vand.u32 %v2444, 4294901760
    %2446 = vmatpush.msra.mxu0 %v2445
    %v2447 = vand.u32 %v301, 4294901760
    %v2448 = vsub.f32 %v301, %v2447
    %v2449 = vand.u32 %v2448, 4294901760
    %v2450 = vsub.f32 %v2448, %v2449
    %v2451 = vand.u32 %v2450, 4294901760
    %2452 = vmatpush.msra.mxu0 %v2451
    %v2453 = vand.u32 %v300, 4294901760
    %v2454 = vsub.f32 %v300, %v2453
    %v2455 = vand.u32 %v2454, 4294901760
    %v2456 = vsub.f32 %v2454, %v2455
    %v2457 = vand.u32 %v2456, 4294901760
    %2458 = vmatpush.msra.mxu0 %v2457
    %v2459 = vand.u32 %v299, 4294901760
    %v2460 = vsub.f32 %v299, %v2459
    %v2461 = vand.u32 %v2460, 4294901760
    %v2462 = vsub.f32 %v2460, %v2461
    %v2463 = vand.u32 %v2462, 4294901760
    %2464 = vmatpush.msra.mxu0 %v2463
    %v2465 = vand.u32 %v298, 4294901760
    %v2466 = vsub.f32 %v298, %v2465
    %v2467 = vand.u32 %v2466, 4294901760
    %v2468 = vsub.f32 %v2466, %v2467
    %v2469 = vand.u32 %v2468, 4294901760
    %2470 = vmatpush.msra.mxu0 %v2469
    %v2471 = vand.u32 %v297, 4294901760
    %v2472 = vsub.f32 %v297, %v2471
    %v2473 = vand.u32 %v2472, 4294901760
    %v2474 = vsub.f32 %v2472, %v2473
    %v2475 = vand.u32 %v2474, 4294901760
    %2476 = vmatpush.msra.mxu0 %v2475
    %v2477 = vand.u32 %v296, 4294901760
    %v2478 = vsub.f32 %v296, %v2477
    %v2479 = vand.u32 %v2478, 4294901760
    %v2480 = vsub.f32 %v2478, %v2479
    %v2481 = vand.u32 %v2480, 4294901760
    %2482 = vmatpush.msra.mxu0 %v2481
    %v2483 = vand.u32 %v295, 4294901760
    %v2484 = vsub.f32 %v295, %v2483
    %v2485 = vand.u32 %v2484, 4294901760
    %v2486 = vsub.f32 %v2484, %v2485
    %v2487 = vand.u32 %v2486, 4294901760
    %2488 = vmatpush.msra.mxu0 %v2487
    %v2489 = vand.u32 %v294, 4294901760
    %v2490 = vsub.f32 %v294, %v2489
    %v2491 = vand.u32 %v2490, 4294901760
    %v2492 = vsub.f32 %v2490, %v2491
    %v2493 = vand.u32 %v2492, 4294901760
    %2494 = vmatpush.msra.mxu0 %v2493
    %v2495 = vand.u32 %v293, 4294901760
    %v2496 = vsub.f32 %v293, %v2495
    %v2497 = vand.u32 %v2496, 4294901760
    %v2498 = vsub.f32 %v2496, %v2497
    %v2499 = vand.u32 %v2498, 4294901760
    %2500 = vmatpush.msra.mxu0 %v2499
    %v2501 = vand.u32 %v292, 4294901760
    %v2502 = vsub.f32 %v292, %v2501
    %v2503 = vand.u32 %v2502, 4294901760
    %v2504 = vsub.f32 %v2502, %v2503
    %v2505 = vand.u32 %v2504, 4294901760
    %2506 = vmatpush.msra.mxu0 %v2505
    %v2507 = vand.u32 %v291, 4294901760
    %v2508 = vsub.f32 %v291, %v2507
    %v2509 = vand.u32 %v2508, 4294901760
    %v2510 = vsub.f32 %v2508, %v2509
    %v2511 = vand.u32 %v2510, 4294901760
    %2512 = vmatpush.msra.mxu0 %v2511
    %v2513 = vand.u32 %v290, 4294901760
    %v2514 = vsub.f32 %v290, %v2513
    %v2515 = vand.u32 %v2514, 4294901760
    %v2516 = vsub.f32 %v2514, %v2515
    %v2517 = vand.u32 %v2516, 4294901760
    %2518 = vmatpush.msra.mxu0 %v2517
    %v2519 = vand.u32 %v289, 4294901760
    %v2520 = vsub.f32 %v289, %v2519
    %v2521 = vand.u32 %v2520, 4294901760
    %v2522 = vsub.f32 %v2520, %v2521
    %v2523 = vand.u32 %v2522, 4294901760
    %2524 = vmatpush.msra.mxu0 %v2523
    %v2525 = vand.u32 %v332, 4294901760
    %2526 = vmatmul.f32.gmra.mxu0 %v2525
    %v2527 = vpop.f32.mrf.mxu0
    %v2528 = vadd.f32 %v2427, %v2527
    %2529 = vdwg.mxu0
    %v2530 = vand.u32 %v304, 4294901760
    %v2531 = vsub.f32 %v304, %v2530
    %2532 = vmatpush.msra.mxu0 %v2531
    %v2533 = vand.u32 %v303, 4294901760
    %v2534 = vsub.f32 %v303, %v2533
    %2535 = vmatpush.msra.mxu0 %v2534
    %v2536 = vand.u32 %v302, 4294901760
    %v2537 = vsub.f32 %v302, %v2536
    %2538 = vmatpush.msra.mxu0 %v2537
    %v2539 = vand.u32 %v301, 4294901760
    %v2540 = vsub.f32 %v301, %v2539
    %2541 = vmatpush.msra.mxu0 %v2540
    %v2542 = vand.u32 %v300, 4294901760
    %v2543 = vsub.f32 %v300, %v2542
    %2544 = vmatpush.msra.mxu0 %v2543
    %v2545 = vand.u32 %v299, 4294901760
    %v2546 = vsub.f32 %v299, %v2545
    %2547 = vmatpush.msra.mxu0 %v2546
    %v2548 = vand.u32 %v298, 4294901760
    %v2549 = vsub.f32 %v298, %v2548
    %2550 = vmatpush.msra.mxu0 %v2549
    %v2551 = vand.u32 %v297, 4294901760
    %v2552 = vsub.f32 %v297, %v2551
    %2553 = vmatpush.msra.mxu0 %v2552
    %v2554 = vand.u32 %v296, 4294901760
    %v2555 = vsub.f32 %v296, %v2554
    %2556 = vmatpush.msra.mxu0 %v2555
    %v2557 = vand.u32 %v295, 4294901760
    %v2558 = vsub.f32 %v295, %v2557
    %2559 = vmatpush.msra.mxu0 %v2558
    %v2560 = vand.u32 %v294, 4294901760
    %v2561 = vsub.f32 %v294, %v2560
    %2562 = vmatpush.msra.mxu0 %v2561
    %v2563 = vand.u32 %v293, 4294901760
    %v2564 = vsub.f32 %v293, %v2563
    %2565 = vmatpush.msra.mxu0 %v2564
    %v2566 = vand.u32 %v292, 4294901760
    %v2567 = vsub.f32 %v292, %v2566
    %2568 = vmatpush.msra.mxu0 %v2567
    %v2569 = vand.u32 %v291, 4294901760
    %v2570 = vsub.f32 %v291, %v2569
    %2571 = vmatpush.msra.mxu0 %v2570
    %v2572 = vand.u32 %v290, 4294901760
    %v2573 = vsub.f32 %v290, %v2572
    %2574 = vmatpush.msra.mxu0 %v2573
    %v2575 = vand.u32 %v289, 4294901760
    %v2576 = vsub.f32 %v289, %v2575
    %2577 = vmatpush.msra.mxu0 %v2576
    %v2578 = vand.u32 %v332, 4294901760
    %v2579 = vsub.f32 %v332, %v2578
    %2580 = vmatmul.f32.gmra.mxu0 %v2579
    %v2581 = vpop.f32.mrf.mxu0
    %v2582 = vadd.f32 %v2528, %v2581
    %2583 = vdwg.mxu0
    %v2584 = vand.u32 %v304, 4294901760
    %2585 = vmatpush.msra.mxu0 %v2584
    %v2586 = vand.u32 %v303, 4294901760
    %2587 = vmatpush.msra.mxu0 %v2586
    %v2588 = vand.u32 %v302, 4294901760
    %2589 = vmatpush.msra.mxu0 %v2588
    %v2590 = vand.u32 %v301, 4294901760
    %2591 = vmatpush.msra.mxu0 %v2590
    %v2592 = vand.u32 %v300, 4294901760
    %2593 = vmatpush.msra.mxu0 %v2592
    %v2594 = vand.u32 %v299, 4294901760
    %2595 = vmatpush.msra.mxu0 %v2594
    %v2596 = vand.u32 %v298, 4294901760
    %2597 = vmatpush.msra.mxu0 %v2596
    %v2598 = vand.u32 %v297, 4294901760
    %2599 = vmatpush.msra.mxu0 %v2598
    %v2600 = vand.u32 %v296, 4294901760
    %2601 = vmatpush.msra.mxu0 %v2600
    %v2602 = vand.u32 %v295, 4294901760
    %2603 = vmatpush.msra.mxu0 %v2602
    %v2604 = vand.u32 %v294, 4294901760
    %2605 = vmatpush.msra.mxu0 %v2604
    %v2606 = vand.u32 %v293, 4294901760
    %2607 = vmatpush.msra.mxu0 %v2606
    %v2608 = vand.u32 %v292, 4294901760
    %2609 = vmatpush.msra.mxu0 %v2608
    %v2610 = vand.u32 %v291, 4294901760
    %2611 = vmatpush.msra.mxu0 %v2610
    %v2612 = vand.u32 %v290, 4294901760
    %2613 = vmatpush.msra.mxu0 %v2612
    %v2614 = vand.u32 %v289, 4294901760
    %2615 = vmatpush.msra.mxu0 %v2614
    %v2616 = vand.u32 %v332, 4294901760
    %v2617 = vsub.f32 %v332, %v2616
    %v2618 = vand.u32 %v2617, 4294901760
    %2619 = vmatmul.f32.gmra.mxu0 %v2618
    %v2620 = vpop.f32.mrf.mxu0
    %v2621 = vadd.f32 %v2582, %v2620
    %2622 = vdwg.mxu0
    %v2623 = vand.u32 %v304, 4294901760
    %v2624 = vsub.f32 %v304, %v2623
    %v2625 = vand.u32 %v2624, 4294901760
    %2626 = vmatpush.msra.mxu0 %v2625
    %v2627 = vand.u32 %v303, 4294901760
    %v2628 = vsub.f32 %v303, %v2627
    %v2629 = vand.u32 %v2628, 4294901760
    %2630 = vmatpush.msra.mxu0 %v2629
    %v2631 = vand.u32 %v302, 4294901760
    %v2632 = vsub.f32 %v302, %v2631
    %v2633 = vand.u32 %v2632, 4294901760
    %2634 = vmatpush.msra.mxu0 %v2633
    %v2635 = vand.u32 %v301, 4294901760
    %v2636 = vsub.f32 %v301, %v2635
    %v2637 = vand.u32 %v2636, 4294901760
    %2638 = vmatpush.msra.mxu0 %v2637
    %v2639 = vand.u32 %v300, 4294901760
    %v2640 = vsub.f32 %v300, %v2639
    %v2641 = vand.u32 %v2640, 4294901760
    %2642 = vmatpush.msra.mxu0 %v2641
    %v2643 = vand.u32 %v299, 4294901760
    %v2644 = vsub.f32 %v299, %v2643
    %v2645 = vand.u32 %v2644, 4294901760
    %2646 = vmatpush.msra.mxu0 %v2645
    %v2647 = vand.u32 %v298, 4294901760
    %v2648 = vsub.f32 %v298, %v2647
    %v2649 = vand.u32 %v2648, 4294901760
    %2650 = vmatpush.msra.mxu0 %v2649
    %v2651 = vand.u32 %v297, 4294901760
    %v2652 = vsub.f32 %v297, %v2651
    %v2653 = vand.u32 %v2652, 4294901760
    %2654 = vmatpush.msra.mxu0 %v2653
    %v2655 = vand.u32 %v296, 4294901760
    %v2656 = vsub.f32 %v296, %v2655
    %v2657 = vand.u32 %v2656, 4294901760
    %2658 = vmatpush.msra.mxu0 %v2657
    %v2659 = vand.u32 %v295, 4294901760
    %v2660 = vsub.f32 %v295, %v2659
    %v2661 = vand.u32 %v2660, 4294901760
    %2662 = vmatpush.msra.mxu0 %v2661
    %v2663 = vand.u32 %v294, 4294901760
    %v2664 = vsub.f32 %v294, %v2663
    %v2665 = vand.u32 %v2664, 4294901760
    %2666 = vmatpush.msra.mxu0 %v2665
    %v2667 = vand.u32 %v293, 4294901760
    %v2668 = vsub.f32 %v293, %v2667
    %v2669 = vand.u32 %v2668, 4294901760
    %2670 = vmatpush.msra.mxu0 %v2669
    %v2671 = vand.u32 %v292, 4294901760
    %v2672 = vsub.f32 %v292, %v2671
    %v2673 = vand.u32 %v2672, 4294901760
    %2674 = vmatpush.msra.mxu0 %v2673
    %v2675 = vand.u32 %v291, 4294901760
    %v2676 = vsub.f32 %v291, %v2675
    %v2677 = vand.u32 %v2676, 4294901760
    %2678 = vmatpush.msra.mxu0 %v2677
    %v2679 = vand.u32 %v290, 4294901760
    %v2680 = vsub.f32 %v290, %v2679
    %v2681 = vand.u32 %v2680, 4294901760
    %2682 = vmatpush.msra.mxu0 %v2681
    %v2683 = vand.u32 %v289, 4294901760
    %v2684 = vsub.f32 %v289, %v2683
    %v2685 = vand.u32 %v2684, 4294901760
    %2686 = vmatpush.msra.mxu0 %v2685
    %v2687 = vand.u32 %v332, 4294901760
    %2688 = vmatmul.f32.gmra.mxu0 %v2687
    %v2689 = vpop.f32.mrf.mxu0
    %v2690 = vadd.f32 %v2621, %v2689
    %2691 = vdwg.mxu0
    %v2692 = vand.u32 %v304, 4294901760
    %2693 = vmatpush.msra.mxu0 %v2692
    %v2694 = vand.u32 %v303, 4294901760
    %2695 = vmatpush.msra.mxu0 %v2694
    %v2696 = vand.u32 %v302, 4294901760
    %2697 = vmatpush.msra.mxu0 %v2696
    %v2698 = vand.u32 %v301, 4294901760
    %2699 = vmatpush.msra.mxu0 %v2698
    %v2700 = vand.u32 %v300, 4294901760
    %2701 = vmatpush.msra.mxu0 %v2700
    %v2702 = vand.u32 %v299, 4294901760
    %2703 = vmatpush.msra.mxu0 %v2702
    %v2704 = vand.u32 %v298, 4294901760
    %2705 = vmatpush.msra.mxu0 %v2704
    %v2706 = vand.u32 %v297, 4294901760
    %2707 = vmatpush.msra.mxu0 %v2706
    %v2708 = vand.u32 %v296, 4294901760
    %2709 = vmatpush.msra.mxu0 %v2708
    %v2710 = vand.u32 %v295, 4294901760
    %2711 = vmatpush.msra.mxu0 %v2710
    %v2712 = vand.u32 %v294, 4294901760
    %2713 = vmatpush.msra.mxu0 %v2712
    %v2714 = vand.u32 %v293, 4294901760
    %2715 = vmatpush.msra.mxu0 %v2714
    %v2716 = vand.u32 %v292, 4294901760
    %2717 = vmatpush.msra.mxu0 %v2716
    %v2718 = vand.u32 %v291, 4294901760
    %2719 = vmatpush.msra.mxu0 %v2718
    %v2720 = vand.u32 %v290, 4294901760
    %2721 = vmatpush.msra.mxu0 %v2720
    %v2722 = vand.u32 %v289, 4294901760
    %2723 = vmatpush.msra.mxu0 %v2722
    %v2724 = vand.u32 %v332, 4294901760
    %2725 = vmatmul.f32.gmra.mxu0 %v2724
    %v2726 = vpop.f32.mrf.mxu0
    %v2727 = vadd.f32 %v2690, %v2726
    %2728 = vdwg.mxu0
    %v2729 = vand.u32 %v320, 4294901760
    %2730 = vmatpush.msra.mxu0 %v2729
    %v2731 = vand.u32 %v319, 4294901760
    %2732 = vmatpush.msra.mxu0 %v2731
    %v2733 = vand.u32 %v318, 4294901760
    %2734 = vmatpush.msra.mxu0 %v2733
    %v2735 = vand.u32 %v317, 4294901760
    %2736 = vmatpush.msra.mxu0 %v2735
    %v2737 = vand.u32 %v316, 4294901760
    %2738 = vmatpush.msra.mxu0 %v2737
    %v2739 = vand.u32 %v315, 4294901760
    %2740 = vmatpush.msra.mxu0 %v2739
    %v2741 = vand.u32 %v314, 4294901760
    %2742 = vmatpush.msra.mxu0 %v2741
    %v2743 = vand.u32 %v313, 4294901760
    %2744 = vmatpush.msra.mxu0 %v2743
    %v2745 = vand.u32 %v312, 4294901760
    %2746 = vmatpush.msra.mxu0 %v2745
    %v2747 = vand.u32 %v311, 4294901760
    %2748 = vmatpush.msra.mxu0 %v2747
    %v2749 = vand.u32 %v310, 4294901760
    %2750 = vmatpush.msra.mxu0 %v2749
    %v2751 = vand.u32 %v309, 4294901760
    %2752 = vmatpush.msra.mxu0 %v2751
    %v2753 = vand.u32 %v308, 4294901760
    %2754 = vmatpush.msra.mxu0 %v2753
    %v2755 = vand.u32 %v307, 4294901760
    %2756 = vmatpush.msra.mxu0 %v2755
    %v2757 = vand.u32 %v306, 4294901760
    %2758 = vmatpush.msra.mxu0 %v2757
    %v2759 = vand.u32 %v305, 4294901760
    %2760 = vmatpush.msra.mxu0 %v2759
    %v2761 = vand.u32 %v333, 4294901760
    %v2762 = vsub.f32 %v333, %v2761
    %v2763 = vand.u32 %v2762, 4294901760
    %v2764 = vsub.f32 %v2762, %v2763
    %v2765 = vand.u32 %v2764, 4294901760
    %2766 = vmatmul.f32.gmra.mxu0 %v2765
    %v2767 = vpop.f32.mrf.mxu0
    %v2768 = vadd.f32 %v2727, %v2767
    %2769 = vdwg.mxu0
    %v2770 = vand.u32 %v320, 4294901760
    %v2771 = vsub.f32 %v320, %v2770
    %v2772 = vand.u32 %v2771, 4294901760
    %v2773 = vsub.f32 %v2771, %v2772
    %v2774 = vand.u32 %v2773, 4294901760
    %2775 = vmatpush.msra.mxu0 %v2774
    %v2776 = vand.u32 %v319, 4294901760
    %v2777 = vsub.f32 %v319, %v2776
    %v2778 = vand.u32 %v2777, 4294901760
    %v2779 = vsub.f32 %v2777, %v2778
    %v2780 = vand.u32 %v2779, 4294901760
    %2781 = vmatpush.msra.mxu0 %v2780
    %v2782 = vand.u32 %v318, 4294901760
    %v2783 = vsub.f32 %v318, %v2782
    %v2784 = vand.u32 %v2783, 4294901760
    %v2785 = vsub.f32 %v2783, %v2784
    %v2786 = vand.u32 %v2785, 4294901760
    %2787 = vmatpush.msra.mxu0 %v2786
    %v2788 = vand.u32 %v317, 4294901760
    %v2789 = vsub.f32 %v317, %v2788
    %v2790 = vand.u32 %v2789, 4294901760
    %v2791 = vsub.f32 %v2789, %v2790
    %v2792 = vand.u32 %v2791, 4294901760
    %2793 = vmatpush.msra.mxu0 %v2792
    %v2794 = vand.u32 %v316, 4294901760
    %v2795 = vsub.f32 %v316, %v2794
    %v2796 = vand.u32 %v2795, 4294901760
    %v2797 = vsub.f32 %v2795, %v2796
    %v2798 = vand.u32 %v2797, 4294901760
    %2799 = vmatpush.msra.mxu0 %v2798
    %v2800 = vand.u32 %v315, 4294901760
    %v2801 = vsub.f32 %v315, %v2800
    %v2802 = vand.u32 %v2801, 4294901760
    %v2803 = vsub.f32 %v2801, %v2802
    %v2804 = vand.u32 %v2803, 4294901760
    %2805 = vmatpush.msra.mxu0 %v2804
    %v2806 = vand.u32 %v314, 4294901760
    %v2807 = vsub.f32 %v314, %v2806
    %v2808 = vand.u32 %v2807, 4294901760
    %v2809 = vsub.f32 %v2807, %v2808
    %v2810 = vand.u32 %v2809, 4294901760
    %2811 = vmatpush.msra.mxu0 %v2810
    %v2812 = vand.u32 %v313, 4294901760
    %v2813 = vsub.f32 %v313, %v2812
    %v2814 = vand.u32 %v2813, 4294901760
    %v2815 = vsub.f32 %v2813, %v2814
    %v2816 = vand.u32 %v2815, 4294901760
    %2817 = vmatpush.msra.mxu0 %v2816
    %v2818 = vand.u32 %v312, 4294901760
    %v2819 = vsub.f32 %v312, %v2818
    %v2820 = vand.u32 %v2819, 4294901760
    %v2821 = vsub.f32 %v2819, %v2820
    %v2822 = vand.u32 %v2821, 4294901760
    %2823 = vmatpush.msra.mxu0 %v2822
    %v2824 = vand.u32 %v311, 4294901760
    %v2825 = vsub.f32 %v311, %v2824
    %v2826 = vand.u32 %v2825, 4294901760
    %v2827 = vsub.f32 %v2825, %v2826
    %v2828 = vand.u32 %v2827, 4294901760
    %2829 = vmatpush.msra.mxu0 %v2828
    %v2830 = vand.u32 %v310, 4294901760
    %v2831 = vsub.f32 %v310, %v2830
    %v2832 = vand.u32 %v2831, 4294901760
    %v2833 = vsub.f32 %v2831, %v2832
    %v2834 = vand.u32 %v2833, 4294901760
    %2835 = vmatpush.msra.mxu0 %v2834
    %v2836 = vand.u32 %v309, 4294901760
    %v2837 = vsub.f32 %v309, %v2836
    %v2838 = vand.u32 %v2837, 4294901760
    %v2839 = vsub.f32 %v2837, %v2838
    %v2840 = vand.u32 %v2839, 4294901760
    %2841 = vmatpush.msra.mxu0 %v2840
    %v2842 = vand.u32 %v308, 4294901760
    %v2843 = vsub.f32 %v308, %v2842
    %v2844 = vand.u32 %v2843, 4294901760
    %v2845 = vsub.f32 %v2843, %v2844
    %v2846 = vand.u32 %v2845, 4294901760
    %2847 = vmatpush.msra.mxu0 %v2846
    %v2848 = vand.u32 %v307, 4294901760
    %v2849 = vsub.f32 %v307, %v2848
    %v2850 = vand.u32 %v2849, 4294901760
    %v2851 = vsub.f32 %v2849, %v2850
    %v2852 = vand.u32 %v2851, 4294901760
    %2853 = vmatpush.msra.mxu0 %v2852
    %v2854 = vand.u32 %v306, 4294901760
    %v2855 = vsub.f32 %v306, %v2854
    %v2856 = vand.u32 %v2855, 4294901760
    %v2857 = vsub.f32 %v2855, %v2856
    %v2858 = vand.u32 %v2857, 4294901760
    %2859 = vmatpush.msra.mxu0 %v2858
    %v2860 = vand.u32 %v305, 4294901760
    %v2861 = vsub.f32 %v305, %v2860
    %v2862 = vand.u32 %v2861, 4294901760
    %v2863 = vsub.f32 %v2861, %v2862
    %v2864 = vand.u32 %v2863, 4294901760
    %2865 = vmatpush.msra.mxu0 %v2864
    %v2866 = vand.u32 %v333, 4294901760
    %2867 = vmatmul.f32.gmra.mxu0 %v2866
    %v2868 = vpop.f32.mrf.mxu0
    %v2869 = vadd.f32 %v2768, %v2868
    %2870 = vdwg.mxu0
    %v2871 = vand.u32 %v320, 4294901760
    %v2872 = vsub.f32 %v320, %v2871
    %2873 = vmatpush.msra.mxu0 %v2872
    %v2874 = vand.u32 %v319, 4294901760
    %v2875 = vsub.f32 %v319, %v2874
    %2876 = vmatpush.msra.mxu0 %v2875
    %v2877 = vand.u32 %v318, 4294901760
    %v2878 = vsub.f32 %v318, %v2877
    %2879 = vmatpush.msra.mxu0 %v2878
    %v2880 = vand.u32 %v317, 4294901760
    %v2881 = vsub.f32 %v317, %v2880
    %2882 = vmatpush.msra.mxu0 %v2881
    %v2883 = vand.u32 %v316, 4294901760
    %v2884 = vsub.f32 %v316, %v2883
    %2885 = vmatpush.msra.mxu0 %v2884
    %v2886 = vand.u32 %v315, 4294901760
    %v2887 = vsub.f32 %v315, %v2886
    %2888 = vmatpush.msra.mxu0 %v2887
    %v2889 = vand.u32 %v314, 4294901760
    %v2890 = vsub.f32 %v314, %v2889
    %2891 = vmatpush.msra.mxu0 %v2890
    %v2892 = vand.u32 %v313, 4294901760
    %v2893 = vsub.f32 %v313, %v2892
    %2894 = vmatpush.msra.mxu0 %v2893
    %v2895 = vand.u32 %v312, 4294901760
    %v2896 = vsub.f32 %v312, %v2895
    %2897 = vmatpush.msra.mxu0 %v2896
    %v2898 = vand.u32 %v311, 4294901760
    %v2899 = vsub.f32 %v311, %v2898
    %2900 = vmatpush.msra.mxu0 %v2899
    %v2901 = vand.u32 %v310, 4294901760
    %v2902 = vsub.f32 %v310, %v2901
    %2903 = vmatpush.msra.mxu0 %v2902
    %v2904 = vand.u32 %v309, 4294901760
    %v2905 = vsub.f32 %v309, %v2904
    %2906 = vmatpush.msra.mxu0 %v2905
    %v2907 = vand.u32 %v308, 4294901760
    %v2908 = vsub.f32 %v308, %v2907
    %2909 = vmatpush.msra.mxu0 %v2908
    %v2910 = vand.u32 %v307, 4294901760
    %v2911 = vsub.f32 %v307, %v2910
    %2912 = vmatpush.msra.mxu0 %v2911
    %v2913 = vand.u32 %v306, 4294901760
    %v2914 = vsub.f32 %v306, %v2913
    %2915 = vmatpush.msra.mxu0 %v2914
    %v2916 = vand.u32 %v305, 4294901760
    %v2917 = vsub.f32 %v305, %v2916
    %2918 = vmatpush.msra.mxu0 %v2917
    %v2919 = vand.u32 %v333, 4294901760
    %v2920 = vsub.f32 %v333, %v2919
    %2921 = vmatmul.f32.gmra.mxu0 %v2920
    %v2922 = vpop.f32.mrf.mxu0
    %v2923 = vadd.f32 %v2869, %v2922
    %2924 = vdwg.mxu0
    %v2925 = vand.u32 %v320, 4294901760
    %2926 = vmatpush.msra.mxu0 %v2925
    %v2927 = vand.u32 %v319, 4294901760
    %2928 = vmatpush.msra.mxu0 %v2927
    %v2929 = vand.u32 %v318, 4294901760
    %2930 = vmatpush.msra.mxu0 %v2929
    %v2931 = vand.u32 %v317, 4294901760
    %2932 = vmatpush.msra.mxu0 %v2931
    %v2933 = vand.u32 %v316, 4294901760
    %2934 = vmatpush.msra.mxu0 %v2933
    %v2935 = vand.u32 %v315, 4294901760
    %2936 = vmatpush.msra.mxu0 %v2935
    %v2937 = vand.u32 %v314, 4294901760
    %2938 = vmatpush.msra.mxu0 %v2937
    %v2939 = vand.u32 %v313, 4294901760
    %2940 = vmatpush.msra.mxu0 %v2939
    %v2941 = vand.u32 %v312, 4294901760
    %2942 = vmatpush.msra.mxu0 %v2941
    %v2943 = vand.u32 %v311, 4294901760
    %2944 = vmatpush.msra.mxu0 %v2943
    %v2945 = vand.u32 %v310, 4294901760
    %2946 = vmatpush.msra.mxu0 %v2945
    %v2947 = vand.u32 %v309, 4294901760
    %2948 = vmatpush.msra.mxu0 %v2947
    %v2949 = vand.u32 %v308, 4294901760
    %2950 = vmatpush.msra.mxu0 %v2949
    %v2951 = vand.u32 %v307, 4294901760
    %2952 = vmatpush.msra.mxu0 %v2951
    %v2953 = vand.u32 %v306, 4294901760
    %2954 = vmatpush.msra.mxu0 %v2953
    %v2955 = vand.u32 %v305, 4294901760
    %2956 = vmatpush.msra.mxu0 %v2955
    %v2957 = vand.u32 %v333, 4294901760
    %v2958 = vsub.f32 %v333, %v2957
    %v2959 = vand.u32 %v2958, 4294901760
    %2960 = vmatmul.f32.gmra.mxu0 %v2959
    %v2961 = vpop.f32.mrf.mxu0
    %v2962 = vadd.f32 %v2923, %v2961
    %2963 = vdwg.mxu0
    %v2964 = vand.u32 %v320, 4294901760
    %v2965 = vsub.f32 %v320, %v2964
    %v2966 = vand.u32 %v2965, 4294901760
    %2967 = vmatpush.msra.mxu0 %v2966
    %v2968 = vand.u32 %v319, 4294901760
    %v2969 = vsub.f32 %v319, %v2968
    %v2970 = vand.u32 %v2969, 4294901760
    %2971 = vmatpush.msra.mxu0 %v2970
    %v2972 = vand.u32 %v318, 4294901760
    %v2973 = vsub.f32 %v318, %v2972
    %v2974 = vand.u32 %v2973, 4294901760
    %2975 = vmatpush.msra.mxu0 %v2974
    %v2976 = vand.u32 %v317, 4294901760
    %v2977 = vsub.f32 %v317, %v2976
    %v2978 = vand.u32 %v2977, 4294901760
    %2979 = vmatpush.msra.mxu0 %v2978
    %v2980 = vand.u32 %v316, 4294901760
    %v2981 = vsub.f32 %v316, %v2980
    %v2982 = vand.u32 %v2981, 4294901760
    %2983 = vmatpush.msra.mxu0 %v2982
    %v2984 = vand.u32 %v315, 4294901760
    %v2985 = vsub.f32 %v315, %v2984
    %v2986 = vand.u32 %v2985, 4294901760
    %2987 = vmatpush.msra.mxu0 %v2986
    %v2988 = vand.u32 %v314, 4294901760
    %v2989 = vsub.f32 %v314, %v2988
    %v2990 = vand.u32 %v2989, 4294901760
    %2991 = vmatpush.msra.mxu0 %v2990
    %v2992 = vand.u32 %v313, 4294901760
    %v2993 = vsub.f32 %v313, %v2992
    %v2994 = vand.u32 %v2993, 4294901760
    %2995 = vmatpush.msra.mxu0 %v2994
    %v2996 = vand.u32 %v312, 4294901760
    %v2997 = vsub.f32 %v312, %v2996
    %v2998 = vand.u32 %v2997, 4294901760
    %2999 = vmatpush.msra.mxu0 %v2998
    %v3000 = vand.u32 %v311, 4294901760
    %v3001 = vsub.f32 %v311, %v3000
    %v3002 = vand.u32 %v3001, 4294901760
    %3003 = vmatpush.msra.mxu0 %v3002
    %v3004 = vand.u32 %v310, 4294901760
    %v3005 = vsub.f32 %v310, %v3004
    %v3006 = vand.u32 %v3005, 4294901760
    %3007 = vmatpush.msra.mxu0 %v3006
    %v3008 = vand.u32 %v309, 4294901760
    %v3009 = vsub.f32 %v309, %v3008
    %v3010 = vand.u32 %v3009, 4294901760
    %3011 = vmatpush.msra.mxu0 %v3010
    %v3012 = vand.u32 %v308, 4294901760
    %v3013 = vsub.f32 %v308, %v3012
    %v3014 = vand.u32 %v3013, 4294901760
    %3015 = vmatpush.msra.mxu0 %v3014
    %v3016 = vand.u32 %v307, 4294901760
    %v3017 = vsub.f32 %v307, %v3016
    %v3018 = vand.u32 %v3017, 4294901760
    %3019 = vmatpush.msra.mxu0 %v3018
    %v3020 = vand.u32 %v306, 4294901760
    %v3021 = vsub.f32 %v306, %v3020
    %v3022 = vand.u32 %v3021, 4294901760
    %3023 = vmatpush.msra.mxu0 %v3022
    %v3024 = vand.u32 %v305, 4294901760
    %v3025 = vsub.f32 %v305, %v3024
    %v3026 = vand.u32 %v3025, 4294901760
    %3027 = vmatpush.msra.mxu0 %v3026
    %v3028 = vand.u32 %v333, 4294901760
    %3029 = vmatmul.f32.gmra.mxu0 %v3028
    %v3030 = vpop.f32.mrf.mxu0
    %v3031 = vadd.f32 %v2962, %v3030
    %3032 = vdwg.mxu0
    %v3033 = vand.u32 %v320, 4294901760
    %3034 = vmatpush.msra.mxu0 %v3033
    %v3035 = vand.u32 %v319, 4294901760
    %3036 = vmatpush.msra.mxu0 %v3035
    %v3037 = vand.u32 %v318, 4294901760
    %3038 = vmatpush.msra.mxu0 %v3037
    %v3039 = vand.u32 %v317, 4294901760
    %3040 = vmatpush.msra.mxu0 %v3039
    %v3041 = vand.u32 %v316, 4294901760
    %3042 = vmatpush.msra.mxu0 %v3041
    %v3043 = vand.u32 %v315, 4294901760
    %3044 = vmatpush.msra.mxu0 %v3043
    %v3045 = vand.u32 %v314, 4294901760
    %3046 = vmatpush.msra.mxu0 %v3045
    %v3047 = vand.u32 %v313, 4294901760
    %3048 = vmatpush.msra.mxu0 %v3047
    %v3049 = vand.u32 %v312, 4294901760
    %3050 = vmatpush.msra.mxu0 %v3049
    %v3051 = vand.u32 %v311, 4294901760
    %3052 = vmatpush.msra.mxu0 %v3051
    %v3053 = vand.u32 %v310, 4294901760
    %3054 = vmatpush.msra.mxu0 %v3053
    %v3055 = vand.u32 %v309, 4294901760
    %3056 = vmatpush.msra.mxu0 %v3055
    %v3057 = vand.u32 %v308, 4294901760
    %3058 = vmatpush.msra.mxu0 %v3057
    %v3059 = vand.u32 %v307, 4294901760
    %3060 = vmatpush.msra.mxu0 %v3059
    %v3061 = vand.u32 %v306, 4294901760
    %3062 = vmatpush.msra.mxu0 %v3061
    %v3063 = vand.u32 %v305, 4294901760
    %3064 = vmatpush.msra.mxu0 %v3063
    %v3065 = vand.u32 %v333, 4294901760
    %3066 = vmatmul.f32.gmra.mxu0 %v3065
    %v3067 = vpop.f32.mrf.mxu0
    %v3068 = vadd.f32 %v3031, %v3067
    %3069 = vdwg.mxu0
    %3072 = vst [vmem:[#allocation1] ss:$4 sm:$0xff] %v61
    %s3073 = scalar_lea.vmem [#allocation1], 32
    %3074 = vst [vmem:[%s3073] ss:$4 sm:$0xff] %v62
    %v3075 = vld.sshfl [vmem:[#allocation1] sm:$0xff pattern:$0x73625140]
    %v3076 = vld.sshfl [vmem:[#allocation1 + $0x8] sm:$0xff pattern:$0x73625140]
    %v3077 = vld.sshfl [vmem:[#allocation1 + $0x10] sm:$0xff pattern:$0x73625140]
    %v3078 = vld.sshfl [vmem:[#allocation1 + $0x18] sm:$0xff pattern:$0x73625140]
    %v3079 = vld.sshfl [vmem:[#allocation1 + $0x20] sm:$0xff pattern:$0x73625140]
    %v3080 = vld.sshfl [vmem:[#allocation1 + $0x28] sm:$0xff pattern:$0x73625140]
    %v3081 = vld.sshfl [vmem:[#allocation1 + $0x30] sm:$0xff pattern:$0x73625140]
    %v3082 = vld.sshfl [vmem:[#allocation1 + $0x38] sm:$0xff pattern:$0x73625140]
    %v3091 = vand.u32 %v78, 4294901760
    %3092 = vmatpush.msra.mxu0 %v3091
    %v3093 = vand.u32 %v77, 4294901760
    %3094 = vmatpush.msra.mxu0 %v3093
    %v3095 = vand.u32 %v76, 4294901760
    %3096 = vmatpush.msra.mxu0 %v3095
    %v3097 = vand.u32 %v75, 4294901760
    %3098 = vmatpush.msra.mxu0 %v3097
    %v3099 = vand.u32 %v74, 4294901760
    %3100 = vmatpush.msra.mxu0 %v3099
    %v3101 = vand.u32 %v73, 4294901760
    %3102 = vmatpush.msra.mxu0 %v3101
    %v3103 = vand.u32 %v72, 4294901760
    %3104 = vmatpush.msra.mxu0 %v3103
    %v3105 = vand.u32 %v71, 4294901760
    %3106 = vmatpush.msra.mxu0 %v3105
    %v3107 = vand.u32 %v70, 4294901760
    %3108 = vmatpush.msra.mxu0 %v3107
    %v3109 = vand.u32 %v69, 4294901760
    %3110 = vmatpush.msra.mxu0 %v3109
    %v3111 = vand.u32 %v68, 4294901760
    %3112 = vmatpush.msra.mxu0 %v3111
    %v3113 = vand.u32 %v67, 4294901760
    %3114 = vmatpush.msra.mxu0 %v3113
    %v3115 = vand.u32 %v66, 4294901760
    %3116 = vmatpush.msra.mxu0 %v3115
    %v3117 = vand.u32 %v65, 4294901760
    %3118 = vmatpush.msra.mxu0 %v3117
    %v3119 = vand.u32 %v64, 4294901760
    %3120 = vmatpush.msra.mxu0 %v3119
    %v3121 = vand.u32 %v63, 4294901760
    %3122 = vmatpush.msra.mxu0 %v3121
    %v3123 = vand.u32 %v3075, 4294901760
    %v3124 = vsub.f32 %v3075, %v3123
    %v3125 = vand.u32 %v3124, 4294901760
    %v3126 = vsub.f32 %v3124, %v3125
    %v3127 = vand.u32 %v3126, 4294901760
    %3128 = vmatmul.f32.gmra.mxu0 %v3127
    %v3129 = vpop.f32.mrf.mxu0
    %v3130 = vadd.f32 %v3068, %v3129
    %3131 = vdwg.mxu0
    %v3132 = vand.u32 %v78, 4294901760
    %v3133 = vsub.f32 %v78, %v3132
    %v3134 = vand.u32 %v3133, 4294901760
    %v3135 = vsub.f32 %v3133, %v3134
    %v3136 = vand.u32 %v3135, 4294901760
    %3137 = vmatpush.msra.mxu0 %v3136
    %v3138 = vand.u32 %v77, 4294901760
    %v3139 = vsub.f32 %v77, %v3138
    %v3140 = vand.u32 %v3139, 4294901760
    %v3141 = vsub.f32 %v3139, %v3140
    %v3142 = vand.u32 %v3141, 4294901760
    %3143 = vmatpush.msra.mxu0 %v3142
    %v3144 = vand.u32 %v76, 4294901760
    %v3145 = vsub.f32 %v76, %v3144
    %v3146 = vand.u32 %v3145, 4294901760
    %v3147 = vsub.f32 %v3145, %v3146
    %v3148 = vand.u32 %v3147, 4294901760
    %3149 = vmatpush.msra.mxu0 %v3148
    %v3150 = vand.u32 %v75, 4294901760
    %v3151 = vsub.f32 %v75, %v3150
    %v3152 = vand.u32 %v3151, 4294901760
    %v3153 = vsub.f32 %v3151, %v3152
    %v3154 = vand.u32 %v3153, 4294901760
    %3155 = vmatpush.msra.mxu0 %v3154
    %v3156 = vand.u32 %v74, 4294901760
    %v3157 = vsub.f32 %v74, %v3156
    %v3158 = vand.u32 %v3157, 4294901760
    %v3159 = vsub.f32 %v3157, %v3158
    %v3160 = vand.u32 %v3159, 4294901760
    %3161 = vmatpush.msra.mxu0 %v3160
    %v3162 = vand.u32 %v73, 4294901760
    %v3163 = vsub.f32 %v73, %v3162
    %v3164 = vand.u32 %v3163, 4294901760
    %v3165 = vsub.f32 %v3163, %v3164
    %v3166 = vand.u32 %v3165, 4294901760
    %3167 = vmatpush.msra.mxu0 %v3166
    %v3168 = vand.u32 %v72, 4294901760
    %v3169 = vsub.f32 %v72, %v3168
    %v3170 = vand.u32 %v3169, 4294901760
    %v3171 = vsub.f32 %v3169, %v3170
    %v3172 = vand.u32 %v3171, 4294901760
    %3173 = vmatpush.msra.mxu0 %v3172
    %v3174 = vand.u32 %v71, 4294901760
    %v3175 = vsub.f32 %v71, %v3174
    %v3176 = vand.u32 %v3175, 4294901760
    %v3177 = vsub.f32 %v3175, %v3176
    %v3178 = vand.u32 %v3177, 4294901760
    %3179 = vmatpush.msra.mxu0 %v3178
    %v3180 = vand.u32 %v70, 4294901760
    %v3181 = vsub.f32 %v70, %v3180
    %v3182 = vand.u32 %v3181, 4294901760
    %v3183 = vsub.f32 %v3181, %v3182
    %v3184 = vand.u32 %v3183, 4294901760
    %3185 = vmatpush.msra.mxu0 %v3184
    %v3186 = vand.u32 %v69, 4294901760
    %v3187 = vsub.f32 %v69, %v3186
    %v3188 = vand.u32 %v3187, 4294901760
    %v3189 = vsub.f32 %v3187, %v3188
    %v3190 = vand.u32 %v3189, 4294901760
    %3191 = vmatpush.msra.mxu0 %v3190
    %v3192 = vand.u32 %v68, 4294901760
    %v3193 = vsub.f32 %v68, %v3192
    %v3194 = vand.u32 %v3193, 4294901760
    %v3195 = vsub.f32 %v3193, %v3194
    %v3196 = vand.u32 %v3195, 4294901760
    %3197 = vmatpush.msra.mxu0 %v3196
    %v3198 = vand.u32 %v67, 4294901760
    %v3199 = vsub.f32 %v67, %v3198
    %v3200 = vand.u32 %v3199, 4294901760
    %v3201 = vsub.f32 %v3199, %v3200
    %v3202 = vand.u32 %v3201, 4294901760
    %3203 = vmatpush.msra.mxu0 %v3202
    %v3204 = vand.u32 %v66, 4294901760
    %v3205 = vsub.f32 %v66, %v3204
    %v3206 = vand.u32 %v3205, 4294901760
    %v3207 = vsub.f32 %v3205, %v3206
    %v3208 = vand.u32 %v3207, 4294901760
    %3209 = vmatpush.msra.mxu0 %v3208
    %v3210 = vand.u32 %v65, 4294901760
    %v3211 = vsub.f32 %v65, %v3210
    %v3212 = vand.u32 %v3211, 4294901760
    %v3213 = vsub.f32 %v3211, %v3212
    %v3214 = vand.u32 %v3213, 4294901760
    %3215 = vmatpush.msra.mxu0 %v3214
    %v3216 = vand.u32 %v64, 4294901760
    %v3217 = vsub.f32 %v64, %v3216
    %v3218 = vand.u32 %v3217, 4294901760
    %v3219 = vsub.f32 %v3217, %v3218
    %v3220 = vand.u32 %v3219, 4294901760
    %3221 = vmatpush.msra.mxu0 %v3220
    %v3222 = vand.u32 %v63, 4294901760
    %v3223 = vsub.f32 %v63, %v3222
    %v3224 = vand.u32 %v3223, 4294901760
    %v3225 = vsub.f32 %v3223, %v3224
    %v3226 = vand.u32 %v3225, 4294901760
    %3227 = vmatpush.msra.mxu0 %v3226
    %v3228 = vand.u32 %v3075, 4294901760
    %3229 = vmatmul.f32.gmra.mxu0 %v3228
    %v3230 = vpop.f32.mrf.mxu0
    %v3231 = vadd.f32 %v3130, %v3230
    %3232 = vdwg.mxu0
    %v3233 = vand.u32 %v78, 4294901760
    %v3234 = vsub.f32 %v78, %v3233
    %3235 = vmatpush.msra.mxu0 %v3234
    %v3236 = vand.u32 %v77, 4294901760
    %v3237 = vsub.f32 %v77, %v3236
    %3238 = vmatpush.msra.mxu0 %v3237
    %v3239 = vand.u32 %v76, 4294901760
    %v3240 = vsub.f32 %v76, %v3239
    %3241 = vmatpush.msra.mxu0 %v3240
    %v3242 = vand.u32 %v75, 4294901760
    %v3243 = vsub.f32 %v75, %v3242
    %3244 = vmatpush.msra.mxu0 %v3243
    %v3245 = vand.u32 %v74, 4294901760
    %v3246 = vsub.f32 %v74, %v3245
    %3247 = vmatpush.msra.mxu0 %v3246
    %v3248 = vand.u32 %v73, 4294901760
    %v3249 = vsub.f32 %v73, %v3248
    %3250 = vmatpush.msra.mxu0 %v3249
    %v3251 = vand.u32 %v72, 4294901760
    %v3252 = vsub.f32 %v72, %v3251
    %3253 = vmatpush.msra.mxu0 %v3252
    %v3254 = vand.u32 %v71, 4294901760
    %v3255 = vsub.f32 %v71, %v3254
    %3256 = vmatpush.msra.mxu0 %v3255
    %v3257 = vand.u32 %v70, 4294901760
    %v3258 = vsub.f32 %v70, %v3257
    %3259 = vmatpush.msra.mxu0 %v3258
    %v3260 = vand.u32 %v69, 4294901760
    %v3261 = vsub.f32 %v69, %v3260
    %3262 = vmatpush.msra.mxu0 %v3261
    %v3263 = vand.u32 %v68, 4294901760
    %v3264 = vsub.f32 %v68, %v3263
    %3265 = vmatpush.msra.mxu0 %v3264
    %v3266 = vand.u32 %v67, 4294901760
    %v3267 = vsub.f32 %v67, %v3266
    %3268 = vmatpush.msra.mxu0 %v3267
    %v3269 = vand.u32 %v66, 4294901760
    %v3270 = vsub.f32 %v66, %v3269
    %3271 = vmatpush.msra.mxu0 %v3270
    %v3272 = vand.u32 %v65, 4294901760
    %v3273 = vsub.f32 %v65, %v3272
    %3274 = vmatpush.msra.mxu0 %v3273
    %v3275 = vand.u32 %v64, 4294901760
    %v3276 = vsub.f32 %v64, %v3275
    %3277 = vmatpush.msra.mxu0 %v3276
    %v3278 = vand.u32 %v63, 4294901760
    %v3279 = vsub.f32 %v63, %v3278
    %3280 = vmatpush.msra.mxu0 %v3279
    %v3281 = vand.u32 %v3075, 4294901760
    %v3282 = vsub.f32 %v3075, %v3281
    %3283 = vmatmul.f32.gmra.mxu0 %v3282
    %v3284 = vpop.f32.mrf.mxu0
    %v3285 = vadd.f32 %v3231, %v3284
    %3286 = vdwg.mxu0
    %v3287 = vand.u32 %v78, 4294901760
    %3288 = vmatpush.msra.mxu0 %v3287
    %v3289 = vand.u32 %v77, 4294901760
    %3290 = vmatpush.msra.mxu0 %v3289
    %v3291 = vand.u32 %v76, 4294901760
    %3292 = vmatpush.msra.mxu0 %v3291
    %v3293 = vand.u32 %v75, 4294901760
    %3294 = vmatpush.msra.mxu0 %v3293
    %v3295 = vand.u32 %v74, 4294901760
    %3296 = vmatpush.msra.mxu0 %v3295
    %v3297 = vand.u32 %v73, 4294901760
    %3298 = vmatpush.msra.mxu0 %v3297
    %v3299 = vand.u32 %v72, 4294901760
    %3300 = vmatpush.msra.mxu0 %v3299
    %v3301 = vand.u32 %v71, 4294901760
    %3302 = vmatpush.msra.mxu0 %v3301
    %v3303 = vand.u32 %v70, 4294901760
    %3304 = vmatpush.msra.mxu0 %v3303
    %v3305 = vand.u32 %v69, 4294901760
    %3306 = vmatpush.msra.mxu0 %v3305
    %v3307 = vand.u32 %v68, 4294901760
    %3308 = vmatpush.msra.mxu0 %v3307
    %v3309 = vand.u32 %v67, 4294901760
    %3310 = vmatpush.msra.mxu0 %v3309
    %v3311 = vand.u32 %v66, 4294901760
    %3312 = vmatpush.msra.mxu0 %v3311
    %v3313 = vand.u32 %v65, 4294901760
    %3314 = vmatpush.msra.mxu0 %v3313
    %v3315 = vand.u32 %v64, 4294901760
    %3316 = vmatpush.msra.mxu0 %v3315
    %v3317 = vand.u32 %v63, 4294901760
    %3318 = vmatpush.msra.mxu0 %v3317
    %v3319 = vand.u32 %v3075, 4294901760
    %v3320 = vsub.f32 %v3075, %v3319
    %v3321 = vand.u32 %v3320, 4294901760
    %3322 = vmatmul.f32.gmra.mxu0 %v3321
    %v3323 = vpop.f32.mrf.mxu0
    %v3324 = vadd.f32 %v3285, %v3323
    %3325 = vdwg.mxu0
    %v3326 = vand.u32 %v78, 4294901760
    %v3327 = vsub.f32 %v78, %v3326
    %v3328 = vand.u32 %v3327, 4294901760
    %3329 = vmatpush.msra.mxu0 %v3328
    %v3330 = vand.u32 %v77, 4294901760
    %v3331 = vsub.f32 %v77, %v3330
    %v3332 = vand.u32 %v3331, 4294901760
    %3333 = vmatpush.msra.mxu0 %v3332
    %v3334 = vand.u32 %v76, 4294901760
    %v3335 = vsub.f32 %v76, %v3334
    %v3336 = vand.u32 %v3335, 4294901760
    %3337 = vmatpush.msra.mxu0 %v3336
    %v3338 = vand.u32 %v75, 4294901760
    %v3339 = vsub.f32 %v75, %v3338
    %v3340 = vand.u32 %v3339, 4294901760
    %3341 = vmatpush.msra.mxu0 %v3340
    %v3342 = vand.u32 %v74, 4294901760
    %v3343 = vsub.f32 %v74, %v3342
    %v3344 = vand.u32 %v3343, 4294901760
    %3345 = vmatpush.msra.mxu0 %v3344
    %v3346 = vand.u32 %v73, 4294901760
    %v3347 = vsub.f32 %v73, %v3346
    %v3348 = vand.u32 %v3347, 4294901760
    %3349 = vmatpush.msra.mxu0 %v3348
    %v3350 = vand.u32 %v72, 4294901760
    %v3351 = vsub.f32 %v72, %v3350
    %v3352 = vand.u32 %v3351, 4294901760
    %3353 = vmatpush.msra.mxu0 %v3352
    %v3354 = vand.u32 %v71, 4294901760
    %v3355 = vsub.f32 %v71, %v3354
    %v3356 = vand.u32 %v3355, 4294901760
    %3357 = vmatpush.msra.mxu0 %v3356
    %v3358 = vand.u32 %v70, 4294901760
    %v3359 = vsub.f32 %v70, %v3358
    %v3360 = vand.u32 %v3359, 4294901760
    %3361 = vmatpush.msra.mxu0 %v3360
    %v3362 = vand.u32 %v69, 4294901760
    %v3363 = vsub.f32 %v69, %v3362
    %v3364 = vand.u32 %v3363, 4294901760
    %3365 = vmatpush.msra.mxu0 %v3364
    %v3366 = vand.u32 %v68, 4294901760
    %v3367 = vsub.f32 %v68, %v3366
    %v3368 = vand.u32 %v3367, 4294901760
    %3369 = vmatpush.msra.mxu0 %v3368
    %v3370 = vand.u32 %v67, 4294901760
    %v3371 = vsub.f32 %v67, %v3370
    %v3372 = vand.u32 %v3371, 4294901760
    %3373 = vmatpush.msra.mxu0 %v3372
    %v3374 = vand.u32 %v66, 4294901760
    %v3375 = vsub.f32 %v66, %v3374
    %v3376 = vand.u32 %v3375, 4294901760
    %3377 = vmatpush.msra.mxu0 %v3376
    %v3378 = vand.u32 %v65, 4294901760
    %v3379 = vsub.f32 %v65, %v3378
    %v3380 = vand.u32 %v3379, 4294901760
    %3381 = vmatpush.msra.mxu0 %v3380
    %v3382 = vand.u32 %v64, 4294901760
    %v3383 = vsub.f32 %v64, %v3382
    %v3384 = vand.u32 %v3383, 4294901760
    %3385 = vmatpush.msra.mxu0 %v3384
    %v3386 = vand.u32 %v63, 4294901760
    %v3387 = vsub.f32 %v63, %v3386
    %v3388 = vand.u32 %v3387, 4294901760
    %3389 = vmatpush.msra.mxu0 %v3388
    %v3390 = vand.u32 %v3075, 4294901760
    %3391 = vmatmul.f32.gmra.mxu0 %v3390
    %v3392 = vpop.f32.mrf.mxu0
    %v3393 = vadd.f32 %v3324, %v3392
    %3394 = vdwg.mxu0
    %v3395 = vand.u32 %v78, 4294901760
    %3396 = vmatpush.msra.mxu0 %v3395
    %v3397 = vand.u32 %v77, 4294901760
    %3398 = vmatpush.msra.mxu0 %v3397
    %v3399 = vand.u32 %v76, 4294901760
    %3400 = vmatpush.msra.mxu0 %v3399
    %v3401 = vand.u32 %v75, 4294901760
    %3402 = vmatpush.msra.mxu0 %v3401
    %v3403 = vand.u32 %v74, 4294901760
    %3404 = vmatpush.msra.mxu0 %v3403
    %v3405 = vand.u32 %v73, 4294901760
    %3406 = vmatpush.msra.mxu0 %v3405
    %v3407 = vand.u32 %v72, 4294901760
    %3408 = vmatpush.msra.mxu0 %v3407
    %v3409 = vand.u32 %v71, 4294901760
    %3410 = vmatpush.msra.mxu0 %v3409
    %v3411 = vand.u32 %v70, 4294901760
    %3412 = vmatpush.msra.mxu0 %v3411
    %v3413 = vand.u32 %v69, 4294901760
    %3414 = vmatpush.msra.mxu0 %v3413
    %v3415 = vand.u32 %v68, 4294901760
    %3416 = vmatpush.msra.mxu0 %v3415
    %v3417 = vand.u32 %v67, 4294901760
    %3418 = vmatpush.msra.mxu0 %v3417
    %v3419 = vand.u32 %v66, 4294901760
    %3420 = vmatpush.msra.mxu0 %v3419
    %v3421 = vand.u32 %v65, 4294901760
    %3422 = vmatpush.msra.mxu0 %v3421
    %v3423 = vand.u32 %v64, 4294901760
    %3424 = vmatpush.msra.mxu0 %v3423
    %v3425 = vand.u32 %v63, 4294901760
    %3426 = vmatpush.msra.mxu0 %v3425
    %v3427 = vand.u32 %v3075, 4294901760
    %3428 = vmatmul.f32.gmra.mxu0 %v3427
    %v3429 = vpop.f32.mrf.mxu0
    %v3430 = vadd.f32 %v3393, %v3429
    %3431 = vdwg.mxu0
    %v3432 = vand.u32 %v94, 4294901760
    %3433 = vmatpush.msra.mxu0 %v3432
    %v3434 = vand.u32 %v93, 4294901760
    %3435 = vmatpush.msra.mxu0 %v3434
    %v3436 = vand.u32 %v92, 4294901760
    %3437 = vmatpush.msra.mxu0 %v3436
    %v3438 = vand.u32 %v91, 4294901760
    %3439 = vmatpush.msra.mxu0 %v3438
    %v3440 = vand.u32 %v90, 4294901760
    %3441 = vmatpush.msra.mxu0 %v3440
    %v3442 = vand.u32 %v89, 4294901760
    %3443 = vmatpush.msra.mxu0 %v3442
    %v3444 = vand.u32 %v88, 4294901760
    %3445 = vmatpush.msra.mxu0 %v3444
    %v3446 = vand.u32 %v87, 4294901760
    %3447 = vmatpush.msra.mxu0 %v3446
    %v3448 = vand.u32 %v86, 4294901760
    %3449 = vmatpush.msra.mxu0 %v3448
    %v3450 = vand.u32 %v85, 4294901760
    %3451 = vmatpush.msra.mxu0 %v3450
    %v3452 = vand.u32 %v84, 4294901760
    %3453 = vmatpush.msra.mxu0 %v3452
    %v3454 = vand.u32 %v83, 4294901760
    %3455 = vmatpush.msra.mxu0 %v3454
    %v3456 = vand.u32 %v82, 4294901760
    %3457 = vmatpush.msra.mxu0 %v3456
    %v3458 = vand.u32 %v81, 4294901760
    %3459 = vmatpush.msra.mxu0 %v3458
    %v3460 = vand.u32 %v80, 4294901760
    %3461 = vmatpush.msra.mxu0 %v3460
    %v3462 = vand.u32 %v79, 4294901760
    %3463 = vmatpush.msra.mxu0 %v3462
    %v3464 = vand.u32 %v3076, 4294901760
    %v3465 = vsub.f32 %v3076, %v3464
    %v3466 = vand.u32 %v3465, 4294901760
    %v3467 = vsub.f32 %v3465, %v3466
    %v3468 = vand.u32 %v3467, 4294901760
    %3469 = vmatmul.f32.gmra.mxu0 %v3468
    %v3470 = vpop.f32.mrf.mxu0
    %v3471 = vadd.f32 %v3430, %v3470
    %3472 = vdwg.mxu0
    %v3473 = vand.u32 %v94, 4294901760
    %v3474 = vsub.f32 %v94, %v3473
    %v3475 = vand.u32 %v3474, 4294901760
    %v3476 = vsub.f32 %v3474, %v3475
    %v3477 = vand.u32 %v3476, 4294901760
    %3478 = vmatpush.msra.mxu0 %v3477
    %v3479 = vand.u32 %v93, 4294901760
    %v3480 = vsub.f32 %v93, %v3479
    %v3481 = vand.u32 %v3480, 4294901760
    %v3482 = vsub.f32 %v3480, %v3481
    %v3483 = vand.u32 %v3482, 4294901760
    %3484 = vmatpush.msra.mxu0 %v3483
    %v3485 = vand.u32 %v92, 4294901760
    %v3486 = vsub.f32 %v92, %v3485
    %v3487 = vand.u32 %v3486, 4294901760
    %v3488 = vsub.f32 %v3486, %v3487
    %v3489 = vand.u32 %v3488, 4294901760
    %3490 = vmatpush.msra.mxu0 %v3489
    %v3491 = vand.u32 %v91, 4294901760
    %v3492 = vsub.f32 %v91, %v3491
    %v3493 = vand.u32 %v3492, 4294901760
    %v3494 = vsub.f32 %v3492, %v3493
    %v3495 = vand.u32 %v3494, 4294901760
    %3496 = vmatpush.msra.mxu0 %v3495
    %v3497 = vand.u32 %v90, 4294901760
    %v3498 = vsub.f32 %v90, %v3497
    %v3499 = vand.u32 %v3498, 4294901760
    %v3500 = vsub.f32 %v3498, %v3499
    %v3501 = vand.u32 %v3500, 4294901760
    %3502 = vmatpush.msra.mxu0 %v3501
    %v3503 = vand.u32 %v89, 4294901760
    %v3504 = vsub.f32 %v89, %v3503
    %v3505 = vand.u32 %v3504, 4294901760
    %v3506 = vsub.f32 %v3504, %v3505
    %v3507 = vand.u32 %v3506, 4294901760
    %3508 = vmatpush.msra.mxu0 %v3507
    %v3509 = vand.u32 %v88, 4294901760
    %v3510 = vsub.f32 %v88, %v3509
    %v3511 = vand.u32 %v3510, 4294901760
    %v3512 = vsub.f32 %v3510, %v3511
    %v3513 = vand.u32 %v3512, 4294901760
    %3514 = vmatpush.msra.mxu0 %v3513
    %v3515 = vand.u32 %v87, 4294901760
    %v3516 = vsub.f32 %v87, %v3515
    %v3517 = vand.u32 %v3516, 4294901760
    %v3518 = vsub.f32 %v3516, %v3517
    %v3519 = vand.u32 %v3518, 4294901760
    %3520 = vmatpush.msra.mxu0 %v3519
    %v3521 = vand.u32 %v86, 4294901760
    %v3522 = vsub.f32 %v86, %v3521
    %v3523 = vand.u32 %v3522, 4294901760
    %v3524 = vsub.f32 %v3522, %v3523
    %v3525 = vand.u32 %v3524, 4294901760
    %3526 = vmatpush.msra.mxu0 %v3525
    %v3527 = vand.u32 %v85, 4294901760
    %v3528 = vsub.f32 %v85, %v3527
    %v3529 = vand.u32 %v3528, 4294901760
    %v3530 = vsub.f32 %v3528, %v3529
    %v3531 = vand.u32 %v3530, 4294901760
    %3532 = vmatpush.msra.mxu0 %v3531
    %v3533 = vand.u32 %v84, 4294901760
    %v3534 = vsub.f32 %v84, %v3533
    %v3535 = vand.u32 %v3534, 4294901760
    %v3536 = vsub.f32 %v3534, %v3535
    %v3537 = vand.u32 %v3536, 4294901760
    %3538 = vmatpush.msra.mxu0 %v3537
    %v3539 = vand.u32 %v83, 4294901760
    %v3540 = vsub.f32 %v83, %v3539
    %v3541 = vand.u32 %v3540, 4294901760
    %v3542 = vsub.f32 %v3540, %v3541
    %v3543 = vand.u32 %v3542, 4294901760
    %3544 = vmatpush.msra.mxu0 %v3543
    %v3545 = vand.u32 %v82, 4294901760
    %v3546 = vsub.f32 %v82, %v3545
    %v3547 = vand.u32 %v3546, 4294901760
    %v3548 = vsub.f32 %v3546, %v3547
    %v3549 = vand.u32 %v3548, 4294901760
    %3550 = vmatpush.msra.mxu0 %v3549
    %v3551 = vand.u32 %v81, 4294901760
    %v3552 = vsub.f32 %v81, %v3551
    %v3553 = vand.u32 %v3552, 4294901760
    %v3554 = vsub.f32 %v3552, %v3553
    %v3555 = vand.u32 %v3554, 4294901760
    %3556 = vmatpush.msra.mxu0 %v3555
    %v3557 = vand.u32 %v80, 4294901760
    %v3558 = vsub.f32 %v80, %v3557
    %v3559 = vand.u32 %v3558, 4294901760
    %v3560 = vsub.f32 %v3558, %v3559
    %v3561 = vand.u32 %v3560, 4294901760
    %3562 = vmatpush.msra.mxu0 %v3561
    %v3563 = vand.u32 %v79, 4294901760
    %v3564 = vsub.f32 %v79, %v3563
    %v3565 = vand.u32 %v3564, 4294901760
    %v3566 = vsub.f32 %v3564, %v3565
    %v3567 = vand.u32 %v3566, 4294901760
    %3568 = vmatpush.msra.mxu0 %v3567
    %v3569 = vand.u32 %v3076, 4294901760
    %3570 = vmatmul.f32.gmra.mxu0 %v3569
    %v3571 = vpop.f32.mrf.mxu0
    %v3572 = vadd.f32 %v3471, %v3571
    %3573 = vdwg.mxu0
    %v3574 = vand.u32 %v94, 4294901760
    %v3575 = vsub.f32 %v94, %v3574
    %3576 = vmatpush.msra.mxu0 %v3575
    %v3577 = vand.u32 %v93, 4294901760
    %v3578 = vsub.f32 %v93, %v3577
    %3579 = vmatpush.msra.mxu0 %v3578
    %v3580 = vand.u32 %v92, 4294901760
    %v3581 = vsub.f32 %v92, %v3580
    %3582 = vmatpush.msra.mxu0 %v3581
    %v3583 = vand.u32 %v91, 4294901760
    %v3584 = vsub.f32 %v91, %v3583
    %3585 = vmatpush.msra.mxu0 %v3584
    %v3586 = vand.u32 %v90, 4294901760
    %v3587 = vsub.f32 %v90, %v3586
    %3588 = vmatpush.msra.mxu0 %v3587
    %v3589 = vand.u32 %v89, 4294901760
    %v3590 = vsub.f32 %v89, %v3589
    %3591 = vmatpush.msra.mxu0 %v3590
    %v3592 = vand.u32 %v88, 4294901760
    %v3593 = vsub.f32 %v88, %v3592
    %3594 = vmatpush.msra.mxu0 %v3593
    %v3595 = vand.u32 %v87, 4294901760
    %v3596 = vsub.f32 %v87, %v3595
    %3597 = vmatpush.msra.mxu0 %v3596
    %v3598 = vand.u32 %v86, 4294901760
    %v3599 = vsub.f32 %v86, %v3598
    %3600 = vmatpush.msra.mxu0 %v3599
    %v3601 = vand.u32 %v85, 4294901760
    %v3602 = vsub.f32 %v85, %v3601
    %3603 = vmatpush.msra.mxu0 %v3602
    %v3604 = vand.u32 %v84, 4294901760
    %v3605 = vsub.f32 %v84, %v3604
    %3606 = vmatpush.msra.mxu0 %v3605
    %v3607 = vand.u32 %v83, 4294901760
    %v3608 = vsub.f32 %v83, %v3607
    %3609 = vmatpush.msra.mxu0 %v3608
    %v3610 = vand.u32 %v82, 4294901760
    %v3611 = vsub.f32 %v82, %v3610
    %3612 = vmatpush.msra.mxu0 %v3611
    %v3613 = vand.u32 %v81, 4294901760
    %v3614 = vsub.f32 %v81, %v3613
    %3615 = vmatpush.msra.mxu0 %v3614
    %v3616 = vand.u32 %v80, 4294901760
    %v3617 = vsub.f32 %v80, %v3616
    %3618 = vmatpush.msra.mxu0 %v3617
    %v3619 = vand.u32 %v79, 4294901760
    %v3620 = vsub.f32 %v79, %v3619
    %3621 = vmatpush.msra.mxu0 %v3620
    %v3622 = vand.u32 %v3076, 4294901760
    %v3623 = vsub.f32 %v3076, %v3622
    %3624 = vmatmul.f32.gmra.mxu0 %v3623
    %v3625 = vpop.f32.mrf.mxu0
    %v3626 = vadd.f32 %v3572, %v3625
    %3627 = vdwg.mxu0
    %v3628 = vand.u32 %v94, 4294901760
    %3629 = vmatpush.msra.mxu0 %v3628
    %v3630 = vand.u32 %v93, 4294901760
    %3631 = vmatpush.msra.mxu0 %v3630
    %v3632 = vand.u32 %v92, 4294901760
    %3633 = vmatpush.msra.mxu0 %v3632
    %v3634 = vand.u32 %v91, 4294901760
    %3635 = vmatpush.msra.mxu0 %v3634
    %v3636 = vand.u32 %v90, 4294901760
    %3637 = vmatpush.msra.mxu0 %v3636
    %v3638 = vand.u32 %v89, 4294901760
    %3639 = vmatpush.msra.mxu0 %v3638
    %v3640 = vand.u32 %v88, 4294901760
    %3641 = vmatpush.msra.mxu0 %v3640
    %v3642 = vand.u32 %v87, 4294901760
    %3643 = vmatpush.msra.mxu0 %v3642
    %v3644 = vand.u32 %v86, 4294901760
    %3645 = vmatpush.msra.mxu0 %v3644
    %v3646 = vand.u32 %v85, 4294901760
    %3647 = vmatpush.msra.mxu0 %v3646
    %v3648 = vand.u32 %v84, 4294901760
    %3649 = vmatpush.msra.mxu0 %v3648
    %v3650 = vand.u32 %v83, 4294901760
    %3651 = vmatpush.msra.mxu0 %v3650
    %v3652 = vand.u32 %v82, 4294901760
    %3653 = vmatpush.msra.mxu0 %v3652
    %v3654 = vand.u32 %v81, 4294901760
    %3655 = vmatpush.msra.mxu0 %v3654
    %v3656 = vand.u32 %v80, 4294901760
    %3657 = vmatpush.msra.mxu0 %v3656
    %v3658 = vand.u32 %v79, 4294901760
    %3659 = vmatpush.msra.mxu0 %v3658
    %v3660 = vand.u32 %v3076, 4294901760
    %v3661 = vsub.f32 %v3076, %v3660
    %v3662 = vand.u32 %v3661, 4294901760
    %3663 = vmatmul.f32.gmra.mxu0 %v3662
    %v3664 = vpop.f32.mrf.mxu0
    %v3665 = vadd.f32 %v3626, %v3664
    %3666 = vdwg.mxu0
    %v3667 = vand.u32 %v94, 4294901760
    %v3668 = vsub.f32 %v94, %v3667
    %v3669 = vand.u32 %v3668, 4294901760
    %3670 = vmatpush.msra.mxu0 %v3669
    %v3671 = vand.u32 %v93, 4294901760
    %v3672 = vsub.f32 %v93, %v3671
    %v3673 = vand.u32 %v3672, 4294901760
    %3674 = vmatpush.msra.mxu0 %v3673
    %v3675 = vand.u32 %v92, 4294901760
    %v3676 = vsub.f32 %v92, %v3675
    %v3677 = vand.u32 %v3676, 4294901760
    %3678 = vmatpush.msra.mxu0 %v3677
    %v3679 = vand.u32 %v91, 4294901760
    %v3680 = vsub.f32 %v91, %v3679
    %v3681 = vand.u32 %v3680, 4294901760
    %3682 = vmatpush.msra.mxu0 %v3681
    %v3683 = vand.u32 %v90, 4294901760
    %v3684 = vsub.f32 %v90, %v3683
    %v3685 = vand.u32 %v3684, 4294901760
    %3686 = vmatpush.msra.mxu0 %v3685
    %v3687 = vand.u32 %v89, 4294901760
    %v3688 = vsub.f32 %v89, %v3687
    %v3689 = vand.u32 %v3688, 4294901760
    %3690 = vmatpush.msra.mxu0 %v3689
    %v3691 = vand.u32 %v88, 4294901760
    %v3692 = vsub.f32 %v88, %v3691
    %v3693 = vand.u32 %v3692, 4294901760
    %3694 = vmatpush.msra.mxu0 %v3693
    %v3695 = vand.u32 %v87, 4294901760
    %v3696 = vsub.f32 %v87, %v3695
    %v3697 = vand.u32 %v3696, 4294901760
    %3698 = vmatpush.msra.mxu0 %v3697
    %v3699 = vand.u32 %v86, 4294901760
    %v3700 = vsub.f32 %v86, %v3699
    %v3701 = vand.u32 %v3700, 4294901760
    %3702 = vmatpush.msra.mxu0 %v3701
    %v3703 = vand.u32 %v85, 4294901760
    %v3704 = vsub.f32 %v85, %v3703
    %v3705 = vand.u32 %v3704, 4294901760
    %3706 = vmatpush.msra.mxu0 %v3705
    %v3707 = vand.u32 %v84, 4294901760
    %v3708 = vsub.f32 %v84, %v3707
    %v3709 = vand.u32 %v3708, 4294901760
    %3710 = vmatpush.msra.mxu0 %v3709
    %v3711 = vand.u32 %v83, 4294901760
    %v3712 = vsub.f32 %v83, %v3711
    %v3713 = vand.u32 %v3712, 4294901760
    %3714 = vmatpush.msra.mxu0 %v3713
    %v3715 = vand.u32 %v82, 4294901760
    %v3716 = vsub.f32 %v82, %v3715
    %v3717 = vand.u32 %v3716, 4294901760
    %3718 = vmatpush.msra.mxu0 %v3717
    %v3719 = vand.u32 %v81, 4294901760
    %v3720 = vsub.f32 %v81, %v3719
    %v3721 = vand.u32 %v3720, 4294901760
    %3722 = vmatpush.msra.mxu0 %v3721
    %v3723 = vand.u32 %v80, 4294901760
    %v3724 = vsub.f32 %v80, %v3723
    %v3725 = vand.u32 %v3724, 4294901760
    %3726 = vmatpush.msra.mxu0 %v3725
    %v3727 = vand.u32 %v79, 4294901760
    %v3728 = vsub.f32 %v79, %v3727
    %v3729 = vand.u32 %v3728, 4294901760
    %3730 = vmatpush.msra.mxu0 %v3729
    %v3731 = vand.u32 %v3076, 4294901760
    %3732 = vmatmul.f32.gmra.mxu0 %v3731
    %v3733 = vpop.f32.mrf.mxu0
    %v3734 = vadd.f32 %v3665, %v3733
    %3735 = vdwg.mxu0
    %v3736 = vand.u32 %v94, 4294901760
    %3737 = vmatpush.msra.mxu0 %v3736
    %v3738 = vand.u32 %v93, 4294901760
    %3739 = vmatpush.msra.mxu0 %v3738
    %v3740 = vand.u32 %v92, 4294901760
    %3741 = vmatpush.msra.mxu0 %v3740
    %v3742 = vand.u32 %v91, 4294901760
    %3743 = vmatpush.msra.mxu0 %v3742
    %v3744 = vand.u32 %v90, 4294901760
    %3745 = vmatpush.msra.mxu0 %v3744
    %v3746 = vand.u32 %v89, 4294901760
    %3747 = vmatpush.msra.mxu0 %v3746
    %v3748 = vand.u32 %v88, 4294901760
    %3749 = vmatpush.msra.mxu0 %v3748
    %v3750 = vand.u32 %v87, 4294901760
    %3751 = vmatpush.msra.mxu0 %v3750
    %v3752 = vand.u32 %v86, 4294901760
    %3753 = vmatpush.msra.mxu0 %v3752
    %v3754 = vand.u32 %v85, 4294901760
    %3755 = vmatpush.msra.mxu0 %v3754
    %v3756 = vand.u32 %v84, 4294901760
    %3757 = vmatpush.msra.mxu0 %v3756
    %v3758 = vand.u32 %v83, 4294901760
    %3759 = vmatpush.msra.mxu0 %v3758
    %v3760 = vand.u32 %v82, 4294901760
    %3761 = vmatpush.msra.mxu0 %v3760
    %v3762 = vand.u32 %v81, 4294901760
    %3763 = vmatpush.msra.mxu0 %v3762
    %v3764 = vand.u32 %v80, 4294901760
    %3765 = vmatpush.msra.mxu0 %v3764
    %v3766 = vand.u32 %v79, 4294901760
    %3767 = vmatpush.msra.mxu0 %v3766
    %v3768 = vand.u32 %v3076, 4294901760
    %3769 = vmatmul.f32.gmra.mxu0 %v3768
    %v3770 = vpop.f32.mrf.mxu0
    %v3771 = vadd.f32 %v3734, %v3770
    %3772 = vdwg.mxu0
    %v3773 = vand.u32 %v110, 4294901760
    %3774 = vmatpush.msra.mxu0 %v3773
    %v3775 = vand.u32 %v109, 4294901760
    %3776 = vmatpush.msra.mxu0 %v3775
    %v3777 = vand.u32 %v108, 4294901760
    %3778 = vmatpush.msra.mxu0 %v3777
    %v3779 = vand.u32 %v107, 4294901760
    %3780 = vmatpush.msra.mxu0 %v3779
    %v3781 = vand.u32 %v106, 4294901760
    %3782 = vmatpush.msra.mxu0 %v3781
    %v3783 = vand.u32 %v105, 4294901760
    %3784 = vmatpush.msra.mxu0 %v3783
    %v3785 = vand.u32 %v104, 4294901760
    %3786 = vmatpush.msra.mxu0 %v3785
    %v3787 = vand.u32 %v103, 4294901760
    %3788 = vmatpush.msra.mxu0 %v3787
    %v3789 = vand.u32 %v102, 4294901760
    %3790 = vmatpush.msra.mxu0 %v3789
    %v3791 = vand.u32 %v101, 4294901760
    %3792 = vmatpush.msra.mxu0 %v3791
    %v3793 = vand.u32 %v100, 4294901760
    %3794 = vmatpush.msra.mxu0 %v3793
    %v3795 = vand.u32 %v99, 4294901760
    %3796 = vmatpush.msra.mxu0 %v3795
    %v3797 = vand.u32 %v98, 4294901760
    %3798 = vmatpush.msra.mxu0 %v3797
    %v3799 = vand.u32 %v97, 4294901760
    %3800 = vmatpush.msra.mxu0 %v3799
    %v3801 = vand.u32 %v96, 4294901760
    %3802 = vmatpush.msra.mxu0 %v3801
    %v3803 = vand.u32 %v95, 4294901760
    %3804 = vmatpush.msra.mxu0 %v3803
    %v3805 = vand.u32 %v3077, 4294901760
    %v3806 = vsub.f32 %v3077, %v3805
    %v3807 = vand.u32 %v3806, 4294901760
    %v3808 = vsub.f32 %v3806, %v3807
    %v3809 = vand.u32 %v3808, 4294901760
    %3810 = vmatmul.f32.gmra.mxu0 %v3809
    %v3811 = vpop.f32.mrf.mxu0
    %v3812 = vadd.f32 %v3771, %v3811
    %3813 = vdwg.mxu0
    %v3814 = vand.u32 %v110, 4294901760
    %v3815 = vsub.f32 %v110, %v3814
    %v3816 = vand.u32 %v3815, 4294901760
    %v3817 = vsub.f32 %v3815, %v3816
    %v3818 = vand.u32 %v3817, 4294901760
    %3819 = vmatpush.msra.mxu0 %v3818
    %v3820 = vand.u32 %v109, 4294901760
    %v3821 = vsub.f32 %v109, %v3820
    %v3822 = vand.u32 %v3821, 4294901760
    %v3823 = vsub.f32 %v3821, %v3822
    %v3824 = vand.u32 %v3823, 4294901760
    %3825 = vmatpush.msra.mxu0 %v3824
    %v3826 = vand.u32 %v108, 4294901760
    %v3827 = vsub.f32 %v108, %v3826
    %v3828 = vand.u32 %v3827, 4294901760
    %v3829 = vsub.f32 %v3827, %v3828
    %v3830 = vand.u32 %v3829, 4294901760
    %3831 = vmatpush.msra.mxu0 %v3830
    %v3832 = vand.u32 %v107, 4294901760
    %v3833 = vsub.f32 %v107, %v3832
    %v3834 = vand.u32 %v3833, 4294901760
    %v3835 = vsub.f32 %v3833, %v3834
    %v3836 = vand.u32 %v3835, 4294901760
    %3837 = vmatpush.msra.mxu0 %v3836
    %v3838 = vand.u32 %v106, 4294901760
    %v3839 = vsub.f32 %v106, %v3838
    %v3840 = vand.u32 %v3839, 4294901760
    %v3841 = vsub.f32 %v3839, %v3840
    %v3842 = vand.u32 %v3841, 4294901760
    %3843 = vmatpush.msra.mxu0 %v3842
    %v3844 = vand.u32 %v105, 4294901760
    %v3845 = vsub.f32 %v105, %v3844
    %v3846 = vand.u32 %v3845, 4294901760
    %v3847 = vsub.f32 %v3845, %v3846
    %v3848 = vand.u32 %v3847, 4294901760
    %3849 = vmatpush.msra.mxu0 %v3848
    %v3850 = vand.u32 %v104, 4294901760
    %v3851 = vsub.f32 %v104, %v3850
    %v3852 = vand.u32 %v3851, 4294901760
    %v3853 = vsub.f32 %v3851, %v3852
    %v3854 = vand.u32 %v3853, 4294901760
    %3855 = vmatpush.msra.mxu0 %v3854
    %v3856 = vand.u32 %v103, 4294901760
    %v3857 = vsub.f32 %v103, %v3856
    %v3858 = vand.u32 %v3857, 4294901760
    %v3859 = vsub.f32 %v3857, %v3858
    %v3860 = vand.u32 %v3859, 4294901760
    %3861 = vmatpush.msra.mxu0 %v3860
    %v3862 = vand.u32 %v102, 4294901760
    %v3863 = vsub.f32 %v102, %v3862
    %v3864 = vand.u32 %v3863, 4294901760
    %v3865 = vsub.f32 %v3863, %v3864
    %v3866 = vand.u32 %v3865, 4294901760
    %3867 = vmatpush.msra.mxu0 %v3866
    %v3868 = vand.u32 %v101, 4294901760
    %v3869 = vsub.f32 %v101, %v3868
    %v3870 = vand.u32 %v3869, 4294901760
    %v3871 = vsub.f32 %v3869, %v3870
    %v3872 = vand.u32 %v3871, 4294901760
    %3873 = vmatpush.msra.mxu0 %v3872
    %v3874 = vand.u32 %v100, 4294901760
    %v3875 = vsub.f32 %v100, %v3874
    %v3876 = vand.u32 %v3875, 4294901760
    %v3877 = vsub.f32 %v3875, %v3876
    %v3878 = vand.u32 %v3877, 4294901760
    %3879 = vmatpush.msra.mxu0 %v3878
    %v3880 = vand.u32 %v99, 4294901760
    %v3881 = vsub.f32 %v99, %v3880
    %v3882 = vand.u32 %v3881, 4294901760
    %v3883 = vsub.f32 %v3881, %v3882
    %v3884 = vand.u32 %v3883, 4294901760
    %3885 = vmatpush.msra.mxu0 %v3884
    %v3886 = vand.u32 %v98, 4294901760
    %v3887 = vsub.f32 %v98, %v3886
    %v3888 = vand.u32 %v3887, 4294901760
    %v3889 = vsub.f32 %v3887, %v3888
    %v3890 = vand.u32 %v3889, 4294901760
    %3891 = vmatpush.msra.mxu0 %v3890
    %v3892 = vand.u32 %v97, 4294901760
    %v3893 = vsub.f32 %v97, %v3892
    %v3894 = vand.u32 %v3893, 4294901760
    %v3895 = vsub.f32 %v3893, %v3894
    %v3896 = vand.u32 %v3895, 4294901760
    %3897 = vmatpush.msra.mxu0 %v3896
    %v3898 = vand.u32 %v96, 4294901760
    %v3899 = vsub.f32 %v96, %v3898
    %v3900 = vand.u32 %v3899, 4294901760
    %v3901 = vsub.f32 %v3899, %v3900
    %v3902 = vand.u32 %v3901, 4294901760
    %3903 = vmatpush.msra.mxu0 %v3902
    %v3904 = vand.u32 %v95, 4294901760
    %v3905 = vsub.f32 %v95, %v3904
    %v3906 = vand.u32 %v3905, 4294901760
    %v3907 = vsub.f32 %v3905, %v3906
    %v3908 = vand.u32 %v3907, 4294901760
    %3909 = vmatpush.msra.mxu0 %v3908
    %v3910 = vand.u32 %v3077, 4294901760
    %3911 = vmatmul.f32.gmra.mxu0 %v3910
    %v3912 = vpop.f32.mrf.mxu0
    %v3913 = vadd.f32 %v3812, %v3912
    %3914 = vdwg.mxu0
    %v3915 = vand.u32 %v110, 4294901760
    %v3916 = vsub.f32 %v110, %v3915
    %3917 = vmatpush.msra.mxu0 %v3916
    %v3918 = vand.u32 %v109, 4294901760
    %v3919 = vsub.f32 %v109, %v3918
    %3920 = vmatpush.msra.mxu0 %v3919
    %v3921 = vand.u32 %v108, 4294901760
    %v3922 = vsub.f32 %v108, %v3921
    %3923 = vmatpush.msra.mxu0 %v3922
    %v3924 = vand.u32 %v107, 4294901760
    %v3925 = vsub.f32 %v107, %v3924
    %3926 = vmatpush.msra.mxu0 %v3925
    %v3927 = vand.u32 %v106, 4294901760
    %v3928 = vsub.f32 %v106, %v3927
    %3929 = vmatpush.msra.mxu0 %v3928
    %v3930 = vand.u32 %v105, 4294901760
    %v3931 = vsub.f32 %v105, %v3930
    %3932 = vmatpush.msra.mxu0 %v3931
    %v3933 = vand.u32 %v104, 4294901760
    %v3934 = vsub.f32 %v104, %v3933
    %3935 = vmatpush.msra.mxu0 %v3934
    %v3936 = vand.u32 %v103, 4294901760
    %v3937 = vsub.f32 %v103, %v3936
    %3938 = vmatpush.msra.mxu0 %v3937
    %v3939 = vand.u32 %v102, 4294901760
    %v3940 = vsub.f32 %v102, %v3939
    %3941 = vmatpush.msra.mxu0 %v3940
    %v3942 = vand.u32 %v101, 4294901760
    %v3943 = vsub.f32 %v101, %v3942
    %3944 = vmatpush.msra.mxu0 %v3943
    %v3945 = vand.u32 %v100, 4294901760
    %v3946 = vsub.f32 %v100, %v3945
    %3947 = vmatpush.msra.mxu0 %v3946
    %v3948 = vand.u32 %v99, 4294901760
    %v3949 = vsub.f32 %v99, %v3948
    %3950 = vmatpush.msra.mxu0 %v3949
    %v3951 = vand.u32 %v98, 4294901760
    %v3952 = vsub.f32 %v98, %v3951
    %3953 = vmatpush.msra.mxu0 %v3952
    %v3954 = vand.u32 %v97, 4294901760
    %v3955 = vsub.f32 %v97, %v3954
    %3956 = vmatpush.msra.mxu0 %v3955
    %v3957 = vand.u32 %v96, 4294901760
    %v3958 = vsub.f32 %v96, %v3957
    %3959 = vmatpush.msra.mxu0 %v3958
    %v3960 = vand.u32 %v95, 4294901760
    %v3961 = vsub.f32 %v95, %v3960
    %3962 = vmatpush.msra.mxu0 %v3961
    %v3963 = vand.u32 %v3077, 4294901760
    %v3964 = vsub.f32 %v3077, %v3963
    %3965 = vmatmul.f32.gmra.mxu0 %v3964
    %v3966 = vpop.f32.mrf.mxu0
    %v3967 = vadd.f32 %v3913, %v3966
    %3968 = vdwg.mxu0
    %v3969 = vand.u32 %v110, 4294901760
    %3970 = vmatpush.msra.mxu0 %v3969
    %v3971 = vand.u32 %v109, 4294901760
    %3972 = vmatpush.msra.mxu0 %v3971
    %v3973 = vand.u32 %v108, 4294901760
    %3974 = vmatpush.msra.mxu0 %v3973
    %v3975 = vand.u32 %v107, 4294901760
    %3976 = vmatpush.msra.mxu0 %v3975
    %v3977 = vand.u32 %v106, 4294901760
    %3978 = vmatpush.msra.mxu0 %v3977
    %v3979 = vand.u32 %v105, 4294901760
    %3980 = vmatpush.msra.mxu0 %v3979
    %v3981 = vand.u32 %v104, 4294901760
    %3982 = vmatpush.msra.mxu0 %v3981
    %v3983 = vand.u32 %v103, 4294901760
    %3984 = vmatpush.msra.mxu0 %v3983
    %v3985 = vand.u32 %v102, 4294901760
    %3986 = vmatpush.msra.mxu0 %v3985
    %v3987 = vand.u32 %v101, 4294901760
    %3988 = vmatpush.msra.mxu0 %v3987
    %v3989 = vand.u32 %v100, 4294901760
    %3990 = vmatpush.msra.mxu0 %v3989
    %v3991 = vand.u32 %v99, 4294901760
    %3992 = vmatpush.msra.mxu0 %v3991
    %v3993 = vand.u32 %v98, 4294901760
    %3994 = vmatpush.msra.mxu0 %v3993
    %v3995 = vand.u32 %v97, 4294901760
    %3996 = vmatpush.msra.mxu0 %v3995
    %v3997 = vand.u32 %v96, 4294901760
    %3998 = vmatpush.msra.mxu0 %v3997
    %v3999 = vand.u32 %v95, 4294901760
    %4000 = vmatpush.msra.mxu0 %v3999
    %v4001 = vand.u32 %v3077, 4294901760
    %v4002 = vsub.f32 %v3077, %v4001
    %v4003 = vand.u32 %v4002, 4294901760
    %4004 = vmatmul.f32.gmra.mxu0 %v4003
    %v4005 = vpop.f32.mrf.mxu0
    %v4006 = vadd.f32 %v3967, %v4005
    %4007 = vdwg.mxu0
    %v4008 = vand.u32 %v110, 4294901760
    %v4009 = vsub.f32 %v110, %v4008
    %v4010 = vand.u32 %v4009, 4294901760
    %4011 = vmatpush.msra.mxu0 %v4010
    %v4012 = vand.u32 %v109, 4294901760
    %v4013 = vsub.f32 %v109, %v4012
    %v4014 = vand.u32 %v4013, 4294901760
    %4015 = vmatpush.msra.mxu0 %v4014
    %v4016 = vand.u32 %v108, 4294901760
    %v4017 = vsub.f32 %v108, %v4016
    %v4018 = vand.u32 %v4017, 4294901760
    %4019 = vmatpush.msra.mxu0 %v4018
    %v4020 = vand.u32 %v107, 4294901760
    %v4021 = vsub.f32 %v107, %v4020
    %v4022 = vand.u32 %v4021, 4294901760
    %4023 = vmatpush.msra.mxu0 %v4022
    %v4024 = vand.u32 %v106, 4294901760
    %v4025 = vsub.f32 %v106, %v4024
    %v4026 = vand.u32 %v4025, 4294901760
    %4027 = vmatpush.msra.mxu0 %v4026
    %v4028 = vand.u32 %v105, 4294901760
    %v4029 = vsub.f32 %v105, %v4028
    %v4030 = vand.u32 %v4029, 4294901760
    %4031 = vmatpush.msra.mxu0 %v4030
    %v4032 = vand.u32 %v104, 4294901760
    %v4033 = vsub.f32 %v104, %v4032
    %v4034 = vand.u32 %v4033, 4294901760
    %4035 = vmatpush.msra.mxu0 %v4034
    %v4036 = vand.u32 %v103, 4294901760
    %v4037 = vsub.f32 %v103, %v4036
    %v4038 = vand.u32 %v4037, 4294901760
    %4039 = vmatpush.msra.mxu0 %v4038
    %v4040 = vand.u32 %v102, 4294901760
    %v4041 = vsub.f32 %v102, %v4040
    %v4042 = vand.u32 %v4041, 4294901760
    %4043 = vmatpush.msra.mxu0 %v4042
    %v4044 = vand.u32 %v101, 4294901760
    %v4045 = vsub.f32 %v101, %v4044
    %v4046 = vand.u32 %v4045, 4294901760
    %4047 = vmatpush.msra.mxu0 %v4046
    %v4048 = vand.u32 %v100, 4294901760
    %v4049 = vsub.f32 %v100, %v4048
    %v4050 = vand.u32 %v4049, 4294901760
    %4051 = vmatpush.msra.mxu0 %v4050
    %v4052 = vand.u32 %v99, 4294901760
    %v4053 = vsub.f32 %v99, %v4052
    %v4054 = vand.u32 %v4053, 4294901760
    %4055 = vmatpush.msra.mxu0 %v4054
    %v4056 = vand.u32 %v98, 4294901760
    %v4057 = vsub.f32 %v98, %v4056
    %v4058 = vand.u32 %v4057, 4294901760
    %4059 = vmatpush.msra.mxu0 %v4058
    %v4060 = vand.u32 %v97, 4294901760
    %v4061 = vsub.f32 %v97, %v4060
    %v4062 = vand.u32 %v4061, 4294901760
    %4063 = vmatpush.msra.mxu0 %v4062
    %v4064 = vand.u32 %v96, 4294901760
    %v4065 = vsub.f32 %v96, %v4064
    %v4066 = vand.u32 %v4065, 4294901760
    %4067 = vmatpush.msra.mxu0 %v4066
    %v4068 = vand.u32 %v95, 4294901760
    %v4069 = vsub.f32 %v95, %v4068
    %v4070 = vand.u32 %v4069, 4294901760
    %4071 = vmatpush.msra.mxu0 %v4070
    %v4072 = vand.u32 %v3077, 4294901760
    %4073 = vmatmul.f32.gmra.mxu0 %v4072
    %v4074 = vpop.f32.mrf.mxu0
    %v4075 = vadd.f32 %v4006, %v4074
    %4076 = vdwg.mxu0
    %v4077 = vand.u32 %v110, 4294901760
    %4078 = vmatpush.msra.mxu0 %v4077
    %v4079 = vand.u32 %v109, 4294901760
    %4080 = vmatpush.msra.mxu0 %v4079
    %v4081 = vand.u32 %v108, 4294901760
    %4082 = vmatpush.msra.mxu0 %v4081
    %v4083 = vand.u32 %v107, 4294901760
    %4084 = vmatpush.msra.mxu0 %v4083
    %v4085 = vand.u32 %v106, 4294901760
    %4086 = vmatpush.msra.mxu0 %v4085
    %v4087 = vand.u32 %v105, 4294901760
    %4088 = vmatpush.msra.mxu0 %v4087
    %v4089 = vand.u32 %v104, 4294901760
    %4090 = vmatpush.msra.mxu0 %v4089
    %v4091 = vand.u32 %v103, 4294901760
    %4092 = vmatpush.msra.mxu0 %v4091
    %v4093 = vand.u32 %v102, 4294901760
    %4094 = vmatpush.msra.mxu0 %v4093
    %v4095 = vand.u32 %v101, 4294901760
    %4096 = vmatpush.msra.mxu0 %v4095
    %v4097 = vand.u32 %v100, 4294901760
    %4098 = vmatpush.msra.mxu0 %v4097
    %v4099 = vand.u32 %v99, 4294901760
    %4100 = vmatpush.msra.mxu0 %v4099
    %v4101 = vand.u32 %v98, 4294901760
    %4102 = vmatpush.msra.mxu0 %v4101
    %v4103 = vand.u32 %v97, 4294901760
    %4104 = vmatpush.msra.mxu0 %v4103
    %v4105 = vand.u32 %v96, 4294901760
    %4106 = vmatpush.msra.mxu0 %v4105
    %v4107 = vand.u32 %v95, 4294901760
    %4108 = vmatpush.msra.mxu0 %v4107
    %v4109 = vand.u32 %v3077, 4294901760
    %4110 = vmatmul.f32.gmra.mxu0 %v4109
    %v4111 = vpop.f32.mrf.mxu0
    %v4112 = vadd.f32 %v4075, %v4111
    %4113 = vdwg.mxu0
    %v4114 = vand.u32 %v126, 4294901760
    %4115 = vmatpush.msra.mxu0 %v4114
    %v4116 = vand.u32 %v125, 4294901760
    %4117 = vmatpush.msra.mxu0 %v4116
    %v4118 = vand.u32 %v124, 4294901760
    %4119 = vmatpush.msra.mxu0 %v4118
    %v4120 = vand.u32 %v123, 4294901760
    %4121 = vmatpush.msra.mxu0 %v4120
    %v4122 = vand.u32 %v122, 4294901760
    %4123 = vmatpush.msra.mxu0 %v4122
    %v4124 = vand.u32 %v121, 4294901760
    %4125 = vmatpush.msra.mxu0 %v4124
    %v4126 = vand.u32 %v120, 4294901760
    %4127 = vmatpush.msra.mxu0 %v4126
    %v4128 = vand.u32 %v119, 4294901760
    %4129 = vmatpush.msra.mxu0 %v4128
    %v4130 = vand.u32 %v118, 4294901760
    %4131 = vmatpush.msra.mxu0 %v4130
    %v4132 = vand.u32 %v117, 4294901760
    %4133 = vmatpush.msra.mxu0 %v4132
    %v4134 = vand.u32 %v116, 4294901760
    %4135 = vmatpush.msra.mxu0 %v4134
    %v4136 = vand.u32 %v115, 4294901760
    %4137 = vmatpush.msra.mxu0 %v4136
    %v4138 = vand.u32 %v114, 4294901760
    %4139 = vmatpush.msra.mxu0 %v4138
    %v4140 = vand.u32 %v113, 4294901760
    %4141 = vmatpush.msra.mxu0 %v4140
    %v4142 = vand.u32 %v112, 4294901760
    %4143 = vmatpush.msra.mxu0 %v4142
    %v4144 = vand.u32 %v111, 4294901760
    %4145 = vmatpush.msra.mxu0 %v4144
    %v4146 = vand.u32 %v3078, 4294901760
    %v4147 = vsub.f32 %v3078, %v4146
    %v4148 = vand.u32 %v4147, 4294901760
    %v4149 = vsub.f32 %v4147, %v4148
    %v4150 = vand.u32 %v4149, 4294901760
    %4151 = vmatmul.f32.gmra.mxu0 %v4150
    %v4152 = vpop.f32.mrf.mxu0
    %v4153 = vadd.f32 %v4112, %v4152
    %4154 = vdwg.mxu0
    %v4155 = vand.u32 %v126, 4294901760
    %v4156 = vsub.f32 %v126, %v4155
    %v4157 = vand.u32 %v4156, 4294901760
    %v4158 = vsub.f32 %v4156, %v4157
    %v4159 = vand.u32 %v4158, 4294901760
    %4160 = vmatpush.msra.mxu0 %v4159
    %v4161 = vand.u32 %v125, 4294901760
    %v4162 = vsub.f32 %v125, %v4161
    %v4163 = vand.u32 %v4162, 4294901760
    %v4164 = vsub.f32 %v4162, %v4163
    %v4165 = vand.u32 %v4164, 4294901760
    %4166 = vmatpush.msra.mxu0 %v4165
    %v4167 = vand.u32 %v124, 4294901760
    %v4168 = vsub.f32 %v124, %v4167
    %v4169 = vand.u32 %v4168, 4294901760
    %v4170 = vsub.f32 %v4168, %v4169
    %v4171 = vand.u32 %v4170, 4294901760
    %4172 = vmatpush.msra.mxu0 %v4171
    %v4173 = vand.u32 %v123, 4294901760
    %v4174 = vsub.f32 %v123, %v4173
    %v4175 = vand.u32 %v4174, 4294901760
    %v4176 = vsub.f32 %v4174, %v4175
    %v4177 = vand.u32 %v4176, 4294901760
    %4178 = vmatpush.msra.mxu0 %v4177
    %v4179 = vand.u32 %v122, 4294901760
    %v4180 = vsub.f32 %v122, %v4179
    %v4181 = vand.u32 %v4180, 4294901760
    %v4182 = vsub.f32 %v4180, %v4181
    %v4183 = vand.u32 %v4182, 4294901760
    %4184 = vmatpush.msra.mxu0 %v4183
    %v4185 = vand.u32 %v121, 4294901760
    %v4186 = vsub.f32 %v121, %v4185
    %v4187 = vand.u32 %v4186, 4294901760
    %v4188 = vsub.f32 %v4186, %v4187
    %v4189 = vand.u32 %v4188, 4294901760
    %4190 = vmatpush.msra.mxu0 %v4189
    %v4191 = vand.u32 %v120, 4294901760
    %v4192 = vsub.f32 %v120, %v4191
    %v4193 = vand.u32 %v4192, 4294901760
    %v4194 = vsub.f32 %v4192, %v4193
    %v4195 = vand.u32 %v4194, 4294901760
    %4196 = vmatpush.msra.mxu0 %v4195
    %v4197 = vand.u32 %v119, 4294901760
    %v4198 = vsub.f32 %v119, %v4197
    %v4199 = vand.u32 %v4198, 4294901760
    %v4200 = vsub.f32 %v4198, %v4199
    %v4201 = vand.u32 %v4200, 4294901760
    %4202 = vmatpush.msra.mxu0 %v4201
    %v4203 = vand.u32 %v118, 4294901760
    %v4204 = vsub.f32 %v118, %v4203
    %v4205 = vand.u32 %v4204, 4294901760
    %v4206 = vsub.f32 %v4204, %v4205
    %v4207 = vand.u32 %v4206, 4294901760
    %4208 = vmatpush.msra.mxu0 %v4207
    %v4209 = vand.u32 %v117, 4294901760
    %v4210 = vsub.f32 %v117, %v4209
    %v4211 = vand.u32 %v4210, 4294901760
    %v4212 = vsub.f32 %v4210, %v4211
    %v4213 = vand.u32 %v4212, 4294901760
    %4214 = vmatpush.msra.mxu0 %v4213
    %v4215 = vand.u32 %v116, 4294901760
    %v4216 = vsub.f32 %v116, %v4215
    %v4217 = vand.u32 %v4216, 4294901760
    %v4218 = vsub.f32 %v4216, %v4217
    %v4219 = vand.u32 %v4218, 4294901760
    %4220 = vmatpush.msra.mxu0 %v4219
    %v4221 = vand.u32 %v115, 4294901760
    %v4222 = vsub.f32 %v115, %v4221
    %v4223 = vand.u32 %v4222, 4294901760
    %v4224 = vsub.f32 %v4222, %v4223
    %v4225 = vand.u32 %v4224, 4294901760
    %4226 = vmatpush.msra.mxu0 %v4225
    %v4227 = vand.u32 %v114, 4294901760
    %v4228 = vsub.f32 %v114, %v4227
    %v4229 = vand.u32 %v4228, 4294901760
    %v4230 = vsub.f32 %v4228, %v4229
    %v4231 = vand.u32 %v4230, 4294901760
    %4232 = vmatpush.msra.mxu0 %v4231
    %v4233 = vand.u32 %v113, 4294901760
    %v4234 = vsub.f32 %v113, %v4233
    %v4235 = vand.u32 %v4234, 4294901760
    %v4236 = vsub.f32 %v4234, %v4235
    %v4237 = vand.u32 %v4236, 4294901760
    %4238 = vmatpush.msra.mxu0 %v4237
    %v4239 = vand.u32 %v112, 4294901760
    %v4240 = vsub.f32 %v112, %v4239
    %v4241 = vand.u32 %v4240, 4294901760
    %v4242 = vsub.f32 %v4240, %v4241
    %v4243 = vand.u32 %v4242, 4294901760
    %4244 = vmatpush.msra.mxu0 %v4243
    %v4245 = vand.u32 %v111, 4294901760
    %v4246 = vsub.f32 %v111, %v4245
    %v4247 = vand.u32 %v4246, 4294901760
    %v4248 = vsub.f32 %v4246, %v4247
    %v4249 = vand.u32 %v4248, 4294901760
    %4250 = vmatpush.msra.mxu0 %v4249
    %v4251 = vand.u32 %v3078, 4294901760
    %4252 = vmatmul.f32.gmra.mxu0 %v4251
    %v4253 = vpop.f32.mrf.mxu0
    %v4254 = vadd.f32 %v4153, %v4253
    %4255 = vdwg.mxu0
    %v4256 = vand.u32 %v126, 4294901760
    %v4257 = vsub.f32 %v126, %v4256
    %4258 = vmatpush.msra.mxu0 %v4257
    %v4259 = vand.u32 %v125, 4294901760
    %v4260 = vsub.f32 %v125, %v4259
    %4261 = vmatpush.msra.mxu0 %v4260
    %v4262 = vand.u32 %v124, 4294901760
    %v4263 = vsub.f32 %v124, %v4262
    %4264 = vmatpush.msra.mxu0 %v4263
    %v4265 = vand.u32 %v123, 4294901760
    %v4266 = vsub.f32 %v123, %v4265
    %4267 = vmatpush.msra.mxu0 %v4266
    %v4268 = vand.u32 %v122, 4294901760
    %v4269 = vsub.f32 %v122, %v4268
    %4270 = vmatpush.msra.mxu0 %v4269
    %v4271 = vand.u32 %v121, 4294901760
    %v4272 = vsub.f32 %v121, %v4271
    %4273 = vmatpush.msra.mxu0 %v4272
    %v4274 = vand.u32 %v120, 4294901760
    %v4275 = vsub.f32 %v120, %v4274
    %4276 = vmatpush.msra.mxu0 %v4275
    %v4277 = vand.u32 %v119, 4294901760
    %v4278 = vsub.f32 %v119, %v4277
    %4279 = vmatpush.msra.mxu0 %v4278
    %v4280 = vand.u32 %v118, 4294901760
    %v4281 = vsub.f32 %v118, %v4280
    %4282 = vmatpush.msra.mxu0 %v4281
    %v4283 = vand.u32 %v117, 4294901760
    %v4284 = vsub.f32 %v117, %v4283
    %4285 = vmatpush.msra.mxu0 %v4284
    %v4286 = vand.u32 %v116, 4294901760
    %v4287 = vsub.f32 %v116, %v4286
    %4288 = vmatpush.msra.mxu0 %v4287
    %v4289 = vand.u32 %v115, 4294901760
    %v4290 = vsub.f32 %v115, %v4289
    %4291 = vmatpush.msra.mxu0 %v4290
    %v4292 = vand.u32 %v114, 4294901760
    %v4293 = vsub.f32 %v114, %v4292
    %4294 = vmatpush.msra.mxu0 %v4293
    %v4295 = vand.u32 %v113, 4294901760
    %v4296 = vsub.f32 %v113, %v4295
    %4297 = vmatpush.msra.mxu0 %v4296
    %v4298 = vand.u32 %v112, 4294901760
    %v4299 = vsub.f32 %v112, %v4298
    %4300 = vmatpush.msra.mxu0 %v4299
    %v4301 = vand.u32 %v111, 4294901760
    %v4302 = vsub.f32 %v111, %v4301
    %4303 = vmatpush.msra.mxu0 %v4302
    %v4304 = vand.u32 %v3078, 4294901760
    %v4305 = vsub.f32 %v3078, %v4304
    %4306 = vmatmul.f32.gmra.mxu0 %v4305
    %v4307 = vpop.f32.mrf.mxu0
    %v4308 = vadd.f32 %v4254, %v4307
    %4309 = vdwg.mxu0
    %v4310 = vand.u32 %v126, 4294901760
    %4311 = vmatpush.msra.mxu0 %v4310
    %v4312 = vand.u32 %v125, 4294901760
    %4313 = vmatpush.msra.mxu0 %v4312
    %v4314 = vand.u32 %v124, 4294901760
    %4315 = vmatpush.msra.mxu0 %v4314
    %v4316 = vand.u32 %v123, 4294901760
    %4317 = vmatpush.msra.mxu0 %v4316
    %v4318 = vand.u32 %v122, 4294901760
    %4319 = vmatpush.msra.mxu0 %v4318
    %v4320 = vand.u32 %v121, 4294901760
    %4321 = vmatpush.msra.mxu0 %v4320
    %v4322 = vand.u32 %v120, 4294901760
    %4323 = vmatpush.msra.mxu0 %v4322
    %v4324 = vand.u32 %v119, 4294901760
    %4325 = vmatpush.msra.mxu0 %v4324
    %v4326 = vand.u32 %v118, 4294901760
    %4327 = vmatpush.msra.mxu0 %v4326
    %v4328 = vand.u32 %v117, 4294901760
    %4329 = vmatpush.msra.mxu0 %v4328
    %v4330 = vand.u32 %v116, 4294901760
    %4331 = vmatpush.msra.mxu0 %v4330
    %v4332 = vand.u32 %v115, 4294901760
    %4333 = vmatpush.msra.mxu0 %v4332
    %v4334 = vand.u32 %v114, 4294901760
    %4335 = vmatpush.msra.mxu0 %v4334
    %v4336 = vand.u32 %v113, 4294901760
    %4337 = vmatpush.msra.mxu0 %v4336
    %v4338 = vand.u32 %v112, 4294901760
    %4339 = vmatpush.msra.mxu0 %v4338
    %v4340 = vand.u32 %v111, 4294901760
    %4341 = vmatpush.msra.mxu0 %v4340
    %v4342 = vand.u32 %v3078, 4294901760
    %v4343 = vsub.f32 %v3078, %v4342
    %v4344 = vand.u32 %v4343, 4294901760
    %4345 = vmatmul.f32.gmra.mxu0 %v4344
    %v4346 = vpop.f32.mrf.mxu0
    %v4347 = vadd.f32 %v4308, %v4346
    %4348 = vdwg.mxu0
    %v4349 = vand.u32 %v126, 4294901760
    %v4350 = vsub.f32 %v126, %v4349
    %v4351 = vand.u32 %v4350, 4294901760
    %4352 = vmatpush.msra.mxu0 %v4351
    %v4353 = vand.u32 %v125, 4294901760
    %v4354 = vsub.f32 %v125, %v4353
    %v4355 = vand.u32 %v4354, 4294901760
    %4356 = vmatpush.msra.mxu0 %v4355
    %v4357 = vand.u32 %v124, 4294901760
    %v4358 = vsub.f32 %v124, %v4357
    %v4359 = vand.u32 %v4358, 4294901760
    %4360 = vmatpush.msra.mxu0 %v4359
    %v4361 = vand.u32 %v123, 4294901760
    %v4362 = vsub.f32 %v123, %v4361
    %v4363 = vand.u32 %v4362, 4294901760
    %4364 = vmatpush.msra.mxu0 %v4363
    %v4365 = vand.u32 %v122, 4294901760
    %v4366 = vsub.f32 %v122, %v4365
    %v4367 = vand.u32 %v4366, 4294901760
    %4368 = vmatpush.msra.mxu0 %v4367
    %v4369 = vand.u32 %v121, 4294901760
    %v4370 = vsub.f32 %v121, %v4369
    %v4371 = vand.u32 %v4370, 4294901760
    %4372 = vmatpush.msra.mxu0 %v4371
    %v4373 = vand.u32 %v120, 4294901760
    %v4374 = vsub.f32 %v120, %v4373
    %v4375 = vand.u32 %v4374, 4294901760
    %4376 = vmatpush.msra.mxu0 %v4375
    %v4377 = vand.u32 %v119, 4294901760
    %v4378 = vsub.f32 %v119, %v4377
    %v4379 = vand.u32 %v4378, 4294901760
    %4380 = vmatpush.msra.mxu0 %v4379
    %v4381 = vand.u32 %v118, 4294901760
    %v4382 = vsub.f32 %v118, %v4381
    %v4383 = vand.u32 %v4382, 4294901760
    %4384 = vmatpush.msra.mxu0 %v4383
    %v4385 = vand.u32 %v117, 4294901760
    %v4386 = vsub.f32 %v117, %v4385
    %v4387 = vand.u32 %v4386, 4294901760
    %4388 = vmatpush.msra.mxu0 %v4387
    %v4389 = vand.u32 %v116, 4294901760
    %v4390 = vsub.f32 %v116, %v4389
    %v4391 = vand.u32 %v4390, 4294901760
    %4392 = vmatpush.msra.mxu0 %v4391
    %v4393 = vand.u32 %v115, 4294901760
    %v4394 = vsub.f32 %v115, %v4393
    %v4395 = vand.u32 %v4394, 4294901760
    %4396 = vmatpush.msra.mxu0 %v4395
    %v4397 = vand.u32 %v114, 4294901760
    %v4398 = vsub.f32 %v114, %v4397
    %v4399 = vand.u32 %v4398, 4294901760
    %4400 = vmatpush.msra.mxu0 %v4399
    %v4401 = vand.u32 %v113, 4294901760
    %v4402 = vsub.f32 %v113, %v4401
    %v4403 = vand.u32 %v4402, 4294901760
    %4404 = vmatpush.msra.mxu0 %v4403
    %v4405 = vand.u32 %v112, 4294901760
    %v4406 = vsub.f32 %v112, %v4405
    %v4407 = vand.u32 %v4406, 4294901760
    %4408 = vmatpush.msra.mxu0 %v4407
    %v4409 = vand.u32 %v111, 4294901760
    %v4410 = vsub.f32 %v111, %v4409
    %v4411 = vand.u32 %v4410, 4294901760
    %4412 = vmatpush.msra.mxu0 %v4411
    %v4413 = vand.u32 %v3078, 4294901760
    %4414 = vmatmul.f32.gmra.mxu0 %v4413
    %v4415 = vpop.f32.mrf.mxu0
    %v4416 = vadd.f32 %v4347, %v4415
    %4417 = vdwg.mxu0
    %v4418 = vand.u32 %v126, 4294901760
    %4419 = vmatpush.msra.mxu0 %v4418
    %v4420 = vand.u32 %v125, 4294901760
    %4421 = vmatpush.msra.mxu0 %v4420
    %v4422 = vand.u32 %v124, 4294901760
    %4423 = vmatpush.msra.mxu0 %v4422
    %v4424 = vand.u32 %v123, 4294901760
    %4425 = vmatpush.msra.mxu0 %v4424
    %v4426 = vand.u32 %v122, 4294901760
    %4427 = vmatpush.msra.mxu0 %v4426
    %v4428 = vand.u32 %v121, 4294901760
    %4429 = vmatpush.msra.mxu0 %v4428
    %v4430 = vand.u32 %v120, 4294901760
    %4431 = vmatpush.msra.mxu0 %v4430
    %v4432 = vand.u32 %v119, 4294901760
    %4433 = vmatpush.msra.mxu0 %v4432
    %v4434 = vand.u32 %v118, 4294901760
    %4435 = vmatpush.msra.mxu0 %v4434
    %v4436 = vand.u32 %v117, 4294901760
    %4437 = vmatpush.msra.mxu0 %v4436
    %v4438 = vand.u32 %v116, 4294901760
    %4439 = vmatpush.msra.mxu0 %v4438
    %v4440 = vand.u32 %v115, 4294901760
    %4441 = vmatpush.msra.mxu0 %v4440
    %v4442 = vand.u32 %v114, 4294901760
    %4443 = vmatpush.msra.mxu0 %v4442
    %v4444 = vand.u32 %v113, 4294901760
    %4445 = vmatpush.msra.mxu0 %v4444
    %v4446 = vand.u32 %v112, 4294901760
    %4447 = vmatpush.msra.mxu0 %v4446
    %v4448 = vand.u32 %v111, 4294901760
    %4449 = vmatpush.msra.mxu0 %v4448
    %v4450 = vand.u32 %v3078, 4294901760
    %4451 = vmatmul.f32.gmra.mxu0 %v4450
    %v4452 = vpop.f32.mrf.mxu0
    %v4453 = vadd.f32 %v4416, %v4452
    %4454 = vdwg.mxu0
    %v4455 = vand.u32 %v142, 4294901760
    %4456 = vmatpush.msra.mxu0 %v4455
    %v4457 = vand.u32 %v141, 4294901760
    %4458 = vmatpush.msra.mxu0 %v4457
    %v4459 = vand.u32 %v140, 4294901760
    %4460 = vmatpush.msra.mxu0 %v4459
    %v4461 = vand.u32 %v139, 4294901760
    %4462 = vmatpush.msra.mxu0 %v4461
    %v4463 = vand.u32 %v138, 4294901760
    %4464 = vmatpush.msra.mxu0 %v4463
    %v4465 = vand.u32 %v137, 4294901760
    %4466 = vmatpush.msra.mxu0 %v4465
    %v4467 = vand.u32 %v136, 4294901760
    %4468 = vmatpush.msra.mxu0 %v4467
    %v4469 = vand.u32 %v135, 4294901760
    %4470 = vmatpush.msra.mxu0 %v4469
    %v4471 = vand.u32 %v134, 4294901760
    %4472 = vmatpush.msra.mxu0 %v4471
    %v4473 = vand.u32 %v133, 4294901760
    %4474 = vmatpush.msra.mxu0 %v4473
    %v4475 = vand.u32 %v132, 4294901760
    %4476 = vmatpush.msra.mxu0 %v4475
    %v4477 = vand.u32 %v131, 4294901760
    %4478 = vmatpush.msra.mxu0 %v4477
    %v4479 = vand.u32 %v130, 4294901760
    %4480 = vmatpush.msra.mxu0 %v4479
    %v4481 = vand.u32 %v129, 4294901760
    %4482 = vmatpush.msra.mxu0 %v4481
    %v4483 = vand.u32 %v128, 4294901760
    %4484 = vmatpush.msra.mxu0 %v4483
    %v4485 = vand.u32 %v127, 4294901760
    %4486 = vmatpush.msra.mxu0 %v4485
    %v4487 = vand.u32 %v3079, 4294901760
    %v4488 = vsub.f32 %v3079, %v4487
    %v4489 = vand.u32 %v4488, 4294901760
    %v4490 = vsub.f32 %v4488, %v4489
    %v4491 = vand.u32 %v4490, 4294901760
    %4492 = vmatmul.f32.gmra.mxu0 %v4491
    %v4493 = vpop.f32.mrf.mxu0
    %v4494 = vadd.f32 %v4453, %v4493
    %4495 = vdwg.mxu0
    %v4496 = vand.u32 %v142, 4294901760
    %v4497 = vsub.f32 %v142, %v4496
    %v4498 = vand.u32 %v4497, 4294901760
    %v4499 = vsub.f32 %v4497, %v4498
    %v4500 = vand.u32 %v4499, 4294901760
    %4501 = vmatpush.msra.mxu0 %v4500
    %v4502 = vand.u32 %v141, 4294901760
    %v4503 = vsub.f32 %v141, %v4502
    %v4504 = vand.u32 %v4503, 4294901760
    %v4505 = vsub.f32 %v4503, %v4504
    %v4506 = vand.u32 %v4505, 4294901760
    %4507 = vmatpush.msra.mxu0 %v4506
    %v4508 = vand.u32 %v140, 4294901760
    %v4509 = vsub.f32 %v140, %v4508
    %v4510 = vand.u32 %v4509, 4294901760
    %v4511 = vsub.f32 %v4509, %v4510
    %v4512 = vand.u32 %v4511, 4294901760
    %4513 = vmatpush.msra.mxu0 %v4512
    %v4514 = vand.u32 %v139, 4294901760
    %v4515 = vsub.f32 %v139, %v4514
    %v4516 = vand.u32 %v4515, 4294901760
    %v4517 = vsub.f32 %v4515, %v4516
    %v4518 = vand.u32 %v4517, 4294901760
    %4519 = vmatpush.msra.mxu0 %v4518
    %v4520 = vand.u32 %v138, 4294901760
    %v4521 = vsub.f32 %v138, %v4520
    %v4522 = vand.u32 %v4521, 4294901760
    %v4523 = vsub.f32 %v4521, %v4522
    %v4524 = vand.u32 %v4523, 4294901760
    %4525 = vmatpush.msra.mxu0 %v4524
    %v4526 = vand.u32 %v137, 4294901760
    %v4527 = vsub.f32 %v137, %v4526
    %v4528 = vand.u32 %v4527, 4294901760
    %v4529 = vsub.f32 %v4527, %v4528
    %v4530 = vand.u32 %v4529, 4294901760
    %4531 = vmatpush.msra.mxu0 %v4530
    %v4532 = vand.u32 %v136, 4294901760
    %v4533 = vsub.f32 %v136, %v4532
    %v4534 = vand.u32 %v4533, 4294901760
    %v4535 = vsub.f32 %v4533, %v4534
    %v4536 = vand.u32 %v4535, 4294901760
    %4537 = vmatpush.msra.mxu0 %v4536
    %v4538 = vand.u32 %v135, 4294901760
    %v4539 = vsub.f32 %v135, %v4538
    %v4540 = vand.u32 %v4539, 4294901760
    %v4541 = vsub.f32 %v4539, %v4540
    %v4542 = vand.u32 %v4541, 4294901760
    %4543 = vmatpush.msra.mxu0 %v4542
    %v4544 = vand.u32 %v134, 4294901760
    %v4545 = vsub.f32 %v134, %v4544
    %v4546 = vand.u32 %v4545, 4294901760
    %v4547 = vsub.f32 %v4545, %v4546
    %v4548 = vand.u32 %v4547, 4294901760
    %4549 = vmatpush.msra.mxu0 %v4548
    %v4550 = vand.u32 %v133, 4294901760
    %v4551 = vsub.f32 %v133, %v4550
    %v4552 = vand.u32 %v4551, 4294901760
    %v4553 = vsub.f32 %v4551, %v4552
    %v4554 = vand.u32 %v4553, 4294901760
    %4555 = vmatpush.msra.mxu0 %v4554
    %v4556 = vand.u32 %v132, 4294901760
    %v4557 = vsub.f32 %v132, %v4556
    %v4558 = vand.u32 %v4557, 4294901760
    %v4559 = vsub.f32 %v4557, %v4558
    %v4560 = vand.u32 %v4559, 4294901760
    %4561 = vmatpush.msra.mxu0 %v4560
    %v4562 = vand.u32 %v131, 4294901760
    %v4563 = vsub.f32 %v131, %v4562
    %v4564 = vand.u32 %v4563, 4294901760
    %v4565 = vsub.f32 %v4563, %v4564
    %v4566 = vand.u32 %v4565, 4294901760
    %4567 = vmatpush.msra.mxu0 %v4566
    %v4568 = vand.u32 %v130, 4294901760
    %v4569 = vsub.f32 %v130, %v4568
    %v4570 = vand.u32 %v4569, 4294901760
    %v4571 = vsub.f32 %v4569, %v4570
    %v4572 = vand.u32 %v4571, 4294901760
    %4573 = vmatpush.msra.mxu0 %v4572
    %v4574 = vand.u32 %v129, 4294901760
    %v4575 = vsub.f32 %v129, %v4574
    %v4576 = vand.u32 %v4575, 4294901760
    %v4577 = vsub.f32 %v4575, %v4576
    %v4578 = vand.u32 %v4577, 4294901760
    %4579 = vmatpush.msra.mxu0 %v4578
    %v4580 = vand.u32 %v128, 4294901760
    %v4581 = vsub.f32 %v128, %v4580
    %v4582 = vand.u32 %v4581, 4294901760
    %v4583 = vsub.f32 %v4581, %v4582
    %v4584 = vand.u32 %v4583, 4294901760
    %4585 = vmatpush.msra.mxu0 %v4584
    %v4586 = vand.u32 %v127, 4294901760
    %v4587 = vsub.f32 %v127, %v4586
    %v4588 = vand.u32 %v4587, 4294901760
    %v4589 = vsub.f32 %v4587, %v4588
    %v4590 = vand.u32 %v4589, 4294901760
    %4591 = vmatpush.msra.mxu0 %v4590
    %v4592 = vand.u32 %v3079, 4294901760
    %4593 = vmatmul.f32.gmra.mxu0 %v4592
    %v4594 = vpop.f32.mrf.mxu0
    %v4595 = vadd.f32 %v4494, %v4594
    %4596 = vdwg.mxu0
    %v4597 = vand.u32 %v142, 4294901760
    %v4598 = vsub.f32 %v142, %v4597
    %4599 = vmatpush.msra.mxu0 %v4598
    %v4600 = vand.u32 %v141, 4294901760
    %v4601 = vsub.f32 %v141, %v4600
    %4602 = vmatpush.msra.mxu0 %v4601
    %v4603 = vand.u32 %v140, 4294901760
    %v4604 = vsub.f32 %v140, %v4603
    %4605 = vmatpush.msra.mxu0 %v4604
    %v4606 = vand.u32 %v139, 4294901760
    %v4607 = vsub.f32 %v139, %v4606
    %4608 = vmatpush.msra.mxu0 %v4607
    %v4609 = vand.u32 %v138, 4294901760
    %v4610 = vsub.f32 %v138, %v4609
    %4611 = vmatpush.msra.mxu0 %v4610
    %v4612 = vand.u32 %v137, 4294901760
    %v4613 = vsub.f32 %v137, %v4612
    %4614 = vmatpush.msra.mxu0 %v4613
    %v4615 = vand.u32 %v136, 4294901760
    %v4616 = vsub.f32 %v136, %v4615
    %4617 = vmatpush.msra.mxu0 %v4616
    %v4618 = vand.u32 %v135, 4294901760
    %v4619 = vsub.f32 %v135, %v4618
    %4620 = vmatpush.msra.mxu0 %v4619
    %v4621 = vand.u32 %v134, 4294901760
    %v4622 = vsub.f32 %v134, %v4621
    %4623 = vmatpush.msra.mxu0 %v4622
    %v4624 = vand.u32 %v133, 4294901760
    %v4625 = vsub.f32 %v133, %v4624
    %4626 = vmatpush.msra.mxu0 %v4625
    %v4627 = vand.u32 %v132, 4294901760
    %v4628 = vsub.f32 %v132, %v4627
    %4629 = vmatpush.msra.mxu0 %v4628
    %v4630 = vand.u32 %v131, 4294901760
    %v4631 = vsub.f32 %v131, %v4630
    %4632 = vmatpush.msra.mxu0 %v4631
    %v4633 = vand.u32 %v130, 4294901760
    %v4634 = vsub.f32 %v130, %v4633
    %4635 = vmatpush.msra.mxu0 %v4634
    %v4636 = vand.u32 %v129, 4294901760
    %v4637 = vsub.f32 %v129, %v4636
    %4638 = vmatpush.msra.mxu0 %v4637
    %v4639 = vand.u32 %v128, 4294901760
    %v4640 = vsub.f32 %v128, %v4639
    %4641 = vmatpush.msra.mxu0 %v4640
    %v4642 = vand.u32 %v127, 4294901760
    %v4643 = vsub.f32 %v127, %v4642
    %4644 = vmatpush.msra.mxu0 %v4643
    %v4645 = vand.u32 %v3079, 4294901760
    %v4646 = vsub.f32 %v3079, %v4645
    %4647 = vmatmul.f32.gmra.mxu0 %v4646
    %v4648 = vpop.f32.mrf.mxu0
    %v4649 = vadd.f32 %v4595, %v4648
    %4650 = vdwg.mxu0
    %v4651 = vand.u32 %v142, 4294901760
    %4652 = vmatpush.msra.mxu0 %v4651
    %v4653 = vand.u32 %v141, 4294901760
    %4654 = vmatpush.msra.mxu0 %v4653
    %v4655 = vand.u32 %v140, 4294901760
    %4656 = vmatpush.msra.mxu0 %v4655
    %v4657 = vand.u32 %v139, 4294901760
    %4658 = vmatpush.msra.mxu0 %v4657
    %v4659 = vand.u32 %v138, 4294901760
    %4660 = vmatpush.msra.mxu0 %v4659
    %v4661 = vand.u32 %v137, 4294901760
    %4662 = vmatpush.msra.mxu0 %v4661
    %v4663 = vand.u32 %v136, 4294901760
    %4664 = vmatpush.msra.mxu0 %v4663
    %v4665 = vand.u32 %v135, 4294901760
    %4666 = vmatpush.msra.mxu0 %v4665
    %v4667 = vand.u32 %v134, 4294901760
    %4668 = vmatpush.msra.mxu0 %v4667
    %v4669 = vand.u32 %v133, 4294901760
    %4670 = vmatpush.msra.mxu0 %v4669
    %v4671 = vand.u32 %v132, 4294901760
    %4672 = vmatpush.msra.mxu0 %v4671
    %v4673 = vand.u32 %v131, 4294901760
    %4674 = vmatpush.msra.mxu0 %v4673
    %v4675 = vand.u32 %v130, 4294901760
    %4676 = vmatpush.msra.mxu0 %v4675
    %v4677 = vand.u32 %v129, 4294901760
    %4678 = vmatpush.msra.mxu0 %v4677
    %v4679 = vand.u32 %v128, 4294901760
    %4680 = vmatpush.msra.mxu0 %v4679
    %v4681 = vand.u32 %v127, 4294901760
    %4682 = vmatpush.msra.mxu0 %v4681
    %v4683 = vand.u32 %v3079, 4294901760
    %v4684 = vsub.f32 %v3079, %v4683
    %v4685 = vand.u32 %v4684, 4294901760
    %4686 = vmatmul.f32.gmra.mxu0 %v4685
    %v4687 = vpop.f32.mrf.mxu0
    %v4688 = vadd.f32 %v4649, %v4687
    %4689 = vdwg.mxu0
    %v4690 = vand.u32 %v142, 4294901760
    %v4691 = vsub.f32 %v142, %v4690
    %v4692 = vand.u32 %v4691, 4294901760
    %4693 = vmatpush.msra.mxu0 %v4692
    %v4694 = vand.u32 %v141, 4294901760
    %v4695 = vsub.f32 %v141, %v4694
    %v4696 = vand.u32 %v4695, 4294901760
    %4697 = vmatpush.msra.mxu0 %v4696
    %v4698 = vand.u32 %v140, 4294901760
    %v4699 = vsub.f32 %v140, %v4698
    %v4700 = vand.u32 %v4699, 4294901760
    %4701 = vmatpush.msra.mxu0 %v4700
    %v4702 = vand.u32 %v139, 4294901760
    %v4703 = vsub.f32 %v139, %v4702
    %v4704 = vand.u32 %v4703, 4294901760
    %4705 = vmatpush.msra.mxu0 %v4704
    %v4706 = vand.u32 %v138, 4294901760
    %v4707 = vsub.f32 %v138, %v4706
    %v4708 = vand.u32 %v4707, 4294901760
    %4709 = vmatpush.msra.mxu0 %v4708
    %v4710 = vand.u32 %v137, 4294901760
    %v4711 = vsub.f32 %v137, %v4710
    %v4712 = vand.u32 %v4711, 4294901760
    %4713 = vmatpush.msra.mxu0 %v4712
    %v4714 = vand.u32 %v136, 4294901760
    %v4715 = vsub.f32 %v136, %v4714
    %v4716 = vand.u32 %v4715, 4294901760
    %4717 = vmatpush.msra.mxu0 %v4716
    %v4718 = vand.u32 %v135, 4294901760
    %v4719 = vsub.f32 %v135, %v4718
    %v4720 = vand.u32 %v4719, 4294901760
    %4721 = vmatpush.msra.mxu0 %v4720
    %v4722 = vand.u32 %v134, 4294901760
    %v4723 = vsub.f32 %v134, %v4722
    %v4724 = vand.u32 %v4723, 4294901760
    %4725 = vmatpush.msra.mxu0 %v4724
    %v4726 = vand.u32 %v133, 4294901760
    %v4727 = vsub.f32 %v133, %v4726
    %v4728 = vand.u32 %v4727, 4294901760
    %4729 = vmatpush.msra.mxu0 %v4728
    %v4730 = vand.u32 %v132, 4294901760
    %v4731 = vsub.f32 %v132, %v4730
    %v4732 = vand.u32 %v4731, 4294901760
    %4733 = vmatpush.msra.mxu0 %v4732
    %v4734 = vand.u32 %v131, 4294901760
    %v4735 = vsub.f32 %v131, %v4734
    %v4736 = vand.u32 %v4735, 4294901760
    %4737 = vmatpush.msra.mxu0 %v4736
    %v4738 = vand.u32 %v130, 4294901760
    %v4739 = vsub.f32 %v130, %v4738
    %v4740 = vand.u32 %v4739, 4294901760
    %4741 = vmatpush.msra.mxu0 %v4740
    %v4742 = vand.u32 %v129, 4294901760
    %v4743 = vsub.f32 %v129, %v4742
    %v4744 = vand.u32 %v4743, 4294901760
    %4745 = vmatpush.msra.mxu0 %v4744
    %v4746 = vand.u32 %v128, 4294901760
    %v4747 = vsub.f32 %v128, %v4746
    %v4748 = vand.u32 %v4747, 4294901760
    %4749 = vmatpush.msra.mxu0 %v4748
    %v4750 = vand.u32 %v127, 4294901760
    %v4751 = vsub.f32 %v127, %v4750
    %v4752 = vand.u32 %v4751, 4294901760
    %4753 = vmatpush.msra.mxu0 %v4752
    %v4754 = vand.u32 %v3079, 4294901760
    %4755 = vmatmul.f32.gmra.mxu0 %v4754
    %v4756 = vpop.f32.mrf.mxu0
    %v4757 = vadd.f32 %v4688, %v4756
    %4758 = vdwg.mxu0
    %v4759 = vand.u32 %v142, 4294901760
    %4760 = vmatpush.msra.mxu0 %v4759
    %v4761 = vand.u32 %v141, 4294901760
    %4762 = vmatpush.msra.mxu0 %v4761
    %v4763 = vand.u32 %v140, 4294901760
    %4764 = vmatpush.msra.mxu0 %v4763
    %v4765 = vand.u32 %v139, 4294901760
    %4766 = vmatpush.msra.mxu0 %v4765
    %v4767 = vand.u32 %v138, 4294901760
    %4768 = vmatpush.msra.mxu0 %v4767
    %v4769 = vand.u32 %v137, 4294901760
    %4770 = vmatpush.msra.mxu0 %v4769
    %v4771 = vand.u32 %v136, 4294901760
    %4772 = vmatpush.msra.mxu0 %v4771
    %v4773 = vand.u32 %v135, 4294901760
    %4774 = vmatpush.msra.mxu0 %v4773
    %v4775 = vand.u32 %v134, 4294901760
    %4776 = vmatpush.msra.mxu0 %v4775
    %v4777 = vand.u32 %v133, 4294901760
    %4778 = vmatpush.msra.mxu0 %v4777
    %v4779 = vand.u32 %v132, 4294901760
    %4780 = vmatpush.msra.mxu0 %v4779
    %v4781 = vand.u32 %v131, 4294901760
    %4782 = vmatpush.msra.mxu0 %v4781
    %v4783 = vand.u32 %v130, 4294901760
    %4784 = vmatpush.msra.mxu0 %v4783
    %v4785 = vand.u32 %v129, 4294901760
    %4786 = vmatpush.msra.mxu0 %v4785
    %v4787 = vand.u32 %v128, 4294901760
    %4788 = vmatpush.msra.mxu0 %v4787
    %v4789 = vand.u32 %v127, 4294901760
    %4790 = vmatpush.msra.mxu0 %v4789
    %v4791 = vand.u32 %v3079, 4294901760
    %4792 = vmatmul.f32.gmra.mxu0 %v4791
    %v4793 = vpop.f32.mrf.mxu0
    %v4794 = vadd.f32 %v4757, %v4793
    %4795 = vdwg.mxu0
    %v4796 = vand.u32 %v158, 4294901760
    %4797 = vmatpush.msra.mxu0 %v4796
    %v4798 = vand.u32 %v157, 4294901760
    %4799 = vmatpush.msra.mxu0 %v4798
    %v4800 = vand.u32 %v156, 4294901760
    %4801 = vmatpush.msra.mxu0 %v4800
    %v4802 = vand.u32 %v155, 4294901760
    %4803 = vmatpush.msra.mxu0 %v4802
    %v4804 = vand.u32 %v154, 4294901760
    %4805 = vmatpush.msra.mxu0 %v4804
    %v4806 = vand.u32 %v153, 4294901760
    %4807 = vmatpush.msra.mxu0 %v4806
    %v4808 = vand.u32 %v152, 4294901760
    %4809 = vmatpush.msra.mxu0 %v4808
    %v4810 = vand.u32 %v151, 4294901760
    %4811 = vmatpush.msra.mxu0 %v4810
    %v4812 = vand.u32 %v150, 4294901760
    %4813 = vmatpush.msra.mxu0 %v4812
    %v4814 = vand.u32 %v149, 4294901760
    %4815 = vmatpush.msra.mxu0 %v4814
    %v4816 = vand.u32 %v148, 4294901760
    %4817 = vmatpush.msra.mxu0 %v4816
    %v4818 = vand.u32 %v147, 4294901760
    %4819 = vmatpush.msra.mxu0 %v4818
    %v4820 = vand.u32 %v146, 4294901760
    %4821 = vmatpush.msra.mxu0 %v4820
    %v4822 = vand.u32 %v145, 4294901760
    %4823 = vmatpush.msra.mxu0 %v4822
    %v4824 = vand.u32 %v144, 4294901760
    %4825 = vmatpush.msra.mxu0 %v4824
    %v4826 = vand.u32 %v143, 4294901760
    %4827 = vmatpush.msra.mxu0 %v4826
    %v4828 = vand.u32 %v3080, 4294901760
    %v4829 = vsub.f32 %v3080, %v4828
    %v4830 = vand.u32 %v4829, 4294901760
    %v4831 = vsub.f32 %v4829, %v4830
    %v4832 = vand.u32 %v4831, 4294901760
    %4833 = vmatmul.f32.gmra.mxu0 %v4832
    %v4834 = vpop.f32.mrf.mxu0
    %v4835 = vadd.f32 %v4794, %v4834
    %4836 = vdwg.mxu0
    %v4837 = vand.u32 %v158, 4294901760
    %v4838 = vsub.f32 %v158, %v4837
    %v4839 = vand.u32 %v4838, 4294901760
    %v4840 = vsub.f32 %v4838, %v4839
    %v4841 = vand.u32 %v4840, 4294901760
    %4842 = vmatpush.msra.mxu0 %v4841
    %v4843 = vand.u32 %v157, 4294901760
    %v4844 = vsub.f32 %v157, %v4843
    %v4845 = vand.u32 %v4844, 4294901760
    %v4846 = vsub.f32 %v4844, %v4845
    %v4847 = vand.u32 %v4846, 4294901760
    %4848 = vmatpush.msra.mxu0 %v4847
    %v4849 = vand.u32 %v156, 4294901760
    %v4850 = vsub.f32 %v156, %v4849
    %v4851 = vand.u32 %v4850, 4294901760
    %v4852 = vsub.f32 %v4850, %v4851
    %v4853 = vand.u32 %v4852, 4294901760
    %4854 = vmatpush.msra.mxu0 %v4853
    %v4855 = vand.u32 %v155, 4294901760
    %v4856 = vsub.f32 %v155, %v4855
    %v4857 = vand.u32 %v4856, 4294901760
    %v4858 = vsub.f32 %v4856, %v4857
    %v4859 = vand.u32 %v4858, 4294901760
    %4860 = vmatpush.msra.mxu0 %v4859
    %v4861 = vand.u32 %v154, 4294901760
    %v4862 = vsub.f32 %v154, %v4861
    %v4863 = vand.u32 %v4862, 4294901760
    %v4864 = vsub.f32 %v4862, %v4863
    %v4865 = vand.u32 %v4864, 4294901760
    %4866 = vmatpush.msra.mxu0 %v4865
    %v4867 = vand.u32 %v153, 4294901760
    %v4868 = vsub.f32 %v153, %v4867
    %v4869 = vand.u32 %v4868, 4294901760
    %v4870 = vsub.f32 %v4868, %v4869
    %v4871 = vand.u32 %v4870, 4294901760
    %4872 = vmatpush.msra.mxu0 %v4871
    %v4873 = vand.u32 %v152, 4294901760
    %v4874 = vsub.f32 %v152, %v4873
    %v4875 = vand.u32 %v4874, 4294901760
    %v4876 = vsub.f32 %v4874, %v4875
    %v4877 = vand.u32 %v4876, 4294901760
    %4878 = vmatpush.msra.mxu0 %v4877
    %v4879 = vand.u32 %v151, 4294901760
    %v4880 = vsub.f32 %v151, %v4879
    %v4881 = vand.u32 %v4880, 4294901760
    %v4882 = vsub.f32 %v4880, %v4881
    %v4883 = vand.u32 %v4882, 4294901760
    %4884 = vmatpush.msra.mxu0 %v4883
    %v4885 = vand.u32 %v150, 4294901760
    %v4886 = vsub.f32 %v150, %v4885
    %v4887 = vand.u32 %v4886, 4294901760
    %v4888 = vsub.f32 %v4886, %v4887
    %v4889 = vand.u32 %v4888, 4294901760
    %4890 = vmatpush.msra.mxu0 %v4889
    %v4891 = vand.u32 %v149, 4294901760
    %v4892 = vsub.f32 %v149, %v4891
    %v4893 = vand.u32 %v4892, 4294901760
    %v4894 = vsub.f32 %v4892, %v4893
    %v4895 = vand.u32 %v4894, 4294901760
    %4896 = vmatpush.msra.mxu0 %v4895
    %v4897 = vand.u32 %v148, 4294901760
    %v4898 = vsub.f32 %v148, %v4897
    %v4899 = vand.u32 %v4898, 4294901760
    %v4900 = vsub.f32 %v4898, %v4899
    %v4901 = vand.u32 %v4900, 4294901760
    %4902 = vmatpush.msra.mxu0 %v4901
    %v4903 = vand.u32 %v147, 4294901760
    %v4904 = vsub.f32 %v147, %v4903
    %v4905 = vand.u32 %v4904, 4294901760
    %v4906 = vsub.f32 %v4904, %v4905
    %v4907 = vand.u32 %v4906, 4294901760
    %4908 = vmatpush.msra.mxu0 %v4907
    %v4909 = vand.u32 %v146, 4294901760
    %v4910 = vsub.f32 %v146, %v4909
    %v4911 = vand.u32 %v4910, 4294901760
    %v4912 = vsub.f32 %v4910, %v4911
    %v4913 = vand.u32 %v4912, 4294901760
    %4914 = vmatpush.msra.mxu0 %v4913
    %v4915 = vand.u32 %v145, 4294901760
    %v4916 = vsub.f32 %v145, %v4915
    %v4917 = vand.u32 %v4916, 4294901760
    %v4918 = vsub.f32 %v4916, %v4917
    %v4919 = vand.u32 %v4918, 4294901760
    %4920 = vmatpush.msra.mxu0 %v4919
    %v4921 = vand.u32 %v144, 4294901760
    %v4922 = vsub.f32 %v144, %v4921
    %v4923 = vand.u32 %v4922, 4294901760
    %v4924 = vsub.f32 %v4922, %v4923
    %v4925 = vand.u32 %v4924, 4294901760
    %4926 = vmatpush.msra.mxu0 %v4925
    %v4927 = vand.u32 %v143, 4294901760
    %v4928 = vsub.f32 %v143, %v4927
    %v4929 = vand.u32 %v4928, 4294901760
    %v4930 = vsub.f32 %v4928, %v4929
    %v4931 = vand.u32 %v4930, 4294901760
    %4932 = vmatpush.msra.mxu0 %v4931
    %v4933 = vand.u32 %v3080, 4294901760
    %4934 = vmatmul.f32.gmra.mxu0 %v4933
    %v4935 = vpop.f32.mrf.mxu0
    %v4936 = vadd.f32 %v4835, %v4935
    %4937 = vdwg.mxu0
    %v4938 = vand.u32 %v158, 4294901760
    %v4939 = vsub.f32 %v158, %v4938
    %4940 = vmatpush.msra.mxu0 %v4939
    %v4941 = vand.u32 %v157, 4294901760
    %v4942 = vsub.f32 %v157, %v4941
    %4943 = vmatpush.msra.mxu0 %v4942
    %v4944 = vand.u32 %v156, 4294901760
    %v4945 = vsub.f32 %v156, %v4944
    %4946 = vmatpush.msra.mxu0 %v4945
    %v4947 = vand.u32 %v155, 4294901760
    %v4948 = vsub.f32 %v155, %v4947
    %4949 = vmatpush.msra.mxu0 %v4948
    %v4950 = vand.u32 %v154, 4294901760
    %v4951 = vsub.f32 %v154, %v4950
    %4952 = vmatpush.msra.mxu0 %v4951
    %v4953 = vand.u32 %v153, 4294901760
    %v4954 = vsub.f32 %v153, %v4953
    %4955 = vmatpush.msra.mxu0 %v4954
    %v4956 = vand.u32 %v152, 4294901760
    %v4957 = vsub.f32 %v152, %v4956
    %4958 = vmatpush.msra.mxu0 %v4957
    %v4959 = vand.u32 %v151, 4294901760
    %v4960 = vsub.f32 %v151, %v4959
    %4961 = vmatpush.msra.mxu0 %v4960
    %v4962 = vand.u32 %v150, 4294901760
    %v4963 = vsub.f32 %v150, %v4962
    %4964 = vmatpush.msra.mxu0 %v4963
    %v4965 = vand.u32 %v149, 4294901760
    %v4966 = vsub.f32 %v149, %v4965
    %4967 = vmatpush.msra.mxu0 %v4966
    %v4968 = vand.u32 %v148, 4294901760
    %v4969 = vsub.f32 %v148, %v4968
    %4970 = vmatpush.msra.mxu0 %v4969
    %v4971 = vand.u32 %v147, 4294901760
    %v4972 = vsub.f32 %v147, %v4971
    %4973 = vmatpush.msra.mxu0 %v4972
    %v4974 = vand.u32 %v146, 4294901760
    %v4975 = vsub.f32 %v146, %v4974
    %4976 = vmatpush.msra.mxu0 %v4975
    %v4977 = vand.u32 %v145, 4294901760
    %v4978 = vsub.f32 %v145, %v4977
    %4979 = vmatpush.msra.mxu0 %v4978
    %v4980 = vand.u32 %v144, 4294901760
    %v4981 = vsub.f32 %v144, %v4980
    %4982 = vmatpush.msra.mxu0 %v4981
    %v4983 = vand.u32 %v143, 4294901760
    %v4984 = vsub.f32 %v143, %v4983
    %4985 = vmatpush.msra.mxu0 %v4984
    %v4986 = vand.u32 %v3080, 4294901760
    %v4987 = vsub.f32 %v3080, %v4986
    %4988 = vmatmul.f32.gmra.mxu0 %v4987
    %v4989 = vpop.f32.mrf.mxu0
    %v4990 = vadd.f32 %v4936, %v4989
    %4991 = vdwg.mxu0
    %v4992 = vand.u32 %v158, 4294901760
    %4993 = vmatpush.msra.mxu0 %v4992
    %v4994 = vand.u32 %v157, 4294901760
    %4995 = vmatpush.msra.mxu0 %v4994
    %v4996 = vand.u32 %v156, 4294901760
    %4997 = vmatpush.msra.mxu0 %v4996
    %v4998 = vand.u32 %v155, 4294901760
    %4999 = vmatpush.msra.mxu0 %v4998
    %v5000 = vand.u32 %v154, 4294901760
    %5001 = vmatpush.msra.mxu0 %v5000
    %v5002 = vand.u32 %v153, 4294901760
    %5003 = vmatpush.msra.mxu0 %v5002
    %v5004 = vand.u32 %v152, 4294901760
    %5005 = vmatpush.msra.mxu0 %v5004
    %v5006 = vand.u32 %v151, 4294901760
    %5007 = vmatpush.msra.mxu0 %v5006
    %v5008 = vand.u32 %v150, 4294901760
    %5009 = vmatpush.msra.mxu0 %v5008
    %v5010 = vand.u32 %v149, 4294901760
    %5011 = vmatpush.msra.mxu0 %v5010
    %v5012 = vand.u32 %v148, 4294901760
    %5013 = vmatpush.msra.mxu0 %v5012
    %v5014 = vand.u32 %v147, 4294901760
    %5015 = vmatpush.msra.mxu0 %v5014
    %v5016 = vand.u32 %v146, 4294901760
    %5017 = vmatpush.msra.mxu0 %v5016
    %v5018 = vand.u32 %v145, 4294901760
    %5019 = vmatpush.msra.mxu0 %v5018
    %v5020 = vand.u32 %v144, 4294901760
    %5021 = vmatpush.msra.mxu0 %v5020
    %v5022 = vand.u32 %v143, 4294901760
    %5023 = vmatpush.msra.mxu0 %v5022
    %v5024 = vand.u32 %v3080, 4294901760
    %v5025 = vsub.f32 %v3080, %v5024
    %v5026 = vand.u32 %v5025, 4294901760
    %5027 = vmatmul.f32.gmra.mxu0 %v5026
    %v5028 = vpop.f32.mrf.mxu0
    %v5029 = vadd.f32 %v4990, %v5028
    %5030 = vdwg.mxu0
    %v5031 = vand.u32 %v158, 4294901760
    %v5032 = vsub.f32 %v158, %v5031
    %v5033 = vand.u32 %v5032, 4294901760
    %5034 = vmatpush.msra.mxu0 %v5033
    %v5035 = vand.u32 %v157, 4294901760
    %v5036 = vsub.f32 %v157, %v5035
    %v5037 = vand.u32 %v5036, 4294901760
    %5038 = vmatpush.msra.mxu0 %v5037
    %v5039 = vand.u32 %v156, 4294901760
    %v5040 = vsub.f32 %v156, %v5039
    %v5041 = vand.u32 %v5040, 4294901760
    %5042 = vmatpush.msra.mxu0 %v5041
    %v5043 = vand.u32 %v155, 4294901760
    %v5044 = vsub.f32 %v155, %v5043
    %v5045 = vand.u32 %v5044, 4294901760
    %5046 = vmatpush.msra.mxu0 %v5045
    %v5047 = vand.u32 %v154, 4294901760
    %v5048 = vsub.f32 %v154, %v5047
    %v5049 = vand.u32 %v5048, 4294901760
    %5050 = vmatpush.msra.mxu0 %v5049
    %v5051 = vand.u32 %v153, 4294901760
    %v5052 = vsub.f32 %v153, %v5051
    %v5053 = vand.u32 %v5052, 4294901760
    %5054 = vmatpush.msra.mxu0 %v5053
    %v5055 = vand.u32 %v152, 4294901760
    %v5056 = vsub.f32 %v152, %v5055
    %v5057 = vand.u32 %v5056, 4294901760
    %5058 = vmatpush.msra.mxu0 %v5057
    %v5059 = vand.u32 %v151, 4294901760
    %v5060 = vsub.f32 %v151, %v5059
    %v5061 = vand.u32 %v5060, 4294901760
    %5062 = vmatpush.msra.mxu0 %v5061
    %v5063 = vand.u32 %v150, 4294901760
    %v5064 = vsub.f32 %v150, %v5063
    %v5065 = vand.u32 %v5064, 4294901760
    %5066 = vmatpush.msra.mxu0 %v5065
    %v5067 = vand.u32 %v149, 4294901760
    %v5068 = vsub.f32 %v149, %v5067
    %v5069 = vand.u32 %v5068, 4294901760
    %5070 = vmatpush.msra.mxu0 %v5069
    %v5071 = vand.u32 %v148, 4294901760
    %v5072 = vsub.f32 %v148, %v5071
    %v5073 = vand.u32 %v5072, 4294901760
    %5074 = vmatpush.msra.mxu0 %v5073
    %v5075 = vand.u32 %v147, 4294901760
    %v5076 = vsub.f32 %v147, %v5075
    %v5077 = vand.u32 %v5076, 4294901760
    %5078 = vmatpush.msra.mxu0 %v5077
    %v5079 = vand.u32 %v146, 4294901760
    %v5080 = vsub.f32 %v146, %v5079
    %v5081 = vand.u32 %v5080, 4294901760
    %5082 = vmatpush.msra.mxu0 %v5081
    %v5083 = vand.u32 %v145, 4294901760
    %v5084 = vsub.f32 %v145, %v5083
    %v5085 = vand.u32 %v5084, 4294901760
    %5086 = vmatpush.msra.mxu0 %v5085
    %v5087 = vand.u32 %v144, 4294901760
    %v5088 = vsub.f32 %v144, %v5087
    %v5089 = vand.u32 %v5088, 4294901760
    %5090 = vmatpush.msra.mxu0 %v5089
    %v5091 = vand.u32 %v143, 4294901760
    %v5092 = vsub.f32 %v143, %v5091
    %v5093 = vand.u32 %v5092, 4294901760
    %5094 = vmatpush.msra.mxu0 %v5093
    %v5095 = vand.u32 %v3080, 4294901760
    %5096 = vmatmul.f32.gmra.mxu0 %v5095
    %v5097 = vpop.f32.mrf.mxu0
    %v5098 = vadd.f32 %v5029, %v5097
    %5099 = vdwg.mxu0
    %v5100 = vand.u32 %v158, 4294901760
    %5101 = vmatpush.msra.mxu0 %v5100
    %v5102 = vand.u32 %v157, 4294901760
    %5103 = vmatpush.msra.mxu0 %v5102
    %v5104 = vand.u32 %v156, 4294901760
    %5105 = vmatpush.msra.mxu0 %v5104
    %v5106 = vand.u32 %v155, 4294901760
    %5107 = vmatpush.msra.mxu0 %v5106
    %v5108 = vand.u32 %v154, 4294901760
    %5109 = vmatpush.msra.mxu0 %v5108
    %v5110 = vand.u32 %v153, 4294901760
    %5111 = vmatpush.msra.mxu0 %v5110
    %v5112 = vand.u32 %v152, 4294901760
    %5113 = vmatpush.msra.mxu0 %v5112
    %v5114 = vand.u32 %v151, 4294901760
    %5115 = vmatpush.msra.mxu0 %v5114
    %v5116 = vand.u32 %v150, 4294901760
    %5117 = vmatpush.msra.mxu0 %v5116
    %v5118 = vand.u32 %v149, 4294901760
    %5119 = vmatpush.msra.mxu0 %v5118
    %v5120 = vand.u32 %v148, 4294901760
    %5121 = vmatpush.msra.mxu0 %v5120
    %v5122 = vand.u32 %v147, 4294901760
    %5123 = vmatpush.msra.mxu0 %v5122
    %v5124 = vand.u32 %v146, 4294901760
    %5125 = vmatpush.msra.mxu0 %v5124
    %v5126 = vand.u32 %v145, 4294901760
    %5127 = vmatpush.msra.mxu0 %v5126
    %v5128 = vand.u32 %v144, 4294901760
    %5129 = vmatpush.msra.mxu0 %v5128
    %v5130 = vand.u32 %v143, 4294901760
    %5131 = vmatpush.msra.mxu0 %v5130
    %v5132 = vand.u32 %v3080, 4294901760
    %5133 = vmatmul.f32.gmra.mxu0 %v5132
    %v5134 = vpop.f32.mrf.mxu0
    %v5135 = vadd.f32 %v5098, %v5134
    %5136 = vdwg.mxu0
    %v5137 = vand.u32 %v174, 4294901760
    %5138 = vmatpush.msra.mxu0 %v5137
    %v5139 = vand.u32 %v173, 4294901760
    %5140 = vmatpush.msra.mxu0 %v5139
    %v5141 = vand.u32 %v172, 4294901760
    %5142 = vmatpush.msra.mxu0 %v5141
    %v5143 = vand.u32 %v171, 4294901760
    %5144 = vmatpush.msra.mxu0 %v5143
    %v5145 = vand.u32 %v170, 4294901760
    %5146 = vmatpush.msra.mxu0 %v5145
    %v5147 = vand.u32 %v169, 4294901760
    %5148 = vmatpush.msra.mxu0 %v5147
    %v5149 = vand.u32 %v168, 4294901760
    %5150 = vmatpush.msra.mxu0 %v5149
    %v5151 = vand.u32 %v167, 4294901760
    %5152 = vmatpush.msra.mxu0 %v5151
    %v5153 = vand.u32 %v166, 4294901760
    %5154 = vmatpush.msra.mxu0 %v5153
    %v5155 = vand.u32 %v165, 4294901760
    %5156 = vmatpush.msra.mxu0 %v5155
    %v5157 = vand.u32 %v164, 4294901760
    %5158 = vmatpush.msra.mxu0 %v5157
    %v5159 = vand.u32 %v163, 4294901760
    %5160 = vmatpush.msra.mxu0 %v5159
    %v5161 = vand.u32 %v162, 4294901760
    %5162 = vmatpush.msra.mxu0 %v5161
    %v5163 = vand.u32 %v161, 4294901760
    %5164 = vmatpush.msra.mxu0 %v5163
    %v5165 = vand.u32 %v160, 4294901760
    %5166 = vmatpush.msra.mxu0 %v5165
    %v5167 = vand.u32 %v159, 4294901760
    %5168 = vmatpush.msra.mxu0 %v5167
    %v5169 = vand.u32 %v3081, 4294901760
    %v5170 = vsub.f32 %v3081, %v5169
    %v5171 = vand.u32 %v5170, 4294901760
    %v5172 = vsub.f32 %v5170, %v5171
    %v5173 = vand.u32 %v5172, 4294901760
    %5174 = vmatmul.f32.gmra.mxu0 %v5173
    %v5175 = vpop.f32.mrf.mxu0
    %v5176 = vadd.f32 %v5135, %v5175
    %5177 = vdwg.mxu0
    %v5178 = vand.u32 %v174, 4294901760
    %v5179 = vsub.f32 %v174, %v5178
    %v5180 = vand.u32 %v5179, 4294901760
    %v5181 = vsub.f32 %v5179, %v5180
    %v5182 = vand.u32 %v5181, 4294901760
    %5183 = vmatpush.msra.mxu0 %v5182
    %v5184 = vand.u32 %v173, 4294901760
    %v5185 = vsub.f32 %v173, %v5184
    %v5186 = vand.u32 %v5185, 4294901760
    %v5187 = vsub.f32 %v5185, %v5186
    %v5188 = vand.u32 %v5187, 4294901760
    %5189 = vmatpush.msra.mxu0 %v5188
    %v5190 = vand.u32 %v172, 4294901760
    %v5191 = vsub.f32 %v172, %v5190
    %v5192 = vand.u32 %v5191, 4294901760
    %v5193 = vsub.f32 %v5191, %v5192
    %v5194 = vand.u32 %v5193, 4294901760
    %5195 = vmatpush.msra.mxu0 %v5194
    %v5196 = vand.u32 %v171, 4294901760
    %v5197 = vsub.f32 %v171, %v5196
    %v5198 = vand.u32 %v5197, 4294901760
    %v5199 = vsub.f32 %v5197, %v5198
    %v5200 = vand.u32 %v5199, 4294901760
    %5201 = vmatpush.msra.mxu0 %v5200
    %v5202 = vand.u32 %v170, 4294901760
    %v5203 = vsub.f32 %v170, %v5202
    %v5204 = vand.u32 %v5203, 4294901760
    %v5205 = vsub.f32 %v5203, %v5204
    %v5206 = vand.u32 %v5205, 4294901760
    %5207 = vmatpush.msra.mxu0 %v5206
    %v5208 = vand.u32 %v169, 4294901760
    %v5209 = vsub.f32 %v169, %v5208
    %v5210 = vand.u32 %v5209, 4294901760
    %v5211 = vsub.f32 %v5209, %v5210
    %v5212 = vand.u32 %v5211, 4294901760
    %5213 = vmatpush.msra.mxu0 %v5212
    %v5214 = vand.u32 %v168, 4294901760
    %v5215 = vsub.f32 %v168, %v5214
    %v5216 = vand.u32 %v5215, 4294901760
    %v5217 = vsub.f32 %v5215, %v5216
    %v5218 = vand.u32 %v5217, 4294901760
    %5219 = vmatpush.msra.mxu0 %v5218
    %v5220 = vand.u32 %v167, 4294901760
    %v5221 = vsub.f32 %v167, %v5220
    %v5222 = vand.u32 %v5221, 4294901760
    %v5223 = vsub.f32 %v5221, %v5222
    %v5224 = vand.u32 %v5223, 4294901760
    %5225 = vmatpush.msra.mxu0 %v5224
    %v5226 = vand.u32 %v166, 4294901760
    %v5227 = vsub.f32 %v166, %v5226
    %v5228 = vand.u32 %v5227, 4294901760
    %v5229 = vsub.f32 %v5227, %v5228
    %v5230 = vand.u32 %v5229, 4294901760
    %5231 = vmatpush.msra.mxu0 %v5230
    %v5232 = vand.u32 %v165, 4294901760
    %v5233 = vsub.f32 %v165, %v5232
    %v5234 = vand.u32 %v5233, 4294901760
    %v5235 = vsub.f32 %v5233, %v5234
    %v5236 = vand.u32 %v5235, 4294901760
    %5237 = vmatpush.msra.mxu0 %v5236
    %v5238 = vand.u32 %v164, 4294901760
    %v5239 = vsub.f32 %v164, %v5238
    %v5240 = vand.u32 %v5239, 4294901760
    %v5241 = vsub.f32 %v5239, %v5240
    %v5242 = vand.u32 %v5241, 4294901760
    %5243 = vmatpush.msra.mxu0 %v5242
    %v5244 = vand.u32 %v163, 4294901760
    %v5245 = vsub.f32 %v163, %v5244
    %v5246 = vand.u32 %v5245, 4294901760
    %v5247 = vsub.f32 %v5245, %v5246
    %v5248 = vand.u32 %v5247, 4294901760
    %5249 = vmatpush.msra.mxu0 %v5248
    %v5250 = vand.u32 %v162, 4294901760
    %v5251 = vsub.f32 %v162, %v5250
    %v5252 = vand.u32 %v5251, 4294901760
    %v5253 = vsub.f32 %v5251, %v5252
    %v5254 = vand.u32 %v5253, 4294901760
    %5255 = vmatpush.msra.mxu0 %v5254
    %v5256 = vand.u32 %v161, 4294901760
    %v5257 = vsub.f32 %v161, %v5256
    %v5258 = vand.u32 %v5257, 4294901760
    %v5259 = vsub.f32 %v5257, %v5258
    %v5260 = vand.u32 %v5259, 4294901760
    %5261 = vmatpush.msra.mxu0 %v5260
    %v5262 = vand.u32 %v160, 4294901760
    %v5263 = vsub.f32 %v160, %v5262
    %v5264 = vand.u32 %v5263, 4294901760
    %v5265 = vsub.f32 %v5263, %v5264
    %v5266 = vand.u32 %v5265, 4294901760
    %5267 = vmatpush.msra.mxu0 %v5266
    %v5268 = vand.u32 %v159, 4294901760
    %v5269 = vsub.f32 %v159, %v5268
    %v5270 = vand.u32 %v5269, 4294901760
    %v5271 = vsub.f32 %v5269, %v5270
    %v5272 = vand.u32 %v5271, 4294901760
    %5273 = vmatpush.msra.mxu0 %v5272
    %v5274 = vand.u32 %v3081, 4294901760
    %5275 = vmatmul.f32.gmra.mxu0 %v5274
    %v5276 = vpop.f32.mrf.mxu0
    %v5277 = vadd.f32 %v5176, %v5276
    %5278 = vdwg.mxu0
    %v5279 = vand.u32 %v174, 4294901760
    %v5280 = vsub.f32 %v174, %v5279
    %5281 = vmatpush.msra.mxu0 %v5280
    %v5282 = vand.u32 %v173, 4294901760
    %v5283 = vsub.f32 %v173, %v5282
    %5284 = vmatpush.msra.mxu0 %v5283
    %v5285 = vand.u32 %v172, 4294901760
    %v5286 = vsub.f32 %v172, %v5285
    %5287 = vmatpush.msra.mxu0 %v5286
    %v5288 = vand.u32 %v171, 4294901760
    %v5289 = vsub.f32 %v171, %v5288
    %5290 = vmatpush.msra.mxu0 %v5289
    %v5291 = vand.u32 %v170, 4294901760
    %v5292 = vsub.f32 %v170, %v5291
    %5293 = vmatpush.msra.mxu0 %v5292
    %v5294 = vand.u32 %v169, 4294901760
    %v5295 = vsub.f32 %v169, %v5294
    %5296 = vmatpush.msra.mxu0 %v5295
    %v5297 = vand.u32 %v168, 4294901760
    %v5298 = vsub.f32 %v168, %v5297
    %5299 = vmatpush.msra.mxu0 %v5298
    %v5300 = vand.u32 %v167, 4294901760
    %v5301 = vsub.f32 %v167, %v5300
    %5302 = vmatpush.msra.mxu0 %v5301
    %v5303 = vand.u32 %v166, 4294901760
    %v5304 = vsub.f32 %v166, %v5303
    %5305 = vmatpush.msra.mxu0 %v5304
    %v5306 = vand.u32 %v165, 4294901760
    %v5307 = vsub.f32 %v165, %v5306
    %5308 = vmatpush.msra.mxu0 %v5307
    %v5309 = vand.u32 %v164, 4294901760
    %v5310 = vsub.f32 %v164, %v5309
    %5311 = vmatpush.msra.mxu0 %v5310
    %v5312 = vand.u32 %v163, 4294901760
    %v5313 = vsub.f32 %v163, %v5312
    %5314 = vmatpush.msra.mxu0 %v5313
    %v5315 = vand.u32 %v162, 4294901760
    %v5316 = vsub.f32 %v162, %v5315
    %5317 = vmatpush.msra.mxu0 %v5316
    %v5318 = vand.u32 %v161, 4294901760
    %v5319 = vsub.f32 %v161, %v5318
    %5320 = vmatpush.msra.mxu0 %v5319
    %v5321 = vand.u32 %v160, 4294901760
    %v5322 = vsub.f32 %v160, %v5321
    %5323 = vmatpush.msra.mxu0 %v5322
    %v5324 = vand.u32 %v159, 4294901760
    %v5325 = vsub.f32 %v159, %v5324
    %5326 = vmatpush.msra.mxu0 %v5325
    %v5327 = vand.u32 %v3081, 4294901760
    %v5328 = vsub.f32 %v3081, %v5327
    %5329 = vmatmul.f32.gmra.mxu0 %v5328
    %v5330 = vpop.f32.mrf.mxu0
    %v5331 = vadd.f32 %v5277, %v5330
    %5332 = vdwg.mxu0
    %v5333 = vand.u32 %v174, 4294901760
    %5334 = vmatpush.msra.mxu0 %v5333
    %v5335 = vand.u32 %v173, 4294901760
    %5336 = vmatpush.msra.mxu0 %v5335
    %v5337 = vand.u32 %v172, 4294901760
    %5338 = vmatpush.msra.mxu0 %v5337
    %v5339 = vand.u32 %v171, 4294901760
    %5340 = vmatpush.msra.mxu0 %v5339
    %v5341 = vand.u32 %v170, 4294901760
    %5342 = vmatpush.msra.mxu0 %v5341
    %v5343 = vand.u32 %v169, 4294901760
    %5344 = vmatpush.msra.mxu0 %v5343
    %v5345 = vand.u32 %v168, 4294901760
    %5346 = vmatpush.msra.mxu0 %v5345
    %v5347 = vand.u32 %v167, 4294901760
    %5348 = vmatpush.msra.mxu0 %v5347
    %v5349 = vand.u32 %v166, 4294901760
    %5350 = vmatpush.msra.mxu0 %v5349
    %v5351 = vand.u32 %v165, 4294901760
    %5352 = vmatpush.msra.mxu0 %v5351
    %v5353 = vand.u32 %v164, 4294901760
    %5354 = vmatpush.msra.mxu0 %v5353
    %v5355 = vand.u32 %v163, 4294901760
    %5356 = vmatpush.msra.mxu0 %v5355
    %v5357 = vand.u32 %v162, 4294901760
    %5358 = vmatpush.msra.mxu0 %v5357
    %v5359 = vand.u32 %v161, 4294901760
    %5360 = vmatpush.msra.mxu0 %v5359
    %v5361 = vand.u32 %v160, 4294901760
    %5362 = vmatpush.msra.mxu0 %v5361
    %v5363 = vand.u32 %v159, 4294901760
    %5364 = vmatpush.msra.mxu0 %v5363
    %v5365 = vand.u32 %v3081, 4294901760
    %v5366 = vsub.f32 %v3081, %v5365
    %v5367 = vand.u32 %v5366, 4294901760
    %5368 = vmatmul.f32.gmra.mxu0 %v5367
    %v5369 = vpop.f32.mrf.mxu0
    %v5370 = vadd.f32 %v5331, %v5369
    %5371 = vdwg.mxu0
    %v5372 = vand.u32 %v174, 4294901760
    %v5373 = vsub.f32 %v174, %v5372
    %v5374 = vand.u32 %v5373, 4294901760
    %5375 = vmatpush.msra.mxu0 %v5374
    %v5376 = vand.u32 %v173, 4294901760
    %v5377 = vsub.f32 %v173, %v5376
    %v5378 = vand.u32 %v5377, 4294901760
    %5379 = vmatpush.msra.mxu0 %v5378
    %v5380 = vand.u32 %v172, 4294901760
    %v5381 = vsub.f32 %v172, %v5380
    %v5382 = vand.u32 %v5381, 4294901760
    %5383 = vmatpush.msra.mxu0 %v5382
    %v5384 = vand.u32 %v171, 4294901760
    %v5385 = vsub.f32 %v171, %v5384
    %v5386 = vand.u32 %v5385, 4294901760
    %5387 = vmatpush.msra.mxu0 %v5386
    %v5388 = vand.u32 %v170, 4294901760
    %v5389 = vsub.f32 %v170, %v5388
    %v5390 = vand.u32 %v5389, 4294901760
    %5391 = vmatpush.msra.mxu0 %v5390
    %v5392 = vand.u32 %v169, 4294901760
    %v5393 = vsub.f32 %v169, %v5392
    %v5394 = vand.u32 %v5393, 4294901760
    %5395 = vmatpush.msra.mxu0 %v5394
    %v5396 = vand.u32 %v168, 4294901760
    %v5397 = vsub.f32 %v168, %v5396
    %v5398 = vand.u32 %v5397, 4294901760
    %5399 = vmatpush.msra.mxu0 %v5398
    %v5400 = vand.u32 %v167, 4294901760
    %v5401 = vsub.f32 %v167, %v5400
    %v5402 = vand.u32 %v5401, 4294901760
    %5403 = vmatpush.msra.mxu0 %v5402
    %v5404 = vand.u32 %v166, 4294901760
    %v5405 = vsub.f32 %v166, %v5404
    %v5406 = vand.u32 %v5405, 4294901760
    %5407 = vmatpush.msra.mxu0 %v5406
    %v5408 = vand.u32 %v165, 4294901760
    %v5409 = vsub.f32 %v165, %v5408
    %v5410 = vand.u32 %v5409, 4294901760
    %5411 = vmatpush.msra.mxu0 %v5410
    %v5412 = vand.u32 %v164, 4294901760
    %v5413 = vsub.f32 %v164, %v5412
    %v5414 = vand.u32 %v5413, 4294901760
    %5415 = vmatpush.msra.mxu0 %v5414
    %v5416 = vand.u32 %v163, 4294901760
    %v5417 = vsub.f32 %v163, %v5416
    %v5418 = vand.u32 %v5417, 4294901760
    %5419 = vmatpush.msra.mxu0 %v5418
    %v5420 = vand.u32 %v162, 4294901760
    %v5421 = vsub.f32 %v162, %v5420
    %v5422 = vand.u32 %v5421, 4294901760
    %5423 = vmatpush.msra.mxu0 %v5422
    %v5424 = vand.u32 %v161, 4294901760
    %v5425 = vsub.f32 %v161, %v5424
    %v5426 = vand.u32 %v5425, 4294901760
    %5427 = vmatpush.msra.mxu0 %v5426
    %v5428 = vand.u32 %v160, 4294901760
    %v5429 = vsub.f32 %v160, %v5428
    %v5430 = vand.u32 %v5429, 4294901760
    %5431 = vmatpush.msra.mxu0 %v5430
    %v5432 = vand.u32 %v159, 4294901760
    %v5433 = vsub.f32 %v159, %v5432
    %v5434 = vand.u32 %v5433, 4294901760
    %5435 = vmatpush.msra.mxu0 %v5434
    %v5436 = vand.u32 %v3081, 4294901760
    %5437 = vmatmul.f32.gmra.mxu0 %v5436
    %v5438 = vpop.f32.mrf.mxu0
    %v5439 = vadd.f32 %v5370, %v5438
    %5440 = vdwg.mxu0
    %v5441 = vand.u32 %v174, 4294901760
    %5442 = vmatpush.msra.mxu0 %v5441
    %v5443 = vand.u32 %v173, 4294901760
    %5444 = vmatpush.msra.mxu0 %v5443
    %v5445 = vand.u32 %v172, 4294901760
    %5446 = vmatpush.msra.mxu0 %v5445
    %v5447 = vand.u32 %v171, 4294901760
    %5448 = vmatpush.msra.mxu0 %v5447
    %v5449 = vand.u32 %v170, 4294901760
    %5450 = vmatpush.msra.mxu0 %v5449
    %v5451 = vand.u32 %v169, 4294901760
    %5452 = vmatpush.msra.mxu0 %v5451
    %v5453 = vand.u32 %v168, 4294901760
    %5454 = vmatpush.msra.mxu0 %v5453
    %v5455 = vand.u32 %v167, 4294901760
    %5456 = vmatpush.msra.mxu0 %v5455
    %v5457 = vand.u32 %v166, 4294901760
    %5458 = vmatpush.msra.mxu0 %v5457
    %v5459 = vand.u32 %v165, 4294901760
    %5460 = vmatpush.msra.mxu0 %v5459
    %v5461 = vand.u32 %v164, 4294901760
    %5462 = vmatpush.msra.mxu0 %v5461
    %v5463 = vand.u32 %v163, 4294901760
    %5464 = vmatpush.msra.mxu0 %v5463
    %v5465 = vand.u32 %v162, 4294901760
    %5466 = vmatpush.msra.mxu0 %v5465
    %v5467 = vand.u32 %v161, 4294901760
    %5468 = vmatpush.msra.mxu0 %v5467
    %v5469 = vand.u32 %v160, 4294901760
    %5470 = vmatpush.msra.mxu0 %v5469
    %v5471 = vand.u32 %v159, 4294901760
    %5472 = vmatpush.msra.mxu0 %v5471
    %v5473 = vand.u32 %v3081, 4294901760
    %5474 = vmatmul.f32.gmra.mxu0 %v5473
    %v5475 = vpop.f32.mrf.mxu0
    %v5476 = vadd.f32 %v5439, %v5475
    %5477 = vdwg.mxu0
    %v5478 = vand.u32 %v190, 4294901760
    %5479 = vmatpush.msra.mxu0 %v5478
    %v5480 = vand.u32 %v189, 4294901760
    %5481 = vmatpush.msra.mxu0 %v5480
    %v5482 = vand.u32 %v188, 4294901760
    %5483 = vmatpush.msra.mxu0 %v5482
    %v5484 = vand.u32 %v187, 4294901760
    %5485 = vmatpush.msra.mxu0 %v5484
    %v5486 = vand.u32 %v186, 4294901760
    %5487 = vmatpush.msra.mxu0 %v5486
    %v5488 = vand.u32 %v185, 4294901760
    %5489 = vmatpush.msra.mxu0 %v5488
    %v5490 = vand.u32 %v184, 4294901760
    %5491 = vmatpush.msra.mxu0 %v5490
    %v5492 = vand.u32 %v183, 4294901760
    %5493 = vmatpush.msra.mxu0 %v5492
    %v5494 = vand.u32 %v182, 4294901760
    %5495 = vmatpush.msra.mxu0 %v5494
    %v5496 = vand.u32 %v181, 4294901760
    %5497 = vmatpush.msra.mxu0 %v5496
    %v5498 = vand.u32 %v180, 4294901760
    %5499 = vmatpush.msra.mxu0 %v5498
    %v5500 = vand.u32 %v179, 4294901760
    %5501 = vmatpush.msra.mxu0 %v5500
    %v5502 = vand.u32 %v178, 4294901760
    %5503 = vmatpush.msra.mxu0 %v5502
    %v5504 = vand.u32 %v177, 4294901760
    %5505 = vmatpush.msra.mxu0 %v5504
    %v5506 = vand.u32 %v176, 4294901760
    %5507 = vmatpush.msra.mxu0 %v5506
    %v5508 = vand.u32 %v175, 4294901760
    %5509 = vmatpush.msra.mxu0 %v5508
    %v5510 = vand.u32 %v3082, 4294901760
    %v5511 = vsub.f32 %v3082, %v5510
    %v5512 = vand.u32 %v5511, 4294901760
    %v5513 = vsub.f32 %v5511, %v5512
    %v5514 = vand.u32 %v5513, 4294901760
    %5515 = vmatmul.f32.gmra.mxu0 %v5514
    %v5516 = vpop.f32.mrf.mxu0
    %v5517 = vadd.f32 %v5476, %v5516
    %5518 = vdwg.mxu0
    %v5519 = vand.u32 %v190, 4294901760
    %v5520 = vsub.f32 %v190, %v5519
    %v5521 = vand.u32 %v5520, 4294901760
    %v5522 = vsub.f32 %v5520, %v5521
    %v5523 = vand.u32 %v5522, 4294901760
    %5524 = vmatpush.msra.mxu0 %v5523
    %v5525 = vand.u32 %v189, 4294901760
    %v5526 = vsub.f32 %v189, %v5525
    %v5527 = vand.u32 %v5526, 4294901760
    %v5528 = vsub.f32 %v5526, %v5527
    %v5529 = vand.u32 %v5528, 4294901760
    %5530 = vmatpush.msra.mxu0 %v5529
    %v5531 = vand.u32 %v188, 4294901760
    %v5532 = vsub.f32 %v188, %v5531
    %v5533 = vand.u32 %v5532, 4294901760
    %v5534 = vsub.f32 %v5532, %v5533
    %v5535 = vand.u32 %v5534, 4294901760
    %5536 = vmatpush.msra.mxu0 %v5535
    %v5537 = vand.u32 %v187, 4294901760
    %v5538 = vsub.f32 %v187, %v5537
    %v5539 = vand.u32 %v5538, 4294901760
    %v5540 = vsub.f32 %v5538, %v5539
    %v5541 = vand.u32 %v5540, 4294901760
    %5542 = vmatpush.msra.mxu0 %v5541
    %v5543 = vand.u32 %v186, 4294901760
    %v5544 = vsub.f32 %v186, %v5543
    %v5545 = vand.u32 %v5544, 4294901760
    %v5546 = vsub.f32 %v5544, %v5545
    %v5547 = vand.u32 %v5546, 4294901760
    %5548 = vmatpush.msra.mxu0 %v5547
    %v5549 = vand.u32 %v185, 4294901760
    %v5550 = vsub.f32 %v185, %v5549
    %v5551 = vand.u32 %v5550, 4294901760
    %v5552 = vsub.f32 %v5550, %v5551
    %v5553 = vand.u32 %v5552, 4294901760
    %5554 = vmatpush.msra.mxu0 %v5553
    %v5555 = vand.u32 %v184, 4294901760
    %v5556 = vsub.f32 %v184, %v5555
    %v5557 = vand.u32 %v5556, 4294901760
    %v5558 = vsub.f32 %v5556, %v5557
    %v5559 = vand.u32 %v5558, 4294901760
    %5560 = vmatpush.msra.mxu0 %v5559
    %v5561 = vand.u32 %v183, 4294901760
    %v5562 = vsub.f32 %v183, %v5561
    %v5563 = vand.u32 %v5562, 4294901760
    %v5564 = vsub.f32 %v5562, %v5563
    %v5565 = vand.u32 %v5564, 4294901760
    %5566 = vmatpush.msra.mxu0 %v5565
    %v5567 = vand.u32 %v182, 4294901760
    %v5568 = vsub.f32 %v182, %v5567
    %v5569 = vand.u32 %v5568, 4294901760
    %v5570 = vsub.f32 %v5568, %v5569
    %v5571 = vand.u32 %v5570, 4294901760
    %5572 = vmatpush.msra.mxu0 %v5571
    %v5573 = vand.u32 %v181, 4294901760
    %v5574 = vsub.f32 %v181, %v5573
    %v5575 = vand.u32 %v5574, 4294901760
    %v5576 = vsub.f32 %v5574, %v5575
    %v5577 = vand.u32 %v5576, 4294901760
    %5578 = vmatpush.msra.mxu0 %v5577
    %v5579 = vand.u32 %v180, 4294901760
    %v5580 = vsub.f32 %v180, %v5579
    %v5581 = vand.u32 %v5580, 4294901760
    %v5582 = vsub.f32 %v5580, %v5581
    %v5583 = vand.u32 %v5582, 4294901760
    %5584 = vmatpush.msra.mxu0 %v5583
    %v5585 = vand.u32 %v179, 4294901760
    %v5586 = vsub.f32 %v179, %v5585
    %v5587 = vand.u32 %v5586, 4294901760
    %v5588 = vsub.f32 %v5586, %v5587
    %v5589 = vand.u32 %v5588, 4294901760
    %5590 = vmatpush.msra.mxu0 %v5589
    %v5591 = vand.u32 %v178, 4294901760
    %v5592 = vsub.f32 %v178, %v5591
    %v5593 = vand.u32 %v5592, 4294901760
    %v5594 = vsub.f32 %v5592, %v5593
    %v5595 = vand.u32 %v5594, 4294901760
    %5596 = vmatpush.msra.mxu0 %v5595
    %v5597 = vand.u32 %v177, 4294901760
    %v5598 = vsub.f32 %v177, %v5597
    %v5599 = vand.u32 %v5598, 4294901760
    %v5600 = vsub.f32 %v5598, %v5599
    %v5601 = vand.u32 %v5600, 4294901760
    %5602 = vmatpush.msra.mxu0 %v5601
    %v5603 = vand.u32 %v176, 4294901760
    %v5604 = vsub.f32 %v176, %v5603
    %v5605 = vand.u32 %v5604, 4294901760
    %v5606 = vsub.f32 %v5604, %v5605
    %v5607 = vand.u32 %v5606, 4294901760
    %5608 = vmatpush.msra.mxu0 %v5607
    %v5609 = vand.u32 %v175, 4294901760
    %v5610 = vsub.f32 %v175, %v5609
    %v5611 = vand.u32 %v5610, 4294901760
    %v5612 = vsub.f32 %v5610, %v5611
    %v5613 = vand.u32 %v5612, 4294901760
    %5614 = vmatpush.msra.mxu0 %v5613
    %v5615 = vand.u32 %v3082, 4294901760
    %5616 = vmatmul.f32.gmra.mxu0 %v5615
    %v5617 = vpop.f32.mrf.mxu0
    %v5618 = vadd.f32 %v5517, %v5617
    %5619 = vdwg.mxu0
    %v5620 = vand.u32 %v190, 4294901760
    %v5621 = vsub.f32 %v190, %v5620
    %5622 = vmatpush.msra.mxu0 %v5621
    %v5623 = vand.u32 %v189, 4294901760
    %v5624 = vsub.f32 %v189, %v5623
    %5625 = vmatpush.msra.mxu0 %v5624
    %v5626 = vand.u32 %v188, 4294901760
    %v5627 = vsub.f32 %v188, %v5626
    %5628 = vmatpush.msra.mxu0 %v5627
    %v5629 = vand.u32 %v187, 4294901760
    %v5630 = vsub.f32 %v187, %v5629
    %5631 = vmatpush.msra.mxu0 %v5630
    %v5632 = vand.u32 %v186, 4294901760
    %v5633 = vsub.f32 %v186, %v5632
    %5634 = vmatpush.msra.mxu0 %v5633
    %v5635 = vand.u32 %v185, 4294901760
    %v5636 = vsub.f32 %v185, %v5635
    %5637 = vmatpush.msra.mxu0 %v5636
    %v5638 = vand.u32 %v184, 4294901760
    %v5639 = vsub.f32 %v184, %v5638
    %5640 = vmatpush.msra.mxu0 %v5639
    %v5641 = vand.u32 %v183, 4294901760
    %v5642 = vsub.f32 %v183, %v5641
    %5643 = vmatpush.msra.mxu0 %v5642
    %v5644 = vand.u32 %v182, 4294901760
    %v5645 = vsub.f32 %v182, %v5644
    %5646 = vmatpush.msra.mxu0 %v5645
    %v5647 = vand.u32 %v181, 4294901760
    %v5648 = vsub.f32 %v181, %v5647
    %5649 = vmatpush.msra.mxu0 %v5648
    %v5650 = vand.u32 %v180, 4294901760
    %v5651 = vsub.f32 %v180, %v5650
    %5652 = vmatpush.msra.mxu0 %v5651
    %v5653 = vand.u32 %v179, 4294901760
    %v5654 = vsub.f32 %v179, %v5653
    %5655 = vmatpush.msra.mxu0 %v5654
    %v5656 = vand.u32 %v178, 4294901760
    %v5657 = vsub.f32 %v178, %v5656
    %5658 = vmatpush.msra.mxu0 %v5657
    %v5659 = vand.u32 %v177, 4294901760
    %v5660 = vsub.f32 %v177, %v5659
    %5661 = vmatpush.msra.mxu0 %v5660
    %v5662 = vand.u32 %v176, 4294901760
    %v5663 = vsub.f32 %v176, %v5662
    %5664 = vmatpush.msra.mxu0 %v5663
    %v5665 = vand.u32 %v175, 4294901760
    %v5666 = vsub.f32 %v175, %v5665
    %5667 = vmatpush.msra.mxu0 %v5666
    %v5668 = vand.u32 %v3082, 4294901760
    %v5669 = vsub.f32 %v3082, %v5668
    %5670 = vmatmul.f32.gmra.mxu0 %v5669
    %v5671 = vpop.f32.mrf.mxu0
    %v5672 = vadd.f32 %v5618, %v5671
    %5673 = vdwg.mxu0
    %v5674 = vand.u32 %v190, 4294901760
    %5675 = vmatpush.msra.mxu0 %v5674
    %v5676 = vand.u32 %v189, 4294901760
    %5677 = vmatpush.msra.mxu0 %v5676
    %v5678 = vand.u32 %v188, 4294901760
    %5679 = vmatpush.msra.mxu0 %v5678
    %v5680 = vand.u32 %v187, 4294901760
    %5681 = vmatpush.msra.mxu0 %v5680
    %v5682 = vand.u32 %v186, 4294901760
    %5683 = vmatpush.msra.mxu0 %v5682
    %v5684 = vand.u32 %v185, 4294901760
    %5685 = vmatpush.msra.mxu0 %v5684
    %v5686 = vand.u32 %v184, 4294901760
    %5687 = vmatpush.msra.mxu0 %v5686
    %v5688 = vand.u32 %v183, 4294901760
    %5689 = vmatpush.msra.mxu0 %v5688
    %v5690 = vand.u32 %v182, 4294901760
    %5691 = vmatpush.msra.mxu0 %v5690
    %v5692 = vand.u32 %v181, 4294901760
    %5693 = vmatpush.msra.mxu0 %v5692
    %v5694 = vand.u32 %v180, 4294901760
    %5695 = vmatpush.msra.mxu0 %v5694
    %v5696 = vand.u32 %v179, 4294901760
    %5697 = vmatpush.msra.mxu0 %v5696
    %v5698 = vand.u32 %v178, 4294901760
    %5699 = vmatpush.msra.mxu0 %v5698
    %v5700 = vand.u32 %v177, 4294901760
    %5701 = vmatpush.msra.mxu0 %v5700
    %v5702 = vand.u32 %v176, 4294901760
    %5703 = vmatpush.msra.mxu0 %v5702
    %v5704 = vand.u32 %v175, 4294901760
    %5705 = vmatpush.msra.mxu0 %v5704
    %v5706 = vand.u32 %v3082, 4294901760
    %v5707 = vsub.f32 %v3082, %v5706
    %v5708 = vand.u32 %v5707, 4294901760
    %5709 = vmatmul.f32.gmra.mxu0 %v5708
    %v5710 = vpop.f32.mrf.mxu0
    %v5711 = vadd.f32 %v5672, %v5710
    %5712 = vdwg.mxu0
    %v5713 = vand.u32 %v190, 4294901760
    %v5714 = vsub.f32 %v190, %v5713
    %v5715 = vand.u32 %v5714, 4294901760
    %5716 = vmatpush.msra.mxu0 %v5715
    %v5717 = vand.u32 %v189, 4294901760
    %v5718 = vsub.f32 %v189, %v5717
    %v5719 = vand.u32 %v5718, 4294901760
    %5720 = vmatpush.msra.mxu0 %v5719
    %v5721 = vand.u32 %v188, 4294901760
    %v5722 = vsub.f32 %v188, %v5721
    %v5723 = vand.u32 %v5722, 4294901760
    %5724 = vmatpush.msra.mxu0 %v5723
    %v5725 = vand.u32 %v187, 4294901760
    %v5726 = vsub.f32 %v187, %v5725
    %v5727 = vand.u32 %v5726, 4294901760
    %5728 = vmatpush.msra.mxu0 %v5727
    %v5729 = vand.u32 %v186, 4294901760
    %v5730 = vsub.f32 %v186, %v5729
    %v5731 = vand.u32 %v5730, 4294901760
    %5732 = vmatpush.msra.mxu0 %v5731
    %v5733 = vand.u32 %v185, 4294901760
    %v5734 = vsub.f32 %v185, %v5733
    %v5735 = vand.u32 %v5734, 4294901760
    %5736 = vmatpush.msra.mxu0 %v5735
    %v5737 = vand.u32 %v184, 4294901760
    %v5738 = vsub.f32 %v184, %v5737
    %v5739 = vand.u32 %v5738, 4294901760
    %5740 = vmatpush.msra.mxu0 %v5739
    %v5741 = vand.u32 %v183, 4294901760
    %v5742 = vsub.f32 %v183, %v5741
    %v5743 = vand.u32 %v5742, 4294901760
    %5744 = vmatpush.msra.mxu0 %v5743
    %v5745 = vand.u32 %v182, 4294901760
    %v5746 = vsub.f32 %v182, %v5745
    %v5747 = vand.u32 %v5746, 4294901760
    %5748 = vmatpush.msra.mxu0 %v5747
    %v5749 = vand.u32 %v181, 4294901760
    %v5750 = vsub.f32 %v181, %v5749
    %v5751 = vand.u32 %v5750, 4294901760
    %5752 = vmatpush.msra.mxu0 %v5751
    %v5753 = vand.u32 %v180, 4294901760
    %v5754 = vsub.f32 %v180, %v5753
    %v5755 = vand.u32 %v5754, 4294901760
    %5756 = vmatpush.msra.mxu0 %v5755
    %v5757 = vand.u32 %v179, 4294901760
    %v5758 = vsub.f32 %v179, %v5757
    %v5759 = vand.u32 %v5758, 4294901760
    %5760 = vmatpush.msra.mxu0 %v5759
    %v5761 = vand.u32 %v178, 4294901760
    %v5762 = vsub.f32 %v178, %v5761
    %v5763 = vand.u32 %v5762, 4294901760
    %5764 = vmatpush.msra.mxu0 %v5763
    %v5765 = vand.u32 %v177, 4294901760
    %v5766 = vsub.f32 %v177, %v5765
    %v5767 = vand.u32 %v5766, 4294901760
    %5768 = vmatpush.msra.mxu0 %v5767
    %v5769 = vand.u32 %v176, 4294901760
    %v5770 = vsub.f32 %v176, %v5769
    %v5771 = vand.u32 %v5770, 4294901760
    %5772 = vmatpush.msra.mxu0 %v5771
    %v5773 = vand.u32 %v175, 4294901760
    %v5774 = vsub.f32 %v175, %v5773
    %v5775 = vand.u32 %v5774, 4294901760
    %5776 = vmatpush.msra.mxu0 %v5775
    %v5777 = vand.u32 %v3082, 4294901760
    %5778 = vmatmul.f32.gmra.mxu0 %v5777
    %v5779 = vpop.f32.mrf.mxu0
    %v5780 = vadd.f32 %v5711, %v5779
    %5781 = vdwg.mxu0
    %v5782 = vand.u32 %v190, 4294901760
    %5783 = vmatpush.msra.mxu0 %v5782
    %v5784 = vand.u32 %v189, 4294901760
    %5785 = vmatpush.msra.mxu0 %v5784
    %v5786 = vand.u32 %v188, 4294901760
    %5787 = vmatpush.msra.mxu0 %v5786
    %v5788 = vand.u32 %v187, 4294901760
    %5789 = vmatpush.msra.mxu0 %v5788
    %v5790 = vand.u32 %v186, 4294901760
    %5791 = vmatpush.msra.mxu0 %v5790
    %v5792 = vand.u32 %v185, 4294901760
    %5793 = vmatpush.msra.mxu0 %v5792
    %v5794 = vand.u32 %v184, 4294901760
    %5795 = vmatpush.msra.mxu0 %v5794
    %v5796 = vand.u32 %v183, 4294901760
    %5797 = vmatpush.msra.mxu0 %v5796
    %v5798 = vand.u32 %v182, 4294901760
    %5799 = vmatpush.msra.mxu0 %v5798
    %v5800 = vand.u32 %v181, 4294901760
    %5801 = vmatpush.msra.mxu0 %v5800
    %v5802 = vand.u32 %v180, 4294901760
    %5803 = vmatpush.msra.mxu0 %v5802
    %v5804 = vand.u32 %v179, 4294901760
    %5805 = vmatpush.msra.mxu0 %v5804
    %v5806 = vand.u32 %v178, 4294901760
    %5807 = vmatpush.msra.mxu0 %v5806
    %v5808 = vand.u32 %v177, 4294901760
    %5809 = vmatpush.msra.mxu0 %v5808
    %v5810 = vand.u32 %v176, 4294901760
    %5811 = vmatpush.msra.mxu0 %v5810
    %v5812 = vand.u32 %v175, 4294901760
    %5813 = vmatpush.msra.mxu0 %v5812
    %v5814 = vand.u32 %v3082, 4294901760
    %5815 = vmatmul.f32.gmra.mxu0 %v5814
    %v5816 = vpop.f32.mrf.mxu0
    %v5817 = vadd.f32 %v5780, %v5816
    %5818 = vdwg.mxu0
    %v5819 = vld [vmem:[%s3] sm:$0x1]
    %v5821 = vperm.slane %v5819, 0
    %v5823 = vadd.f32 %v5817, %v5821
    %v5824 = vmax.f32 %v5823, 0.0
    %5825 = vst [vmem:[#allocation8] sm:$0x3] %v5824
    // Predicated region
    $region30: #{tpu_custom_call.1} parent=1 // pred_check
      _
    $region31: #{tpu_custom_call.1} parent=1 // pred_check_branch
      %5827 = sbr.rel (0) target = $region33
    $region32: #{tpu_custom_call.1} parent=1 // pred_region
      %5829 = vsyncadd [#allocation4], 0
      %s5831 = sshll.u32 [#allocation8], 4
      %s5832 = int_to_ptr.vmem [resolvable:$true] %s5831
      %s5833 = sshll.u32 %s4, 4
      %s5834 = int_to_ptr.hbm [resolvable:$true] %s5833
      %5836 = dma.vmem_to_hbm [thread:$0]  %s5832, 32, %s5834, [#allocation4]
    $region33: #{tpu_custom_call.1} parent=1 // pred_fallthru
      _
    // Predicated region
    $region34: #{tpu_custom_call.1} parent=1 // pred_check
      _
    $region35: #{tpu_custom_call.1} parent=1 // pred_check_branch
      %5838 = sbr.rel (0) target = $region37
    $region36: #{tpu_custom_call.1} parent=1 // pred_region
      %5840 = dma.done [#allocation4], 32
    $region37: #{tpu_custom_call.1} parent=1 // pred_fallthru
      _
    %5841 = vsyncpa [#allocation3], 1
    %5842 = vsyncpa [#allocation6], 1
    %5843 = vsyncpa [#allocation4], 1

</llo_original>
